<compile_context>
chip_gen: v5e
topology: v5e:2x2
jax: 0.10.0
libtpu: 0.0.40
codegen_flags: <defaults>
</compile_context>

<pallas_src>
import functools

import numpy as np
import jax
import jax.numpy as jnp
from jax import lax
from jax.experimental import pallas as pl
from jax.experimental.pallas import tpu as pltpu  # noqa: F401  (TPU backend assumed)


# ----------------------------------------------------------------------------
# In-kernel helpers (operate on already-loaded VMEM values, all f32)
# ----------------------------------------------------------------------------
def _mha(x_q, x_kv, w_in, b_in, w_out, b_out, nhead, key_bias=None):
    """Multi-head attention.  w_in: (C, 3C) packed [Wq|Wk|Wv], b_in: (1, 3C).

    Output projection folded per head:  concat_h(o_h) @ Wo == sum_h o_h @ Wo[h].
    key_bias: (1, Skv) additive score bias (0 for valid keys, -1e30 for padded).
    """
    C = x_q.shape[-1]
    d = C // nhead
    scale = 1.0 / float(np.sqrt(d))
    q = jnp.dot(x_q, w_in[:, 0:C], preferred_element_type=jnp.float32) + b_in[:, 0:C]
    k = jnp.dot(x_kv, w_in[:, C:2 * C], preferred_element_type=jnp.float32) + b_in[:, C:2 * C]
    v = jnp.dot(x_kv, w_in[:, 2 * C:3 * C], preferred_element_type=jnp.float32) + b_in[:, 2 * C:3 * C]
    out = None
    for h in range(nhead):            # nhead is static & tiny -> fully unrolled in one kernel
        lo, hi = h * d, (h + 1) * d
        s = lax.dot_general(q[:, lo:hi], k[:, lo:hi], (((1,), (1,)), ((), ())),
                            preferred_element_type=jnp.float32) * scale        # (Sq, Skv)
        if key_bias is not None:
            s = s + key_bias
        m = jnp.max(s, axis=-1, keepdims=True)
        e = jnp.exp(s - m)
        p = e / jnp.sum(e, axis=-1, keepdims=True)
        oh = jnp.dot(p, v[:, lo:hi], preferred_element_type=jnp.float32)        # (Sq, d)
        contrib = jnp.dot(oh, w_out[lo:hi, :], preferred_element_type=jnp.float32)
        out = contrib if out is None else out + contrib
    return out + b_out


def _add_ln(x, y, g, b):
    """LayerNorm(x + y) over last dim, eps=1e-5 (PyTorch default)."""
    z = x + y
    mu = jnp.mean(z, axis=-1, keepdims=True)
    var = jnp.mean(jnp.square(z - mu), axis=-1, keepdims=True)
    return (z - mu) * lax.rsqrt(var + 1e-5) * g + b


def _ffn(x, w1, b1, w2, b2):
    h = jnp.maximum(jnp.dot(x, w1, preferred_element_type=jnp.float32) + b1, 0.0)  # ReLU
    return jnp.dot(h, w2, preferred_element_type=jnp.float32) + b2


# ----------------------------------------------------------------------------
# Fused encoder kernel: embedding + nn.TransformerEncoderLayer (1 layer)
# ----------------------------------------------------------------------------
def _encoder_kernel(x_ref, emb_ref,
                    sa_win_ref, sa_bin_ref, sa_wo_ref, sa_bo_ref,
                    ff_w1_ref, ff_b1_ref, ff_w2_ref, ff_b2_ref,
                    ln_g_ref, ln_b_ref,
                    out_ref, *, nhead):
    x = jnp.dot(x_ref[...], emb_ref[...], preferred_element_type=jnp.float32)  # Embedding (no bias)
    lg = ln_g_ref[...]
    lb = ln_b_ref[...]
    sa = _mha(x, x, sa_win_ref[...], sa_bin_ref[...], sa_wo_ref[...], sa_bo_ref[...], nhead)
    x = _add_ln(x, sa, lg[0:1, :], lb[0:1, :])
    ff = _ffn(x, ff_w1_ref[...], ff_b1_ref[...], ff_w2_ref[...], ff_b2_ref[...])
    x = _add_ln(x, ff, lg[1:2, :], lb[1:2, :])
    out_ref[...] = x


def _encoder_call(x, embed_w, ep, nhead):
    Ne = x.shape[0]
    C = embed_w.shape[1]
    sa = ep["self_attn"]
    ins = [x, embed_w,
           sa["w_in"], sa["b_in"], sa["w_out"], sa["b_out"],
           ep["ff_w1"], ep["ff_b1"], ep["ff_w2"], ep["ff_b2"],
           ep["ln_g"], ep["ln_b"]]
    return pl.pallas_call(
        functools.partial(_encoder_kernel, nhead=nhead),
        out_shape=jax.ShapeDtypeStruct((Ne, C), jnp.float32),
        grid=(1,),
        in_specs=[pl.BlockSpec(a.shape, lambda i: (0, 0)) for a in ins],
        out_specs=pl.BlockSpec((Ne, C), lambda i: (0, 0)),
    )(*ins)


# ----------------------------------------------------------------------------
# Fused decode-step kernel: nn.TransformerDecoderLayer + PointerNetwork row
# ----------------------------------------------------------------------------
def _decoder_step_kernel(enc_ref, dec_ref, kb_ref, sel_ref,
                         sa_win_ref, sa_bin_ref, sa_wo_ref, sa_bo_ref,
                         ca_win_ref, ca_bin_ref, ca_wo_ref, ca_bo_ref,
                         ff_w1_ref, ff_b1_ref, ff_w2_ref, ff_b2_ref,
                         ln_g_ref, ln_b_ref,
                         pw1_ref, pw2_ref, pv_ref,
                         q_ref, *, nhead):
    enc = enc_ref[...]            # (Ne, C)   encoder memory
    x = dec_ref[...]              # (Ndm, C)  padded decoder input
    kb = kb_ref[...]              # (1, Ndm)  additive key mask (self-attention padding)
    sel = sel_ref[...]            # (Ndm, 1)  one-hot selector of the last valid decoder row
    lg = ln_g_ref[...]
    lb = ln_b_ref[...]

    # nn.TransformerDecoderLayer (norm_first=False, ReLU, dropout in eval -> identity)
    sa = _mha(x, x, sa_win_ref[...], sa_bin_ref[...], sa_wo_ref[...], sa_bo_ref[...],
              nhead, key_bias=kb)
    x = _add_ln(x, sa, lg[0:1, :], lb[0:1, :])
    ca = _mha(x, enc, ca_win_ref[...], ca_bin_ref[...], ca_wo_ref[...], ca_bo_ref[...], nhead)
    x = _add_ln(x, ca, lg[1:2, :], lb[1:2, :])
    ff = _ffn(x, ff_w1_ref[...], ff_b1_ref[...], ff_w2_ref[...], ff_b2_ref[...])
    x = _add_ln(x, ff, lg[2:3, :], lb[2:3, :])

    # PointerNetwork scored only for the last valid decoder row (the only row the
    # reference forward actually consumes: q_value[:, -1, :] / masked_argmax[:, -1]).
    dec_last = jnp.sum(x * sel, axis=0, keepdims=True)                            # (1, C)
    et = jnp.dot(enc, pw1_ref[...], preferred_element_type=jnp.float32)           # (Ne, C)
    dt = jnp.dot(dec_last, pw2_ref[...], preferred_element_type=jnp.float32)      # (1, C)
    u = jnp.tanh(et + dt)                                                         # (Ne, C)
    s = lax.dot_general(pv_ref[...], u, (((1,), (1,)), ((), ())),
                        preferred_element_type=jnp.float32)                       # (1, Ne)
    m = jnp.max(s, axis=-1, keepdims=True)
    lse = m + jnp.log(jnp.sum(jnp.exp(s - m), axis=-1, keepdims=True))
    q_ref[...] = s - lse                                                          # log_softmax


def _decoder_step_call(enc, dec_in, key_bias, last_sel, dp, pp, nhead):
    Ne = enc.shape[0]
    sa, ca = dp["self_attn"], dp["cross_attn"]
    ins = [enc, dec_in, key_bias, last_sel,
           sa["w_in"], sa["b_in"], sa["w_out"], sa["b_out"],
           ca["w_in"], ca["b_in"], ca["w_out"], ca["b_out"],
           dp["ff_w1"], dp["ff_b1"], dp["ff_w2"], dp["ff_b2"],
           dp["ln_g"], dp["ln_b"],
           pp["w1"], pp["w2"], pp["v"]]
    return pl.pallas_call(
        functools.partial(_decoder_step_kernel, nhead=nhead),
        out_shape=jax.ShapeDtypeStruct((1, Ne), jnp.float32),
        grid=(1,),
        in_specs=[pl.BlockSpec(a.shape, lambda i: (0, 0)) for a in ins],
        out_specs=pl.BlockSpec((1, Ne), lambda i: (0, 0)),
    )(*ins)


# ----------------------------------------------------------------------------
# Full forward: encoder + on-device greedy pointer decode (single compile)
# ----------------------------------------------------------------------------
@functools.partial(jax.jit, static_argnames=("nhead",))
def actor_core(items, params, *, nhead):
    _, N, F = items.shape
    Ne = N + 1            # encoder positions: depot + N intersections
    Ndm = N + 1           # static padded decoder length
    C = params["embed_w"].shape[1]

    x0 = jnp.concatenate([jnp.zeros((1, 1, F), jnp.float32),
                          items.astype(jnp.float32)], axis=1)[0]                  # (Ne, F)
    enc_state = _encoder_call(x0, params["embed_w"], params["enc"], nhead)          # (Ne, C)

    dec_in0 = jnp.zeros((Ndm, C), jnp.float32).at[0].set(enc_state[0])
    carry0 = (jnp.asarray(0, jnp.int32),               # t   (decode step / valid rows - 1)
              jnp.ones((Ne,), jnp.float32),            # mask (1 = selectable)
              dec_in0,                                 # padded decoder input
              jnp.zeros((N, Ne), jnp.float32),         # q_values buffer
              jnp.zeros((N,), jnp.int32),              # masked_argmax buffer
              jnp.zeros((), jnp.bool_))                # done (early-break) flag

    row_idx = jnp.arange(Ndm, dtype=jnp.int32)

    def cond(carry):
        t, _, _, _, _, done = carry
        return jnp.logical_and(t < N, jnp.logical_not(done))

    def body(carry):
        t, mask, dec_in, q_buf, sel_buf, _ = carry
        nv = t + 1                                                         # valid decoder rows
        key_bias = jnp.where(row_idx < nv, 0.0, -1e30).astype(jnp.float32)[None, :]   # (1, Ndm)
        last_sel = (row_idx == (nv - 1)).astype(jnp.float32)[:, None]                 # (Ndm, 1)

        q_row = _decoder_step_call(enc_state, dec_in, key_bias, last_sel,
                                   params["dec"], params["ptr"], nhead)    # (1, Ne)
        q = q_row[0]

        # masked_max exactly as in the reference (mask==0 -> product 0 -> -3e37)
        x_rep = q * mask
        x_rep = jnp.where(x_rep == 0.0, jnp.float32(-3e37), x_rep)
        new_max = jnp.argmax(x_rep).astype(jnp.int32)

        q_buf = q_buf.at[t].set(q)
        sel_buf = sel_buf.at[t].set(new_max)
        mask = mask.at[new_max].set(0.0)
        mask = mask.at[0].set(1.0)
        done = jnp.logical_or(jnp.sum(1.0 - mask) == jnp.float32(Ne - 1),
                              jnp.all(mask > 0.0))

        # next decoder_input = concat(enc[0], enc[selected...]) == append enc[new_max]
        dec_in = dec_in.at[t + 1].set(jnp.take(enc_state, new_max, axis=0))
        return (t + 1, mask, dec_in, q_buf, sel_buf, done)

    t_fin, _, _, q_buf, sel_buf, _ = lax.while_loop(cond, body, carry0)
    checksum = jnp.sum(enc_state[0])      # reference's NaN check on decoder_input
    return q_buf, sel_buf, t_fin, checksum


def actor_forward(items, budget, params, nhead):
    """Mirrors Actor.forward.  Returns (q_values (1,T,N+1), masked_argmaxs (1,T))."""
    del budget                      # unused by the reference forward as well
    assert items.shape[0] == 1      # the reference hard-codes a batch of 1
    q_buf, sel_buf, t_fin, checksum = actor_core(items, params, nhead=nhead)
    if np.isnan(float(checksum)):   # single host sync, after all device work is queued
        raise SystemExit("NaN in decoder input")
    T = int(t_fin)
    q_values = q_buf[:T][None, :, :]
    masked_argmaxs = sel_buf[:T][None, :]
    return q_values, masked_argmaxs


# ----------------------------------------------------------------------------
# Deterministic parameter construction (packed / pre-reshaped for the kernels)
# ----------------------------------------------------------------------------
def _init_w(key, shape, scale=0.1):
    return scale * jax.random.normal(key, shape, jnp.float32)


def _init_mha(key, c):
    ks = jax.random.split(key, 4)
    return dict(w_in=_init_w(ks[0], (c, 3 * c)), b_in=_init_w(ks[1], (1, 3 * c)),
                w_out=_init_w(ks[2], (c, c)), b_out=_init_w(ks[3], (1, c)))


def init_actor_params(key, num_features, c_embed, dim_ff):
    ks = jax.random.split(key, 12)
    enc = dict(
        self_attn=_init_mha(ks[0], c_embed),
        ff_w1=_init_w(ks[1], (c_embed, dim_ff)), ff_b1=_init_w(ks[2], (1, dim_ff)),
        ff_w2=_init_w(ks[3], (dim_ff, c_embed)), ff_b2=_init_w(ks[4], (1, c_embed)),
        ln_g=jnp.ones((2, c_embed), jnp.float32), ln_b=jnp.zeros((2, c_embed), jnp.float32),
    )
    dec = dict(
        self_attn=_init_mha(ks[5], c_embed),
        cross_attn=_init_mha(ks[6], c_embed),
        ff_w1=_init_w(ks[7], (c_embed, dim_ff)), ff_b1=_init_w(ks[8], (1, dim_ff)),
        ff_w2=_init_w(ks[9], (dim_ff, c_embed)), ff_b2=_init_w(ks[10], (1, c_embed)),
        ln_g=jnp.ones((3, c_embed), jnp.float32), ln_b=jnp.zeros((3, c_embed), jnp.float32),
    )
    kp = jax.random.split(ks[11], 4)
    ptr = dict(w1=_init_w(kp[0], (c_embed, c_embed)),
               w2=_init_w(kp[1], (c_embed, c_embed)),
               v=_init_w(kp[2], (1, c_embed)))
    embed_w = _init_w(kp[3], (num_features, c_embed))   # Embedding: Linear, no bias
    return dict(embed_w=embed_w, enc=enc, dec=dec, ptr=ptr)


# ----------------------------------------------------------------------------
if __name__ == "__main__":
    # Small shapes consistent with the module's forward:
    #   batch=1 (hard-coded in the reference), N=8 intersections, 2 features (x, y),
    #   c_embed=32, nhead=4, dim_feedforward=64 (scaled down from the 2048 default).
    num_features = 2
    c_embed = 32
    nhead = 4
    dim_ff = 64
    N = 8

    key = jax.random.PRNGKey(0)
    k_items, k_params = jax.random.split(key)
    items = jax.random.uniform(k_items, (1, N, num_features), jnp.float32)
    budget = 3

    params = init_actor_params(k_params, num_features, c_embed, dim_ff)

    q_values, masked_argmaxs = actor_forward(items, budget, params, nhead)
    jax.block_until_ready(q_values)
    jax.block_until_ready(masked_argmaxs)

    assert q_values.ndim == 3 and q_values.shape[0] == 1 and q_values.shape[2] == N + 1
    assert masked_argmaxs.shape == (1, q_values.shape[1])
    assert bool(jnp.all(jnp.isfinite(q_values)))

    print("KERNEL_OK")
</pallas_src>

<mosaic_0001>
module attributes {stable_mosaic.version = 11 : i64} {
  func.func @_encoder_kernel(%arg0: i32, %arg1: memref<9x2xf32, #tpu.memory_space<vmem>>, %arg2: memref<2x32xf32, #tpu.memory_space<vmem>>, %arg3: memref<32x96xf32, #tpu.memory_space<vmem>>, %arg4: memref<1x96xf32, #tpu.memory_space<vmem>>, %arg5: memref<32x32xf32, #tpu.memory_space<vmem>>, %arg6: memref<1x32xf32, #tpu.memory_space<vmem>>, %arg7: memref<32x64xf32, #tpu.memory_space<vmem>>, %arg8: memref<1x64xf32, #tpu.memory_space<vmem>>, %arg9: memref<64x32xf32, #tpu.memory_space<vmem>>, %arg10: memref<1x32xf32, #tpu.memory_space<vmem>>, %arg11: memref<2x32xf32, #tpu.memory_space<vmem>>, %arg12: memref<2x32xf32, #tpu.memory_space<vmem>>, %arg13: memref<9x32xf32, #tpu.memory_space<vmem>>) attributes {dimension_semantics = [#tpu.dimension_semantics<arbitrary>], iteration_bounds = array<i64: 1>, scalar_prefetch = 0 : i64, scratch_operands = 0 : i64, tpu.core_type = #tpu.core_type<tc>, window_params = [{pipeline_mode = #tpu.pipeline_mode<synchronous>, transform_indices = @transform_0, window_bounds = array<i64: 9, 2>}, {pipeline_mode = #tpu.pipeline_mode<synchronous>, transform_indices = @transform_1, window_bounds = array<i64: 2, 32>}, {pipeline_mode = #tpu.pipeline_mode<synchronous>, transform_indices = @transform_2, window_bounds = array<i64: 32, 96>}, {pipeline_mode = #tpu.pipeline_mode<synchronous>, transform_indices = @transform_3, window_bounds = array<i64: 1, 96>}, {pipeline_mode = #tpu.pipeline_mode<synchronous>, transform_indices = @transform_4, window_bounds = array<i64: 32, 32>}, {pipeline_mode = #tpu.pipeline_mode<synchronous>, transform_indices = @transform_5, window_bounds = array<i64: 1, 32>}, {pipeline_mode = #tpu.pipeline_mode<synchronous>, transform_indices = @transform_6, window_bounds = array<i64: 32, 64>}, {pipeline_mode = #tpu.pipeline_mode<synchronous>, transform_indices = @transform_7, window_bounds = array<i64: 1, 64>}, {pipeline_mode = #tpu.pipeline_mode<synchronous>, transform_indices = @transform_8, window_bounds = array<i64: 64, 32>}, {pipeline_mode = #tpu.pipeline_mode<synchronous>, transform_indices = @transform_9, window_bounds = array<i64: 1, 32>}, {pipeline_mode = #tpu.pipeline_mode<synchronous>, transform_indices = @transform_10, window_bounds = array<i64: 2, 32>}, {pipeline_mode = #tpu.pipeline_mode<synchronous>, transform_indices = @transform_11, window_bounds = array<i64: 2, 32>}, {pipeline_mode = #tpu.pipeline_mode<synchronous>, transform_indices = @transform_12, window_bounds = array<i64: 9, 32>}]} {
    %c0 = arith.constant 0 : index
    %c0_0 = arith.constant 0 : index
    %0 = vector.load %arg1[%c0, %c0_0] : memref<9x2xf32, #tpu.memory_space<vmem>>, vector<9x2xf32>
    %c0_1 = arith.constant 0 : index
    %c0_2 = arith.constant 0 : index
    %1 = vector.load %arg2[%c0_1, %c0_2] : memref<2x32xf32, #tpu.memory_space<vmem>>, vector<2x32xf32>
    %cst = arith.constant dense<0.000000e+00> : vector<9x32xf32>
    %2 = tpu.matmul %0, %1, %cst {dimension_numbers = #tpu.dot_dimension_numbers<[1], [0], [0], [1], [0, 0, 1, 1], [], []>} : vector<9x2xf32>, vector<2x32xf32>, vector<9x32xf32> -> vector<9x32xf32>
    %c0_3 = arith.constant 0 : index
    %c0_4 = arith.constant 0 : index
    %3 = vector.load %arg11[%c0_3, %c0_4] : memref<2x32xf32, #tpu.memory_space<vmem>>, vector<2x32xf32>
    %c0_5 = arith.constant 0 : index
    %c0_6 = arith.constant 0 : index
    %4 = vector.load %arg12[%c0_5, %c0_6] : memref<2x32xf32, #tpu.memory_space<vmem>>, vector<2x32xf32>
    %c0_7 = arith.constant 0 : index
    %c0_8 = arith.constant 0 : index
    %5 = vector.load %arg3[%c0_7, %c0_8] : memref<32x96xf32, #tpu.memory_space<vmem>>, vector<32x96xf32>
    %c0_9 = arith.constant 0 : index
    %c0_10 = arith.constant 0 : index
    %6 = vector.load %arg4[%c0_9, %c0_10] : memref<1x96xf32, #tpu.memory_space<vmem>>, vector<1x96xf32>
    %c0_11 = arith.constant 0 : index
    %c0_12 = arith.constant 0 : index
    %7 = vector.load %arg5[%c0_11, %c0_12] : memref<32x32xf32, #tpu.memory_space<vmem>>, vector<32x32xf32>
    %c0_13 = arith.constant 0 : index
    %c0_14 = arith.constant 0 : index
    %8 = vector.load %arg6[%c0_13, %c0_14] : memref<1x32xf32, #tpu.memory_space<vmem>>, vector<1x32xf32>
    %9 = vector.extract_strided_slice %5 {offsets = [0, 0], sizes = [32, 32], strides = [1, 1]} : vector<32x96xf32> to vector<32x32xf32>
    %cst_15 = arith.constant dense<0.000000e+00> : vector<9x32xf32>
    %10 = tpu.matmul %2, %9, %cst_15 {dimension_numbers = #tpu.dot_dimension_numbers<[1], [0], [0], [1], [0, 0, 1, 1], [], []>} : vector<9x32xf32>, vector<32x32xf32>, vector<9x32xf32> -> vector<9x32xf32>
    %11 = vector.extract_strided_slice %6 {offsets = [0, 0], sizes = [1, 32], strides = [1, 1]} : vector<1x96xf32> to vector<1x32xf32>
    %12 = vector.broadcast %11 : vector<1x32xf32> to vector<9x32xf32>
    %13 = arith.addf %10, %12 : vector<9x32xf32>
    %14 = vector.extract_strided_slice %5 {offsets = [0, 32], sizes = [32, 32], strides = [1, 1]} : vector<32x96xf32> to vector<32x32xf32>
    %cst_16 = arith.constant dense<0.000000e+00> : vector<9x32xf32>
    %15 = tpu.matmul %2, %14, %cst_16 {dimension_numbers = #tpu.dot_dimension_numbers<[1], [0], [0], [1], [0, 0, 1, 1], [], []>} : vector<9x32xf32>, vector<32x32xf32>, vector<9x32xf32> -> vector<9x32xf32>
    %16 = vector.extract_strided_slice %6 {offsets = [0, 32], sizes = [1, 32], strides = [1, 1]} : vector<1x96xf32> to vector<1x32xf32>
    %17 = vector.broadcast %16 : vector<1x32xf32> to vector<9x32xf32>
    %18 = arith.addf %15, %17 : vector<9x32xf32>
    %19 = vector.extract_strided_slice %5 {offsets = [0, 64], sizes = [32, 32], strides = [1, 1]} : vector<32x96xf32> to vector<32x32xf32>
    %cst_17 = arith.constant dense<0.000000e+00> : vector<9x32xf32>
    %20 = tpu.matmul %2, %19, %cst_17 {dimension_numbers = #tpu.dot_dimension_numbers<[1], [0], [0], [1], [0, 0, 1, 1], [], []>} : vector<9x32xf32>, vector<32x32xf32>, vector<9x32xf32> -> vector<9x32xf32>
    %21 = vector.extract_strided_slice %6 {offsets = [0, 64], sizes = [1, 32], strides = [1, 1]} : vector<1x96xf32> to vector<1x32xf32>
    %22 = vector.broadcast %21 : vector<1x32xf32> to vector<9x32xf32>
    %23 = arith.addf %20, %22 : vector<9x32xf32>
    %24 = vector.extract_strided_slice %13 {offsets = [0, 0], sizes = [9, 8], strides = [1, 1]} : vector<9x32xf32> to vector<9x8xf32>
    %25 = vector.extract_strided_slice %18 {offsets = [0, 0], sizes = [9, 8], strides = [1, 1]} : vector<9x32xf32> to vector<9x8xf32>
    %cst_18 = arith.constant dense<0.000000e+00> : vector<9x9xf32>
    %26 = tpu.matmul %24, %25, %cst_18 {dimension_numbers = #tpu.dot_dimension_numbers<[1], [1], [0], [0], [0, 0, 1, 0], [], []>} : vector<9x8xf32>, vector<9x8xf32>, vector<9x9xf32> -> vector<9x9xf32>
    %cst_19 = arith.constant 0.353553385 : f32
    %27 = vector.broadcast %cst_19 : f32 to vector<9x9xf32>
    %28 = arith.mulf %26, %27 : vector<9x9xf32>
    %cst_20 = arith.constant dense<0xFF800000> : vector<9xf32>
    %29 = vector.multi_reduction <maximumf>, %28, %cst_20 [1] : vector<9x9xf32> to vector<9xf32>
    %30 = vector.shape_cast %29 : vector<9xf32> to vector<9x1xf32>
    %31 = vector.broadcast %30 : vector<9x1xf32> to vector<9x9xf32>
    %32 = arith.subf %28, %31 : vector<9x9xf32>
    %33 = math.exp %32 : vector<9x9xf32>
    %cst_21 = arith.constant dense<0.000000e+00> : vector<9xf32>
    %34 = vector.multi_reduction <add>, %33, %cst_21 [1] : vector<9x9xf32> to vector<9xf32>
    %35 = vector.shape_cast %34 : vector<9xf32> to vector<9x1xf32>
    %36 = vector.broadcast %35 : vector<9x1xf32> to vector<9x9xf32>
    %37 = arith.divf %33, %36 : vector<9x9xf32>
    %38 = vector.extract_strided_slice %23 {offsets = [0, 0], sizes = [9, 8], strides = [1, 1]} : vector<9x32xf32> to vector<9x8xf32>
    %cst_22 = arith.constant dense<0.000000e+00> : vector<9x8xf32>
    %39 = tpu.matmul %37, %38, %cst_22 {dimension_numbers = #tpu.dot_dimension_numbers<[1], [0], [0], [1], [0, 0, 1, 1], [], []>} : vector<9x9xf32>, vector<9x8xf32>, vector<9x8xf32> -> vector<9x8xf32>
    %40 = vector.extract_strided_slice %7 {offsets = [0, 0], sizes = [8, 32], strides = [1, 1]} : vector<32x32xf32> to vector<8x32xf32>
    %cst_23 = arith.constant dense<0.000000e+00> : vector<9x32xf32>
    %41 = tpu.matmul %39, %40, %cst_23 {dimension_numbers = #tpu.dot_dimension_numbers<[1], [0], [0], [1], [0, 0, 1, 1], [], []>} : vector<9x8xf32>, vector<8x32xf32>, vector<9x32xf32> -> vector<9x32xf32>
    %42 = vector.extract_strided_slice %13 {offsets = [0, 8], sizes = [9, 8], strides = [1, 1]} : vector<9x32xf32> to vector<9x8xf32>
    %43 = vector.extract_strided_slice %18 {offsets = [0, 8], sizes = [9, 8], strides = [1, 1]} : vector<9x32xf32> to vector<9x8xf32>
    %cst_24 = arith.constant dense<0.000000e+00> : vector<9x9xf32>
    %44 = tpu.matmul %42, %43, %cst_24 {dimension_numbers = #tpu.dot_dimension_numbers<[1], [1], [0], [0], [0, 0, 1, 0], [], []>} : vector<9x8xf32>, vector<9x8xf32>, vector<9x9xf32> -> vector<9x9xf32>
    %cst_25 = arith.constant 0.353553385 : f32
    %45 = vector.broadcast %cst_25 : f32 to vector<9x9xf32>
    %46 = arith.mulf %44, %45 : vector<9x9xf32>
    %cst_26 = arith.constant dense<0xFF800000> : vector<9xf32>
    %47 = vector.multi_reduction <maximumf>, %46, %cst_26 [1] : vector<9x9xf32> to vector<9xf32>
    %48 = vector.shape_cast %47 : vector<9xf32> to vector<9x1xf32>
    %49 = vector.broadcast %48 : vector<9x1xf32> to vector<9x9xf32>
    %50 = arith.subf %46, %49 : vector<9x9xf32>
    %51 = math.exp %50 : vector<9x9xf32>
    %cst_27 = arith.constant dense<0.000000e+00> : vector<9xf32>
    %52 = vector.multi_reduction <add>, %51, %cst_27 [1] : vector<9x9xf32> to vector<9xf32>
    %53 = vector.shape_cast %52 : vector<9xf32> to vector<9x1xf32>
    %54 = vector.broadcast %53 : vector<9x1xf32> to vector<9x9xf32>
    %55 = arith.divf %51, %54 : vector<9x9xf32>
    %56 = vector.extract_strided_slice %23 {offsets = [0, 8], sizes = [9, 8], strides = [1, 1]} : vector<9x32xf32> to vector<9x8xf32>
    %cst_28 = arith.constant dense<0.000000e+00> : vector<9x8xf32>
    %57 = tpu.matmul %55, %56, %cst_28 {dimension_numbers = #tpu.dot_dimension_numbers<[1], [0], [0], [1], [0, 0, 1, 1], [], []>} : vector<9x9xf32>, vector<9x8xf32>, vector<9x8xf32> -> vector<9x8xf32>
    %58 = vector.extract_strided_slice %7 {offsets = [8, 0], sizes = [8, 32], strides = [1, 1]} : vector<32x32xf32> to vector<8x32xf32>
    %cst_29 = arith.constant dense<0.000000e+00> : vector<9x32xf32>
    %59 = tpu.matmul %57, %58, %cst_29 {dimension_numbers = #tpu.dot_dimension_numbers<[1], [0], [0], [1], [0, 0, 1, 1], [], []>} : vector<9x8xf32>, vector<8x32xf32>, vector<9x32xf32> -> vector<9x32xf32>
    %60 = arith.addf %41, %59 : vector<9x32xf32>
    %61 = vector.extract_strided_slice %13 {offsets = [0, 16], sizes = [9, 8], strides = [1, 1]} : vector<9x32xf32> to vector<9x8xf32>
    %62 = vector.extract_strided_slice %18 {offsets = [0, 16], sizes = [9, 8], strides = [1, 1]} : vector<9x32xf32> to vector<9x8xf32>
    %cst_30 = arith.constant dense<0.000000e+00> : vector<9x9xf32>
    %63 = tpu.matmul %61, %62, %cst_30 {dimension_numbers = #tpu.dot_dimension_numbers<[1], [1], [0], [0], [0, 0, 1, 0], [], []>} : vector<9x8xf32>, vector<9x8xf32>, vector<9x9xf32> -> vector<9x9xf32>
    %cst_31 = arith.constant 0.353553385 : f32
    %64 = vector.broadcast %cst_31 : f32 to vector<9x9xf32>
    %65 = arith.mulf %63, %64 : vector<9x9xf32>
    %cst_32 = arith.constant dense<0xFF800000> : vector<9xf32>
    %66 = vector.multi_reduction <maximumf>, %65, %cst_32 [1] : vector<9x9xf32> to vector<9xf32>
    %67 = vector.shape_cast %66 : vector<9xf32> to vector<9x1xf32>
    %68 = vector.broadcast %67 : vector<9x1xf32> to vector<9x9xf32>
    %69 = arith.subf %65, %68 : vector<9x9xf32>
    %70 = math.exp %69 : vector<9x9xf32>
    %cst_33 = arith.constant dense<0.000000e+00> : vector<9xf32>
    %71 = vector.multi_reduction <add>, %70, %cst_33 [1] : vector<9x9xf32> to vector<9xf32>
    %72 = vector.shape_cast %71 : vector<9xf32> to vector<9x1xf32>
    %73 = vector.broadcast %72 : vector<9x1xf32> to vector<9x9xf32>
    %74 = arith.divf %70, %73 : vector<9x9xf32>
    %75 = vector.extract_strided_slice %23 {offsets = [0, 16], sizes = [9, 8], strides = [1, 1]} : vector<9x32xf32> to vector<9x8xf32>
    %cst_34 = arith.constant dense<0.000000e+00> : vector<9x8xf32>
    %76 = tpu.matmul %74, %75, %cst_34 {dimension_numbers = #tpu.dot_dimension_numbers<[1], [0], [0], [1], [0, 0, 1, 1], [], []>} : vector<9x9xf32>, vector<9x8xf32>, vector<9x8xf32> -> vector<9x8xf32>
    %77 = vector.extract_strided_slice %7 {offsets = [16, 0], sizes = [8, 32], strides = [1, 1]} : vector<32x32xf32> to vector<8x32xf32>
    %cst_35 = arith.constant dense<0.000000e+00> : vector<9x32xf32>
    %78 = tpu.matmul %76, %77, %cst_35 {dimension_numbers = #tpu.dot_dimension_numbers<[1], [0], [0], [1], [0, 0, 1, 1], [], []>} : vector<9x8xf32>, vector<8x32xf32>, vector<9x32xf32> -> vector<9x32xf32>
    %79 = arith.addf %60, %78 : vector<9x32xf32>
    %80 = vector.extract_strided_slice %13 {offsets = [0, 24], sizes = [9, 8], strides = [1, 1]} : vector<9x32xf32> to vector<9x8xf32>
    %81 = vector.extract_strided_slice %18 {offsets = [0, 24], sizes = [9, 8], strides = [1, 1]} : vector<9x32xf32> to vector<9x8xf32>
    %cst_36 = arith.constant dense<0.000000e+00> : vector<9x9xf32>
    %82 = tpu.matmul %80, %81, %cst_36 {dimension_numbers = #tpu.dot_dimension_numbers<[1], [1], [0], [0], [0, 0, 1, 0], [], []>} : vector<9x8xf32>, vector<9x8xf32>, vector<9x9xf32> -> vector<9x9xf32>
    %cst_37 = arith.constant 0.353553385 : f32
    %83 = vector.broadcast %cst_37 : f32 to vector<9x9xf32>
    %84 = arith.mulf %82, %83 : vector<9x9xf32>
    %cst_38 = arith.constant dense<0xFF800000> : vector<9xf32>
    %85 = vector.multi_reduction <maximumf>, %84, %cst_38 [1] : vector<9x9xf32> to vector<9xf32>
    %86 = vector.shape_cast %85 : vector<9xf32> to vector<9x1xf32>
    %87 = vector.broadcast %86 : vector<9x1xf32> to vector<9x9xf32>
    %88 = arith.subf %84, %87 : vector<9x9xf32>
    %89 = math.exp %88 : vector<9x9xf32>
    %cst_39 = arith.constant dense<0.000000e+00> : vector<9xf32>
    %90 = vector.multi_reduction <add>, %89, %cst_39 [1] : vector<9x9xf32> to vector<9xf32>
    %91 = vector.shape_cast %90 : vector<9xf32> to vector<9x1xf32>
    %92 = vector.broadcast %91 : vector<9x1xf32> to vector<9x9xf32>
    %93 = arith.divf %89, %92 : vector<9x9xf32>
    %94 = vector.extract_strided_slice %23 {offsets = [0, 24], sizes = [9, 8], strides = [1, 1]} : vector<9x32xf32> to vector<9x8xf32>
    %cst_40 = arith.constant dense<0.000000e+00> : vector<9x8xf32>
    %95 = tpu.matmul %93, %94, %cst_40 {dimension_numbers = #tpu.dot_dimension_numbers<[1], [0], [0], [1], [0, 0, 1, 1], [], []>} : vector<9x9xf32>, vector<9x8xf32>, vector<9x8xf32> -> vector<9x8xf32>
    %96 = vector.extract_strided_slice %7 {offsets = [24, 0], sizes = [8, 32], strides = [1, 1]} : vector<32x32xf32> to vector<8x32xf32>
    %cst_41 = arith.constant dense<0.000000e+00> : vector<9x32xf32>
    %97 = tpu.matmul %95, %96, %cst_41 {dimension_numbers = #tpu.dot_dimension_numbers<[1], [0], [0], [1], [0, 0, 1, 1], [], []>} : vector<9x8xf32>, vector<8x32xf32>, vector<9x32xf32> -> vector<9x32xf32>
    %98 = arith.addf %79, %97 : vector<9x32xf32>
    %99 = vector.broadcast %8 : vector<1x32xf32> to vector<9x32xf32>
    %100 = arith.addf %98, %99 : vector<9x32xf32>
    %101 = vector.extract_strided_slice %3 {offsets = [0, 0], sizes = [1, 32], strides = [1, 1]} : vector<2x32xf32> to vector<1x32xf32>
    %102 = vector.extract_strided_slice %4 {offsets = [0, 0], sizes = [1, 32], strides = [1, 1]} : vector<2x32xf32> to vector<1x32xf32>
    %103 = arith.addf %2, %100 : vector<9x32xf32>
    %cst_42 = arith.constant dense<0.000000e+00> : vector<9xf32>
    %104 = vector.multi_reduction <add>, %103, %cst_42 [1] : vector<9x32xf32> to vector<9xf32>
    %105 = vector.shape_cast %104 : vector<9xf32> to vector<9x1xf32>
    %cst_43 = arith.constant 3.200000e+01 : f32
    %106 = vector.broadcast %cst_43 : f32 to vector<9x1xf32>
    %107 = arith.divf %105, %106 : vector<9x1xf32>
    %108 = vector.broadcast %107 : vector<9x1xf32> to vector<9x32xf32>
    %109 = arith.subf %103, %108 : vector<9x32xf32>
    %110 = arith.mulf %109, %109 : vector<9x32xf32>
    %cst_44 = arith.constant dense<0.000000e+00> : vector<9xf32>
    %111 = vector.multi_reduction <add>, %110, %cst_44 [1] : vector<9x32xf32> to vector<9xf32>
    %112 = vector.shape_cast %111 : vector<9xf32> to vector<9x1xf32>
    %cst_45 = arith.constant 3.200000e+01 : f32
    %113 = vector.broadcast %cst_45 : f32 to vector<9x1xf32>
    %114 = arith.divf %112, %113 : vector<9x1xf32>
    %115 = vector.broadcast %107 : vector<9x1xf32> to vector<9x32xf32>
    %116 = arith.subf %103, %115 : vector<9x32xf32>
    %cst_46 = arith.constant 9.99999974E-6 : f32
    %117 = vector.broadcast %cst_46 : f32 to vector<9x1xf32>
    %118 = arith.addf %114, %117 : vector<9x1xf32>
    %119 = math.rsqrt %118 : vector<9x1xf32>
    %120 = vector.broadcast %119 : vector<9x1xf32> to vector<9x32xf32>
    %121 = arith.mulf %116, %120 : vector<9x32xf32>
    %122 = vector.broadcast %101 : vector<1x32xf32> to vector<9x32xf32>
    %123 = arith.mulf %121, %122 : vector<9x32xf32>
    %124 = vector.broadcast %102 : vector<1x32xf32> to vector<9x32xf32>
    %125 = arith.addf %123, %124 : vector<9x32xf32>
    %c0_47 = arith.constant 0 : index
    %c0_48 = arith.constant 0 : index
    %126 = vector.load %arg7[%c0_47, %c0_48] : memref<32x64xf32, #tpu.memory_space<vmem>>, vector<32x64xf32>
    %c0_49 = arith.constant 0 : index
    %c0_50 = arith.constant 0 : index
    %127 = vector.load %arg8[%c0_49, %c0_50] : memref<1x64xf32, #tpu.memory_space<vmem>>, vector<1x64xf32>
    %c0_51 = arith.constant 0 : index
    %c0_52 = arith.constant 0 : index
    %128 = vector.load %arg9[%c0_51, %c0_52] : memref<64x32xf32, #tpu.memory_space<vmem>>, vector<64x32xf32>
    %c0_53 = arith.constant 0 : index
    %c0_54 = arith.constant 0 : index
    %129 = vector.load %arg10[%c0_53, %c0_54] : memref<1x32xf32, #tpu.memory_space<vmem>>, vector<1x32xf32>
    %cst_55 = arith.constant dense<0.000000e+00> : vector<9x64xf32>
    %130 = tpu.matmul %125, %126, %cst_55 {dimension_numbers = #tpu.dot_dimension_numbers<[1], [0], [0], [1], [0, 0, 1, 1], [], []>} : vector<9x32xf32>, vector<32x64xf32>, vector<9x64xf32> -> vector<9x64xf32>
    %131 = vector.broadcast %127 : vector<1x64xf32> to vector<9x64xf32>
    %132 = arith.addf %130, %131 : vector<9x64xf32>
    %cst_56 = arith.constant 0.000000e+00 : f32
    %133 = vector.broadcast %cst_56 : f32 to vector<9x64xf32>
    %134 = arith.maximumf %132, %133 : vector<9x64xf32>
    %cst_57 = arith.constant dense<0.000000e+00> : vector<9x32xf32>
    %135 = tpu.matmul %134, %128, %cst_57 {dimension_numbers = #tpu.dot_dimension_numbers<[1], [0], [0], [1], [0, 0, 1, 1], [], []>} : vector<9x64xf32>, vector<64x32xf32>, vector<9x32xf32> -> vector<9x32xf32>
    %136 = vector.broadcast %129 : vector<1x32xf32> to vector<9x32xf32>
    %137 = arith.addf %135, %136 : vector<9x32xf32>
    %138 = vector.extract_strided_slice %3 {offsets = [1, 0], sizes = [1, 32], strides = [1, 1]} : vector<2x32xf32> to vector<1x32xf32>
    %139 = vector.extract_strided_slice %4 {offsets = [1, 0], sizes = [1, 32], strides = [1, 1]} : vector<2x32xf32> to vector<1x32xf32>
    %140 = arith.addf %125, %137 : vector<9x32xf32>
    %cst_58 = arith.constant dense<0.000000e+00> : vector<9xf32>
    %141 = vector.multi_reduction <add>, %140, %cst_58 [1] : vector<9x32xf32> to vector<9xf32>
    %142 = vector.shape_cast %141 : vector<9xf32> to vector<9x1xf32>
    %cst_59 = arith.constant 3.200000e+01 : f32
    %143 = vector.broadcast %cst_59 : f32 to vector<9x1xf32>
    %144 = arith.divf %142, %143 : vector<9x1xf32>
    %145 = vector.broadcast %144 : vector<9x1xf32> to vector<9x32xf32>
    %146 = arith.subf %140, %145 : vector<9x32xf32>
    %147 = arith.mulf %146, %146 : vector<9x32xf32>
    %cst_60 = arith.constant dense<0.000000e+00> : vector<9xf32>
    %148 = vector.multi_reduction <add>, %147, %cst_60 [1] : vector<9x32xf32> to vector<9xf32>
    %149 = vector.shape_cast %148 : vector<9xf32> to vector<9x1xf32>
    %cst_61 = arith.constant 3.200000e+01 : f32
    %150 = vector.broadcast %cst_61 : f32 to vector<9x1xf32>
    %151 = arith.divf %149, %150 : vector<9x1xf32>
    %152 = vector.broadcast %144 : vector<9x1xf32> to vector<9x32xf32>
    %153 = arith.subf %140, %152 : vector<9x32xf32>
    %cst_62 = arith.constant 9.99999974E-6 : f32
    %154 = vector.broadcast %cst_62 : f32 to vector<9x1xf32>
    %155 = arith.addf %151, %154 : vector<9x1xf32>
    %156 = math.rsqrt %155 : vector<9x1xf32>
    %157 = vector.broadcast %156 : vector<9x1xf32> to vector<9x32xf32>
    %158 = arith.mulf %153, %157 : vector<9x32xf32>
    %159 = vector.broadcast %138 : vector<1x32xf32> to vector<9x32xf32>
    %160 = arith.mulf %158, %159 : vector<9x32xf32>
    %161 = vector.broadcast %139 : vector<1x32xf32> to vector<9x32xf32>
    %162 = arith.addf %160, %161 : vector<9x32xf32>
    %c0_63 = arith.constant 0 : index
    %c0_64 = arith.constant 0 : index
    %163 = vector.load %arg13[%c0_63, %c0_64] : memref<9x32xf32, #tpu.memory_space<vmem>>, vector<9x32xf32>
    tpu.vector_store %arg13[%c0_63, %c0_64], %162 {strides = array<i32>} : memref<9x32xf32, #tpu.memory_space<vmem>>, vector<9x32xf32>,
    return
  }
  func.func @transform_0(%arg0: i32) -> (i32, i32) {
    %c0_i32 = arith.constant 0 : i32
    %c0_i32_0 = arith.constant 0 : i32
    %c0_i32_1 = arith.constant 0 : i32
    return %c0_i32, %c0_i32_0 : i32, i32
  }
  func.func @transform_1(%arg0: i32) -> (i32, i32) {
    %c0_i32 = arith.constant 0 : i32
    %c0_i32_0 = arith.constant 0 : i32
    %c0_i32_1 = arith.constant 0 : i32
    return %c0_i32, %c0_i32_0 : i32, i32
  }
  func.func @transform_2(%arg0: i32) -> (i32, i32) {
    %c0_i32 = arith.constant 0 : i32
    %c0_i32_0 = arith.constant 0 : i32
    %c0_i32_1 = arith.constant 0 : i32
    return %c0_i32, %c0_i32_0 : i32, i32
  }
  func.func @transform_3(%arg0: i32) -> (i32, i32) {
    %c0_i32 = arith.constant 0 : i32
    %c0_i32_0 = arith.constant 0 : i32
    %c0_i32_1 = arith.constant 0 : i32
    return %c0_i32, %c0_i32_0 : i32, i32
  }
  func.func @transform_4(%arg0: i32) -> (i32, i32) {
    %c0_i32 = arith.constant 0 : i32
    %c0_i32_0 = arith.constant 0 : i32
    %c0_i32_1 = arith.constant 0 : i32
    return %c0_i32, %c0_i32_0 : i32, i32
  }
  func.func @transform_5(%arg0: i32) -> (i32, i32) {
    %c0_i32 = arith.constant 0 : i32
    %c0_i32_0 = arith.constant 0 : i32
    %c0_i32_1 = arith.constant 0 : i32
    return %c0_i32, %c0_i32_0 : i32, i32
  }
  func.func @transform_6(%arg0: i32) -> (i32, i32) {
    %c0_i32 = arith.constant 0 : i32
    %c0_i32_0 = arith.constant 0 : i32
    %c0_i32_1 = arith.constant 0 : i32
    return %c0_i32, %c0_i32_0 : i32, i32
  }
  func.func @transform_7(%arg0: i32) -> (i32, i32) {
    %c0_i32 = arith.constant 0 : i32
    %c0_i32_0 = arith.constant 0 : i32
    %c0_i32_1 = arith.constant 0 : i32
    return %c0_i32, %c0_i32_0 : i32, i32
  }
  func.func @transform_8(%arg0: i32) -> (i32, i32) {
    %c0_i32 = arith.constant 0 : i32
    %c0_i32_0 = arith.constant 0 : i32
    %c0_i32_1 = arith.constant 0 : i32
    return %c0_i32, %c0_i32_0 : i32, i32
  }
  func.func @transform_9(%arg0: i32) -> (i32, i32) {
    %c0_i32 = arith.constant 0 : i32
    %c0_i32_0 = arith.constant 0 : i32
    %c0_i32_1 = arith.constant 0 : i32
    return %c0_i32, %c0_i32_0 : i32, i32
  }
  func.func @transform_10(%arg0: i32) -> (i32, i32) {
    %c0_i32 = arith.constant 0 : i32
    %c0_i32_0 = arith.constant 0 : i32
    %c0_i32_1 = arith.constant 0 : i32
    return %c0_i32, %c0_i32_0 : i32, i32
  }
  func.func @transform_11(%arg0: i32) -> (i32, i32) {
    %c0_i32 = arith.constant 0 : i32
    %c0_i32_0 = arith.constant 0 : i32
    %c0_i32_1 = arith.constant 0 : i32
    return %c0_i32, %c0_i32_0 : i32, i32
  }
  func.func @transform_12(%arg0: i32) -> (i32, i32) {
    %c0_i32 = arith.constant 0 : i32
    %c0_i32_0 = arith.constant 0 : i32
    %c0_i32_1 = arith.constant 0 : i32
    return %c0_i32, %c0_i32_0 : i32, i32
  }
}

module attributes {stable_mosaic.version = 11 : i64} {
  func.func @_decoder_step_kernel(%arg0: i32, %arg1: memref<9x32xf32, #tpu.memory_space<vmem>>, %arg2: memref<9x32xf32, #tpu.memory_space<vmem>>, %arg3: memref<1x9xf32, #tpu.memory_space<vmem>>, %arg4: memref<9x1xf32, #tpu.memory_space<vmem>>, %arg5: memref<32x96xf32, #tpu.memory_space<vmem>>, %arg6: memref<1x96xf32, #tpu.memory_space<vmem>>, %arg7: memref<32x32xf32, #tpu.memory_space<vmem>>, %arg8: memref<1x32xf32, #tpu.memory_space<vmem>>, %arg9: memref<32x96xf32, #tpu.memory_space<vmem>>, %arg10: memref<1x96xf32, #tpu.memory_space<vmem>>, %arg11: memref<32x32xf32, #tpu.memory_space<vmem>>, %arg12: memref<1x32xf32, #tpu.memory_space<vmem>>, %arg13: memref<32x64xf32, #tpu.memory_space<vmem>>, %arg14: memref<1x64xf32, #tpu.memory_space<vmem>>, %arg15: memref<64x32xf32, #tpu.memory_space<vmem>>, %arg16: memref<1x32xf32, #tpu.memory_space<vmem>>, %arg17: memref<3x32xf32, #tpu.memory_space<vmem>>, %arg18: memref<3x32xf32, #tpu.memory_space<vmem>>, %arg19: memref<32x32xf32, #tpu.memory_space<vmem>>, %arg20: memref<32x32xf32, #tpu.memory_space<vmem>>, %arg21: memref<1x32xf32, #tpu.memory_space<vmem>>, %arg22: memref<1x9xf32, #tpu.memory_space<vmem>>) attributes {dimension_semantics = [#tpu.dimension_semantics<arbitrary>], iteration_bounds = array<i64: 1>, scalar_prefetch = 0 : i64, scratch_operands = 0 : i64, tpu.core_type = #tpu.core_type<tc>, window_params = [{pipeline_mode = #tpu.pipeline_mode<synchronous>, transform_indices = @transform_0, window_bounds = array<i64: 9, 32>}, {pipeline_mode = #tpu.pipeline_mode<synchronous>, transform_indices = @transform_1, window_bounds = array<i64: 9, 32>}, {pipeline_mode = #tpu.pipeline_mode<synchronous>, transform_indices = @transform_2, window_bounds = array<i64: 1, 9>}, {pipeline_mode = #tpu.pipeline_mode<synchronous>, transform_indices = @transform_3, window_bounds = array<i64: 9, 1>}, {pipeline_mode = #tpu.pipeline_mode<synchronous>, transform_indices = @transform_4, window_bounds = array<i64: 32, 96>}, {pipeline_mode = #tpu.pipeline_mode<synchronous>, transform_indices = @transform_5, window_bounds = array<i64: 1, 96>}, {pipeline_mode = #tpu.pipeline_mode<synchronous>, transform_indices = @transform_6, window_bounds = array<i64: 32, 32>}, {pipeline_mode = #tpu.pipeline_mode<synchronous>, transform_indices = @transform_7, window_bounds = array<i64: 1, 32>}, {pipeline_mode = #tpu.pipeline_mode<synchronous>, transform_indices = @transform_8, window_bounds = array<i64: 32, 96>}, {pipeline_mode = #tpu.pipeline_mode<synchronous>, transform_indices = @transform_9, window_bounds = array<i64: 1, 96>}, {pipeline_mode = #tpu.pipeline_mode<synchronous>, transform_indices = @transform_10, window_bounds = array<i64: 32, 32>}, {pipeline_mode = #tpu.pipeline_mode<synchronous>, transform_indices = @transform_11, window_bounds = array<i64: 1, 32>}, {pipeline_mode = #tpu.pipeline_mode<synchronous>, transform_indices = @transform_12, window_bounds = array<i64: 32, 64>}, {pipeline_mode = #tpu.pipeline_mode<synchronous>, transform_indices = @transform_13, window_bounds = array<i64: 1, 64>}, {pipeline_mode = #tpu.pipeline_mode<synchronous>, transform_indices = @transform_14, window_bounds = array<i64: 64, 32>}, {pipeline_mode = #tpu.pipeline_mode<synchronous>, transform_indices = @transform_15, window_bounds = array<i64: 1, 32>}, {pipeline_mode = #tpu.pipeline_mode<synchronous>, transform_indices = @transform_16, window_bounds = array<i64: 3, 32>}, {pipeline_mode = #tpu.pipeline_mode<synchronous>, transform_indices = @transform_17, window_bounds = array<i64: 3, 32>}, {pipeline_mode = #tpu.pipeline_mode<synchronous>, transform_indices = @transform_18, window_bounds = array<i64: 32, 32>}, {pipeline_mode = #tpu.pipeline_mode<synchronous>, transform_indices = @transform_19, window_bounds = array<i64: 32, 32>}, {pipeline_mode = #tpu.pipeline_mode<synchronous>, transform_indices = @transform_20, window_bounds = array<i64: 1, 32>}, {pipeline_mode = #tpu.pipeline_mode<synchronous>, transform_indices = @transform_21, window_bounds = array<i64: 1, 9>}]} {
    %c0 = arith.constant 0 : index
    %c0_0 = arith.constant 0 : index
    %0 = vector.load %arg1[%c0, %c0_0] : memref<9x32xf32, #tpu.memory_space<vmem>>, vector<9x32xf32>
    %c0_1 = arith.constant 0 : index
    %c0_2 = arith.constant 0 : index
    %1 = vector.load %arg2[%c0_1, %c0_2] : memref<9x32xf32, #tpu.memory_space<vmem>>, vector<9x32xf32>
    %c0_3 = arith.constant 0 : index
    %c0_4 = arith.constant 0 : index
    %2 = vector.load %arg3[%c0_3, %c0_4] : memref<1x9xf32, #tpu.memory_space<vmem>>, vector<1x9xf32>
    %c0_5 = arith.constant 0 : index
    %c0_6 = arith.constant 0 : index
    %3 = vector.load %arg4[%c0_5, %c0_6] : memref<9x1xf32, #tpu.memory_space<vmem>>, vector<9x1xf32>
    %c0_7 = arith.constant 0 : index
    %c0_8 = arith.constant 0 : index
    %4 = vector.load %arg17[%c0_7, %c0_8] : memref<3x32xf32, #tpu.memory_space<vmem>>, vector<3x32xf32>
    %c0_9 = arith.constant 0 : index
    %c0_10 = arith.constant 0 : index
    %5 = vector.load %arg18[%c0_9, %c0_10] : memref<3x32xf32, #tpu.memory_space<vmem>>, vector<3x32xf32>
    %c0_11 = arith.constant 0 : index
    %c0_12 = arith.constant 0 : index
    %6 = vector.load %arg5[%c0_11, %c0_12] : memref<32x96xf32, #tpu.memory_space<vmem>>, vector<32x96xf32>
    %c0_13 = arith.constant 0 : index
    %c0_14 = arith.constant 0 : index
    %7 = vector.load %arg6[%c0_13, %c0_14] : memref<1x96xf32, #tpu.memory_space<vmem>>, vector<1x96xf32>
    %c0_15 = arith.constant 0 : index
    %c0_16 = arith.constant 0 : index
    %8 = vector.load %arg7[%c0_15, %c0_16] : memref<32x32xf32, #tpu.memory_space<vmem>>, vector<32x32xf32>
    %c0_17 = arith.constant 0 : index
    %c0_18 = arith.constant 0 : index
    %9 = vector.load %arg8[%c0_17, %c0_18] : memref<1x32xf32, #tpu.memory_space<vmem>>, vector<1x32xf32>
    %10 = vector.extract_strided_slice %6 {offsets = [0, 0], sizes = [32, 32], strides = [1, 1]} : vector<32x96xf32> to vector<32x32xf32>
    %cst = arith.constant dense<0.000000e+00> : vector<9x32xf32>
    %11 = tpu.matmul %1, %10, %cst {dimension_numbers = #tpu.dot_dimension_numbers<[1], [0], [0], [1], [0, 0, 1, 1], [], []>} : vector<9x32xf32>, vector<32x32xf32>, vector<9x32xf32> -> vector<9x32xf32>
    %12 = vector.extract_strided_slice %7 {offsets = [0, 0], sizes = [1, 32], strides = [1, 1]} : vector<1x96xf32> to vector<1x32xf32>
    %13 = vector.broadcast %12 : vector<1x32xf32> to vector<9x32xf32>
    %14 = arith.addf %11, %13 : vector<9x32xf32>
    %15 = vector.extract_strided_slice %6 {offsets = [0, 32], sizes = [32, 32], strides = [1, 1]} : vector<32x96xf32> to vector<32x32xf32>
    %cst_19 = arith.constant dense<0.000000e+00> : vector<9x32xf32>
    %16 = tpu.matmul %1, %15, %cst_19 {dimension_numbers = #tpu.dot_dimension_numbers<[1], [0], [0], [1], [0, 0, 1, 1], [], []>} : vector<9x32xf32>, vector<32x32xf32>, vector<9x32xf32> -> vector<9x32xf32>
    %17 = vector.extract_strided_slice %7 {offsets = [0, 32], sizes = [1, 32], strides = [1, 1]} : vector<1x96xf32> to vector<1x32xf32>
    %18 = vector.broadcast %17 : vector<1x32xf32> to vector<9x32xf32>
    %19 = arith.addf %16, %18 : vector<9x32xf32>
    %20 = vector.extract_strided_slice %6 {offsets = [0, 64], sizes = [32, 32], strides = [1, 1]} : vector<32x96xf32> to vector<32x32xf32>
    %cst_20 = arith.constant dense<0.000000e+00> : vector<9x32xf32>
    %21 = tpu.matmul %1, %20, %cst_20 {dimension_numbers = #tpu.dot_dimension_numbers<[1], [0], [0], [1], [0, 0, 1, 1], [], []>} : vector<9x32xf32>, vector<32x32xf32>, vector<9x32xf32> -> vector<9x32xf32>
    %22 = vector.extract_strided_slice %7 {offsets = [0, 64], sizes = [1, 32], strides = [1, 1]} : vector<1x96xf32> to vector<1x32xf32>
    %23 = vector.broadcast %22 : vector<1x32xf32> to vector<9x32xf32>
    %24 = arith.addf %21, %23 : vector<9x32xf32>
    %25 = vector.extract_strided_slice %14 {offsets = [0, 0], sizes = [9, 8], strides = [1, 1]} : vector<9x32xf32> to vector<9x8xf32>
    %26 = vector.extract_strided_slice %19 {offsets = [0, 0], sizes = [9, 8], strides = [1, 1]} : vector<9x32xf32> to vector<9x8xf32>
    %cst_21 = arith.constant dense<0.000000e+00> : vector<9x9xf32>
    %27 = tpu.matmul %25, %26, %cst_21 {dimension_numbers = #tpu.dot_dimension_numbers<[1], [1], [0], [0], [0, 0, 1, 0], [], []>} : vector<9x8xf32>, vector<9x8xf32>, vector<9x9xf32> -> vector<9x9xf32>
    %cst_22 = arith.constant 0.353553385 : f32
    %28 = vector.broadcast %cst_22 : f32 to vector<9x9xf32>
    %29 = arith.mulf %27, %28 : vector<9x9xf32>
    %30 = vector.broadcast %2 : vector<1x9xf32> to vector<9x9xf32>
    %31 = arith.addf %29, %30 : vector<9x9xf32>
    %cst_23 = arith.constant dense<0xFF800000> : vector<9xf32>
    %32 = vector.multi_reduction <maximumf>, %31, %cst_23 [1] : vector<9x9xf32> to vector<9xf32>
    %33 = vector.shape_cast %32 : vector<9xf32> to vector<9x1xf32>
    %34 = vector.broadcast %33 : vector<9x1xf32> to vector<9x9xf32>
    %35 = arith.subf %31, %34 : vector<9x9xf32>
    %36 = math.exp %35 : vector<9x9xf32>
    %cst_24 = arith.constant dense<0.000000e+00> : vector<9xf32>
    %37 = vector.multi_reduction <add>, %36, %cst_24 [1] : vector<9x9xf32> to vector<9xf32>
    %38 = vector.shape_cast %37 : vector<9xf32> to vector<9x1xf32>
    %39 = vector.broadcast %38 : vector<9x1xf32> to vector<9x9xf32>
    %40 = arith.divf %36, %39 : vector<9x9xf32>
    %41 = vector.extract_strided_slice %24 {offsets = [0, 0], sizes = [9, 8], strides = [1, 1]} : vector<9x32xf32> to vector<9x8xf32>
    %cst_25 = arith.constant dense<0.000000e+00> : vector<9x8xf32>
    %42 = tpu.matmul %40, %41, %cst_25 {dimension_numbers = #tpu.dot_dimension_numbers<[1], [0], [0], [1], [0, 0, 1, 1], [], []>} : vector<9x9xf32>, vector<9x8xf32>, vector<9x8xf32> -> vector<9x8xf32>
    %43 = vector.extract_strided_slice %8 {offsets = [0, 0], sizes = [8, 32], strides = [1, 1]} : vector<32x32xf32> to vector<8x32xf32>
    %cst_26 = arith.constant dense<0.000000e+00> : vector<9x32xf32>
    %44 = tpu.matmul %42, %43, %cst_26 {dimension_numbers = #tpu.dot_dimension_numbers<[1], [0], [0], [1], [0, 0, 1, 1], [], []>} : vector<9x8xf32>, vector<8x32xf32>, vector<9x32xf32> -> vector<9x32xf32>
    %45 = vector.extract_strided_slice %14 {offsets = [0, 8], sizes = [9, 8], strides = [1, 1]} : vector<9x32xf32> to vector<9x8xf32>
    %46 = vector.extract_strided_slice %19 {offsets = [0, 8], sizes = [9, 8], strides = [1, 1]} : vector<9x32xf32> to vector<9x8xf32>
    %cst_27 = arith.constant dense<0.000000e+00> : vector<9x9xf32>
    %47 = tpu.matmul %45, %46, %cst_27 {dimension_numbers = #tpu.dot_dimension_numbers<[1], [1], [0], [0], [0, 0, 1, 0], [], []>} : vector<9x8xf32>, vector<9x8xf32>, vector<9x9xf32> -> vector<9x9xf32>
    %cst_28 = arith.constant 0.353553385 : f32
    %48 = vector.broadcast %cst_28 : f32 to vector<9x9xf32>
    %49 = arith.mulf %47, %48 : vector<9x9xf32>
    %50 = vector.broadcast %2 : vector<1x9xf32> to vector<9x9xf32>
    %51 = arith.addf %49, %50 : vector<9x9xf32>
    %cst_29 = arith.constant dense<0xFF800000> : vector<9xf32>
    %52 = vector.multi_reduction <maximumf>, %51, %cst_29 [1] : vector<9x9xf32> to vector<9xf32>
    %53 = vector.shape_cast %52 : vector<9xf32> to vector<9x1xf32>
    %54 = vector.broadcast %53 : vector<9x1xf32> to vector<9x9xf32>
    %55 = arith.subf %51, %54 : vector<9x9xf32>
    %56 = math.exp %55 : vector<9x9xf32>
    %cst_30 = arith.constant dense<0.000000e+00> : vector<9xf32>
    %57 = vector.multi_reduction <add>, %56, %cst_30 [1] : vector<9x9xf32> to vector<9xf32>
    %58 = vector.shape_cast %57 : vector<9xf32> to vector<9x1xf32>
    %59 = vector.broadcast %58 : vector<9x1xf32> to vector<9x9xf32>
    %60 = arith.divf %56, %59 : vector<9x9xf32>
    %61 = vector.extract_strided_slice %24 {offsets = [0, 8], sizes = [9, 8], strides = [1, 1]} : vector<9x32xf32> to vector<9x8xf32>
    %cst_31 = arith.constant dense<0.000000e+00> : vector<9x8xf32>
    %62 = tpu.matmul %60, %61, %cst_31 {dimension_numbers = #tpu.dot_dimension_numbers<[1], [0], [0], [1], [0, 0, 1, 1], [], []>} : vector<9x9xf32>, vector<9x8xf32>, vector<9x8xf32> -> vector<9x8xf32>
    %63 = vector.extract_strided_slice %8 {offsets = [8, 0], sizes = [8, 32], strides = [1, 1]} : vector<32x32xf32> to vector<8x32xf32>
    %cst_32 = arith.constant dense<0.000000e+00> : vector<9x32xf32>
    %64 = tpu.matmul %62, %63, %cst_32 {dimension_numbers = #tpu.dot_dimension_numbers<[1], [0], [0], [1], [0, 0, 1, 1], [], []>} : vector<9x8xf32>, vector<8x32xf32>, vector<9x32xf32> -> vector<9x32xf32>
    %65 = arith.addf %44, %64 : vector<9x32xf32>
    %66 = vector.extract_strided_slice %14 {offsets = [0, 16], sizes = [9, 8], strides = [1, 1]} : vector<9x32xf32> to vector<9x8xf32>
    %67 = vector.extract_strided_slice %19 {offsets = [0, 16], sizes = [9, 8], strides = [1, 1]} : vector<9x32xf32> to vector<9x8xf32>
    %cst_33 = arith.constant dense<0.000000e+00> : vector<9x9xf32>
    %68 = tpu.matmul %66, %67, %cst_33 {dimension_numbers = #tpu.dot_dimension_numbers<[1], [1], [0], [0], [0, 0, 1, 0], [], []>} : vector<9x8xf32>, vector<9x8xf32>, vector<9x9xf32> -> vector<9x9xf32>
    %cst_34 = arith.constant 0.353553385 : f32
    %69 = vector.broadcast %cst_34 : f32 to vector<9x9xf32>
    %70 = arith.mulf %68, %69 : vector<9x9xf32>
    %71 = vector.broadcast %2 : vector<1x9xf32> to vector<9x9xf32>
    %72 = arith.addf %70, %71 : vector<9x9xf32>
    %cst_35 = arith.constant dense<0xFF800000> : vector<9xf32>
    %73 = vector.multi_reduction <maximumf>, %72, %cst_35 [1] : vector<9x9xf32> to vector<9xf32>
    %74 = vector.shape_cast %73 : vector<9xf32> to vector<9x1xf32>
    %75 = vector.broadcast %74 : vector<9x1xf32> to vector<9x9xf32>
    %76 = arith.subf %72, %75 : vector<9x9xf32>
    %77 = math.exp %76 : vector<9x9xf32>
    %cst_36 = arith.constant dense<0.000000e+00> : vector<9xf32>
    %78 = vector.multi_reduction <add>, %77, %cst_36 [1] : vector<9x9xf32> to vector<9xf32>
    %79 = vector.shape_cast %78 : vector<9xf32> to vector<9x1xf32>
    %80 = vector.broadcast %79 : vector<9x1xf32> to vector<9x9xf32>
    %81 = arith.divf %77, %80 : vector<9x9xf32>
    %82 = vector.extract_strided_slice %24 {offsets = [0, 16], sizes = [9, 8], strides = [1, 1]} : vector<9x32xf32> to vector<9x8xf32>
    %cst_37 = arith.constant dense<0.000000e+00> : vector<9x8xf32>
    %83 = tpu.matmul %81, %82, %cst_37 {dimension_numbers = #tpu.dot_dimension_numbers<[1], [0], [0], [1], [0, 0, 1, 1], [], []>} : vector<9x9xf32>, vector<9x8xf32>, vector<9x8xf32> -> vector<9x8xf32>
    %84 = vector.extract_strided_slice %8 {offsets = [16, 0], sizes = [8, 32], strides = [1, 1]} : vector<32x32xf32> to vector<8x32xf32>
    %cst_38 = arith.constant dense<0.000000e+00> : vector<9x32xf32>
    %85 = tpu.matmul %83, %84, %cst_38 {dimension_numbers = #tpu.dot_dimension_numbers<[1], [0], [0], [1], [0, 0, 1, 1], [], []>} : vector<9x8xf32>, vector<8x32xf32>, vector<9x32xf32> -> vector<9x32xf32>
    %86 = arith.addf %65, %85 : vector<9x32xf32>
    %87 = vector.extract_strided_slice %14 {offsets = [0, 24], sizes = [9, 8], strides = [1, 1]} : vector<9x32xf32> to vector<9x8xf32>
    %88 = vector.extract_strided_slice %19 {offsets = [0, 24], sizes = [9, 8], strides = [1, 1]} : vector<9x32xf32> to vector<9x8xf32>
    %cst_39 = arith.constant dense<0.000000e+00> : vector<9x9xf32>
    %89 = tpu.matmul %87, %88, %cst_39 {dimension_numbers = #tpu.dot_dimension_numbers<[1], [1], [0], [0], [0, 0, 1, 0], [], []>} : vector<9x8xf32>, vector<9x8xf32>, vector<9x9xf32> -> vector<9x9xf32>
    %cst_40 = arith.constant 0.353553385 : f32
    %90 = vector.broadcast %cst_40 : f32 to vector<9x9xf32>
    %91 = arith.mulf %89, %90 : vector<9x9xf32>
    %92 = vector.broadcast %2 : vector<1x9xf32> to vector<9x9xf32>
    %93 = arith.addf %91, %92 : vector<9x9xf32>
    %cst_41 = arith.constant dense<0xFF800000> : vector<9xf32>
    %94 = vector.multi_reduction <maximumf>, %93, %cst_41 [1] : vector<9x9xf32> to vector<9xf32>
    %95 = vector.shape_cast %94 : vector<9xf32> to vector<9x1xf32>
    %96 = vector.broadcast %95 : vector<9x1xf32> to vector<9x9xf32>
    %97 = arith.subf %93, %96 : vector<9x9xf32>
    %98 = math.exp %97 : vector<9x9xf32>
    %cst_42 = arith.constant dense<0.000000e+00> : vector<9xf32>
    %99 = vector.multi_reduction <add>, %98, %cst_42 [1] : vector<9x9xf32> to vector<9xf32>
    %100 = vector.shape_cast %99 : vector<9xf32> to vector<9x1xf32>
    %101 = vector.broadcast %100 : vector<9x1xf32> to vector<9x9xf32>
    %102 = arith.divf %98, %101 : vector<9x9xf32>
    %103 = vector.extract_strided_slice %24 {offsets = [0, 24], sizes = [9, 8], strides = [1, 1]} : vector<9x32xf32> to vector<9x8xf32>
    %cst_43 = arith.constant dense<0.000000e+00> : vector<9x8xf32>
    %104 = tpu.matmul %102, %103, %cst_43 {dimension_numbers = #tpu.dot_dimension_numbers<[1], [0], [0], [1], [0, 0, 1, 1], [], []>} : vector<9x9xf32>, vector<9x8xf32>, vector<9x8xf32> -> vector<9x8xf32>
    %105 = vector.extract_strided_slice %8 {offsets = [24, 0], sizes = [8, 32], strides = [1, 1]} : vector<32x32xf32> to vector<8x32xf32>
    %cst_44 = arith.constant dense<0.000000e+00> : vector<9x32xf32>
    %106 = tpu.matmul %104, %105, %cst_44 {dimension_numbers = #tpu.dot_dimension_numbers<[1], [0], [0], [1], [0, 0, 1, 1], [], []>} : vector<9x8xf32>, vector<8x32xf32>, vector<9x32xf32> -> vector<9x32xf32>
    %107 = arith.addf %86, %106 : vector<9x32xf32>
    %108 = vector.broadcast %9 : vector<1x32xf32> to vector<9x32xf32>
    %109 = arith.addf %107, %108 : vector<9x32xf32>
    %110 = vector.extract_strided_slice %4 {offsets = [0, 0], sizes = [1, 32], strides = [1, 1]} : vector<3x32xf32> to vector<1x32xf32>
    %111 = vector.extract_strided_slice %5 {offsets = [0, 0], sizes = [1, 32], strides = [1, 1]} : vector<3x32xf32> to vector<1x32xf32>
    %112 = arith.addf %1, %109 : vector<9x32xf32>
    %cst_45 = arith.constant dense<0.000000e+00> : vector<9xf32>
    %113 = vector.multi_reduction <add>, %112, %cst_45 [1] : vector<9x32xf32> to vector<9xf32>
    %114 = vector.shape_cast %113 : vector<9xf32> to vector<9x1xf32>
    %cst_46 = arith.constant 3.200000e+01 : f32
    %115 = vector.broadcast %cst_46 : f32 to vector<9x1xf32>
    %116 = arith.divf %114, %115 : vector<9x1xf32>
    %117 = vector.broadcast %116 : vector<9x1xf32> to vector<9x32xf32>
    %118 = arith.subf %112, %117 : vector<9x32xf32>
    %119 = arith.mulf %118, %118 : vector<9x32xf32>
    %cst_47 = arith.constant dense<0.000000e+00> : vector<9xf32>
    %120 = vector.multi_reduction <add>, %119, %cst_47 [1] : vector<9x32xf32> to vector<9xf32>
    %121 = vector.shape_cast %120 : vector<9xf32> to vector<9x1xf32>
    %cst_48 = arith.constant 3.200000e+01 : f32
    %122 = vector.broadcast %cst_48 : f32 to vector<9x1xf32>
    %123 = arith.divf %121, %122 : vector<9x1xf32>
    %124 = vector.broadcast %116 : vector<9x1xf32> to vector<9x32xf32>
    %125 = arith.subf %112, %124 : vector<9x32xf32>
    %cst_49 = arith.constant 9.99999974E-6 : f32
    %126 = vector.broadcast %cst_49 : f32 to vector<9x1xf32>
    %127 = arith.addf %123, %126 : vector<9x1xf32>
    %128 = math.rsqrt %127 : vector<9x1xf32>
    %129 = vector.broadcast %128 : vector<9x1xf32> to vector<9x32xf32>
    %130 = arith.mulf %125, %129 : vector<9x32xf32>
    %131 = vector.broadcast %110 : vector<1x32xf32> to vector<9x32xf32>
    %132 = arith.mulf %130, %131 : vector<9x32xf32>
    %133 = vector.broadcast %111 : vector<1x32xf32> to vector<9x32xf32>
    %134 = arith.addf %132, %133 : vector<9x32xf32>
    %c0_50 = arith.constant 0 : index
    %c0_51 = arith.constant 0 : index
    %135 = vector.load %arg9[%c0_50, %c0_51] : memref<32x96xf32, #tpu.memory_space<vmem>>, vector<32x96xf32>
    %c0_52 = arith.constant 0 : index
    %c0_53 = arith.constant 0 : index
    %136 = vector.load %arg10[%c0_52, %c0_53] : memref<1x96xf32, #tpu.memory_space<vmem>>, vector<1x96xf32>
    %c0_54 = arith.constant 0 : index
    %c0_55 = arith.constant 0 : index
    %137 = vector.load %arg11[%c0_54, %c0_55] : memref<32x32xf32, #tpu.memory_space<vmem>>, vector<32x32xf32>
    %c0_56 = arith.constant 0 : index
    %c0_57 = arith.constant 0 : index
    %138 = vector.load %arg12[%c0_56, %c0_57] : memref<1x32xf32, #tpu.memory_space<vmem>>, vector<1x32xf32>
    %139 = vector.extract_strided_slice %135 {offsets = [0, 0], sizes = [32, 32], strides = [1, 1]} : vector<32x96xf32> to vector<32x32xf32>
    %cst_58 = arith.constant dense<0.000000e+00> : vector<9x32xf32>
    %140 = tpu.matmul %134, %139, %cst_58 {dimension_numbers = #tpu.dot_dimension_numbers<[1], [0], [0], [1], [0, 0, 1, 1], [], []>} : vector<9x32xf32>, vector<32x32xf32>, vector<9x32xf32> -> vector<9x32xf32>
    %141 = vector.extract_strided_slice %136 {offsets = [0, 0], sizes = [1, 32], strides = [1, 1]} : vector<1x96xf32> to vector<1x32xf32>
    %142 = vector.broadcast %141 : vector<1x32xf32> to vector<9x32xf32>
    %143 = arith.addf %140, %142 : vector<9x32xf32>
    %144 = vector.extract_strided_slice %135 {offsets = [0, 32], sizes = [32, 32], strides = [1, 1]} : vector<32x96xf32> to vector<32x32xf32>
    %cst_59 = arith.constant dense<0.000000e+00> : vector<9x32xf32>
    %145 = tpu.matmul %0, %144, %cst_59 {dimension_numbers = #tpu.dot_dimension_numbers<[1], [0], [0], [1], [0, 0, 1, 1], [], []>} : vector<9x32xf32>, vector<32x32xf32>, vector<9x32xf32> -> vector<9x32xf32>
    %146 = vector.extract_strided_slice %136 {offsets = [0, 32], sizes = [1, 32], strides = [1, 1]} : vector<1x96xf32> to vector<1x32xf32>
    %147 = vector.broadcast %146 : vector<1x32xf32> to vector<9x32xf32>
    %148 = arith.addf %145, %147 : vector<9x32xf32>
    %149 = vector.extract_strided_slice %135 {offsets = [0, 64], sizes = [32, 32], strides = [1, 1]} : vector<32x96xf32> to vector<32x32xf32>
    %cst_60 = arith.constant dense<0.000000e+00> : vector<9x32xf32>
    %150 = tpu.matmul %0, %149, %cst_60 {dimension_numbers = #tpu.dot_dimension_numbers<[1], [0], [0], [1], [0, 0, 1, 1], [], []>} : vector<9x32xf32>, vector<32x32xf32>, vector<9x32xf32> -> vector<9x32xf32>
    %151 = vector.extract_strided_slice %136 {offsets = [0, 64], sizes = [1, 32], strides = [1, 1]} : vector<1x96xf32> to vector<1x32xf32>
    %152 = vector.broadcast %151 : vector<1x32xf32> to vector<9x32xf32>
    %153 = arith.addf %150, %152 : vector<9x32xf32>
    %154 = vector.extract_strided_slice %143 {offsets = [0, 0], sizes = [9, 8], strides = [1, 1]} : vector<9x32xf32> to vector<9x8xf32>
    %155 = vector.extract_strided_slice %148 {offsets = [0, 0], sizes = [9, 8], strides = [1, 1]} : vector<9x32xf32> to vector<9x8xf32>
    %cst_61 = arith.constant dense<0.000000e+00> : vector<9x9xf32>
    %156 = tpu.matmul %154, %155, %cst_61 {dimension_numbers = #tpu.dot_dimension_numbers<[1], [1], [0], [0], [0, 0, 1, 0], [], []>} : vector<9x8xf32>, vector<9x8xf32>, vector<9x9xf32> -> vector<9x9xf32>
    %cst_62 = arith.constant 0.353553385 : f32
    %157 = vector.broadcast %cst_62 : f32 to vector<9x9xf32>
    %158 = arith.mulf %156, %157 : vector<9x9xf32>
    %cst_63 = arith.constant dense<0xFF800000> : vector<9xf32>
    %159 = vector.multi_reduction <maximumf>, %158, %cst_63 [1] : vector<9x9xf32> to vector<9xf32>
    %160 = vector.shape_cast %159 : vector<9xf32> to vector<9x1xf32>
    %161 = vector.broadcast %160 : vector<9x1xf32> to vector<9x9xf32>
    %162 = arith.subf %158, %161 : vector<9x9xf32>
    %163 = math.exp %162 : vector<9x9xf32>
    %cst_64 = arith.constant dense<0.000000e+00> : vector<9xf32>
    %164 = vector.multi_reduction <add>, %163, %cst_64 [1] : vector<9x9xf32> to vector<9xf32>
    %165 = vector.shape_cast %164 : vector<9xf32> to vector<9x1xf32>
    %166 = vector.broadcast %165 : vector<9x1xf32> to vector<9x9xf32>
    %167 = arith.divf %163, %166 : vector<9x9xf32>
    %168 = vector.extract_strided_slice %153 {offsets = [0, 0], sizes = [9, 8], strides = [1, 1]} : vector<9x32xf32> to vector<9x8xf32>
    %cst_65 = arith.constant dense<0.000000e+00> : vector<9x8xf32>
    %169 = tpu.matmul %167, %168, %cst_65 {dimension_numbers = #tpu.dot_dimension_numbers<[1], [0], [0], [1], [0, 0, 1, 1], [], []>} : vector<9x9xf32>, vector<9x8xf32>, vector<9x8xf32> -> vector<9x8xf32>
    %170 = vector.extract_strided_slice %137 {offsets = [0, 0], sizes = [8, 32], strides = [1, 1]} : vector<32x32xf32> to vector<8x32xf32>
    %cst_66 = arith.constant dense<0.000000e+00> : vector<9x32xf32>
    %171 = tpu.matmul %169, %170, %cst_66 {dimension_numbers = #tpu.dot_dimension_numbers<[1], [0], [0], [1], [0, 0, 1, 1], [], []>} : vector<9x8xf32>, vector<8x32xf32>, vector<9x32xf32> -> vector<9x32xf32>
    %172 = vector.extract_strided_slice %143 {offsets = [0, 8], sizes = [9, 8], strides = [1, 1]} : vector<9x32xf32> to vector<9x8xf32>
    %173 = vector.extract_strided_slice %148 {offsets = [0, 8], sizes = [9, 8], strides = [1, 1]} : vector<9x32xf32> to vector<9x8xf32>
    %cst_67 = arith.constant dense<0.000000e+00> : vector<9x9xf32>
    %174 = tpu.matmul %172, %173, %cst_67 {dimension_numbers = #tpu.dot_dimension_numbers<[1], [1], [0], [0], [0, 0, 1, 0], [], []>} : vector<9x8xf32>, vector<9x8xf32>, vector<9x9xf32> -> vector<9x9xf32>
    %cst_68 = arith.constant 0.353553385 : f32
    %175 = vector.broadcast %cst_68 : f32 to vector<9x9xf32>
    %176 = arith.mulf %174, %175 : vector<9x9xf32>
    %cst_69 = arith.constant dense<0xFF800000> : vector<9xf32>
    %177 = vector.multi_reduction <maximumf>, %176, %cst_69 [1] : vector<9x9xf32> to vector<9xf32>
    %178 = vector.shape_cast %177 : vector<9xf32> to vector<9x1xf32>
    %179 = vector.broadcast %178 : vector<9x1xf32> to vector<9x9xf32>
    %180 = arith.subf %176, %179 : vector<9x9xf32>
    %181 = math.exp %180 : vector<9x9xf32>
    %cst_70 = arith.constant dense<0.000000e+00> : vector<9xf32>
    %182 = vector.multi_reduction <add>, %181, %cst_70 [1] : vector<9x9xf32> to vector<9xf32>
    %183 = vector.shape_cast %182 : vector<9xf32> to vector<9x1xf32>
    %184 = vector.broadcast %183 : vector<9x1xf32> to vector<9x9xf32>
    %185 = arith.divf %181, %184 : vector<9x9xf32>
    %186 = vector.extract_strided_slice %153 {offsets = [0, 8], sizes = [9, 8], strides = [1, 1]} : vector<9x32xf32> to vector<9x8xf32>
    %cst_71 = arith.constant dense<0.000000e+00> : vector<9x8xf32>
    %187 = tpu.matmul %185, %186, %cst_71 {dimension_numbers = #tpu.dot_dimension_numbers<[1], [0], [0], [1], [0, 0, 1, 1], [], []>} : vector<9x9xf32>, vector<9x8xf32>, vector<9x8xf32> -> vector<9x8xf32>
    %188 = vector.extract_strided_slice %137 {offsets = [8, 0], sizes = [8, 32], strides = [1, 1]} : vector<32x32xf32> to vector<8x32xf32>
    %cst_72 = arith.constant dense<0.000000e+00> : vector<9x32xf32>
    %189 = tpu.matmul %187, %188, %cst_72 {dimension_numbers = #tpu.dot_dimension_numbers<[1], [0], [0], [1], [0, 0, 1, 1], [], []>} : vector<9x8xf32>, vector<8x32xf32>, vector<9x32xf32> -> vector<9x32xf32>
    %190 = arith.addf %171, %189 : vector<9x32xf32>
    %191 = vector.extract_strided_slice %143 {offsets = [0, 16], sizes = [9, 8], strides = [1, 1]} : vector<9x32xf32> to vector<9x8xf32>
    %192 = vector.extract_strided_slice %148 {offsets = [0, 16], sizes = [9, 8], strides = [1, 1]} : vector<9x32xf32> to vector<9x8xf32>
    %cst_73 = arith.constant dense<0.000000e+00> : vector<9x9xf32>
    %193 = tpu.matmul %191, %192, %cst_73 {dimension_numbers = #tpu.dot_dimension_numbers<[1], [1], [0], [0], [0, 0, 1, 0], [], []>} : vector<9x8xf32>, vector<9x8xf32>, vector<9x9xf32> -> vector<9x9xf32>
    %cst_74 = arith.constant 0.353553385 : f32
    %194 = vector.broadcast %cst_74 : f32 to vector<9x9xf32>
    %195 = arith.mulf %193, %194 : vector<9x9xf32>
    %cst_75 = arith.constant dense<0xFF800000> : vector<9xf32>
    %196 = vector.multi_reduction <maximumf>, %195, %cst_75 [1] : vector<9x9xf32> to vector<9xf32>
    %197 = vector.shape_cast %196 : vector<9xf32> to vector<9x1xf32>
    %198 = vector.broadcast %197 : vector<9x1xf32> to vector<9x9xf32>
    %199 = arith.subf %195, %198 : vector<9x9xf32>
    %200 = math.exp %199 : vector<9x9xf32>
    %cst_76 = arith.constant dense<0.000000e+00> : vector<9xf32>
    %201 = vector.multi_reduction <add>, %200, %cst_76 [1] : vector<9x9xf32> to vector<9xf32>
    %202 = vector.shape_cast %201 : vector<9xf32> to vector<9x1xf32>
    %203 = vector.broadcast %202 : vector<9x1xf32> to vector<9x9xf32>
    %204 = arith.divf %200, %203 : vector<9x9xf32>
    %205 = vector.extract_strided_slice %153 {offsets = [0, 16], sizes = [9, 8], strides = [1, 1]} : vector<9x32xf32> to vector<9x8xf32>
    %cst_77 = arith.constant dense<0.000000e+00> : vector<9x8xf32>
    %206 = tpu.matmul %204, %205, %cst_77 {dimension_numbers = #tpu.dot_dimension_numbers<[1], [0], [0], [1], [0, 0, 1, 1], [], []>} : vector<9x9xf32>, vector<9x8xf32>, vector<9x8xf32> -> vector<9x8xf32>
    %207 = vector.extract_strided_slice %137 {offsets = [16, 0], sizes = [8, 32], strides = [1, 1]} : vector<32x32xf32> to vector<8x32xf32>
    %cst_78 = arith.constant dense<0.000000e+00> : vector<9x32xf32>
    %208 = tpu.matmul %206, %207, %cst_78 {dimension_numbers = #tpu.dot_dimension_numbers<[1], [0], [0], [1], [0, 0, 1, 1], [], []>} : vector<9x8xf32>, vector<8x32xf32>, vector<9x32xf32> -> vector<9x32xf32>
    %209 = arith.addf %190, %208 : vector<9x32xf32>
    %210 = vector.extract_strided_slice %143 {offsets = [0, 24], sizes = [9, 8], strides = [1, 1]} : vector<9x32xf32> to vector<9x8xf32>
    %211 = vector.extract_strided_slice %148 {offsets = [0, 24], sizes = [9, 8], strides = [1, 1]} : vector<9x32xf32> to vector<9x8xf32>
    %cst_79 = arith.constant dense<0.000000e+00> : vector<9x9xf32>
    %212 = tpu.matmul %210, %211, %cst_79 {dimension_numbers = #tpu.dot_dimension_numbers<[1], [1], [0], [0], [0, 0, 1, 0], [], []>} : vector<9x8xf32>, vector<9x8xf32>, vector<9x9xf32> -> vector<9x9xf32>
    %cst_80 = arith.constant 0.353553385 : f32
    %213 = vector.broadcast %cst_80 : f32 to vector<9x9xf32>
    %214 = arith.mulf %212, %213 : vector<9x9xf32>
    %cst_81 = arith.constant dense<0xFF800000> : vector<9xf32>
    %215 = vector.multi_reduction <maximumf>, %214, %cst_81 [1] : vector<9x9xf32> to vector<9xf32>
    %216 = vector.shape_cast %215 : vector<9xf32> to vector<9x1xf32>
    %217 = vector.broadcast %216 : vector<9x1xf32> to vector<9x9xf32>
    %218 = arith.subf %214, %217 : vector<9x9xf32>
    %219 = math.exp %218 : vector<9x9xf32>
    %cst_82 = arith.constant dense<0.000000e+00> : vector<9xf32>
    %220 = vector.multi_reduction <add>, %219, %cst_82 [1] : vector<9x9xf32> to vector<9xf32>
    %221 = vector.shape_cast %220 : vector<9xf32> to vector<9x1xf32>
    %222 = vector.broadcast %221 : vector<9x1xf32> to vector<9x9xf32>
    %223 = arith.divf %219, %222 : vector<9x9xf32>
    %224 = vector.extract_strided_slice %153 {offsets = [0, 24], sizes = [9, 8], strides = [1, 1]} : vector<9x32xf32> to vector<9x8xf32>
    %cst_83 = arith.constant dense<0.000000e+00> : vector<9x8xf32>
    %225 = tpu.matmul %223, %224, %cst_83 {dimension_numbers = #tpu.dot_dimension_numbers<[1], [0], [0], [1], [0, 0, 1, 1], [], []>} : vector<9x9xf32>, vector<9x8xf32>, vector<9x8xf32> -> vector<9x8xf32>
    %226 = vector.extract_strided_slice %137 {offsets = [24, 0], sizes = [8, 32], strides = [1, 1]} : vector<32x32xf32> to vector<8x32xf32>
    %cst_84 = arith.constant dense<0.000000e+00> : vector<9x32xf32>
    %227 = tpu.matmul %225, %226, %cst_84 {dimension_numbers = #tpu.dot_dimension_numbers<[1], [0], [0], [1], [0, 0, 1, 1], [], []>} : vector<9x8xf32>, vector<8x32xf32>, vector<9x32xf32> -> vector<9x32xf32>
    %228 = arith.addf %209, %227 : vector<9x32xf32>
    %229 = vector.broadcast %138 : vector<1x32xf32> to vector<9x32xf32>
    %230 = arith.addf %228, %229 : vector<9x32xf32>
    %231 = vector.extract_strided_slice %4 {offsets = [1, 0], sizes = [1, 32], strides = [1, 1]} : vector<3x32xf32> to vector<1x32xf32>
    %232 = vector.extract_strided_slice %5 {offsets = [1, 0], sizes = [1, 32], strides = [1, 1]} : vector<3x32xf32> to vector<1x32xf32>
    %233 = arith.addf %134, %230 : vector<9x32xf32>
    %cst_85 = arith.constant dense<0.000000e+00> : vector<9xf32>
    %234 = vector.multi_reduction <add>, %233, %cst_85 [1] : vector<9x32xf32> to vector<9xf32>
    %235 = vector.shape_cast %234 : vector<9xf32> to vector<9x1xf32>
    %cst_86 = arith.constant 3.200000e+01 : f32
    %236 = vector.broadcast %cst_86 : f32 to vector<9x1xf32>
    %237 = arith.divf %235, %236 : vector<9x1xf32>
    %238 = vector.broadcast %237 : vector<9x1xf32> to vector<9x32xf32>
    %239 = arith.subf %233, %238 : vector<9x32xf32>
    %240 = arith.mulf %239, %239 : vector<9x32xf32>
    %cst_87 = arith.constant dense<0.000000e+00> : vector<9xf32>
    %241 = vector.multi_reduction <add>, %240, %cst_87 [1] : vector<9x32xf32> to vector<9xf32>
    %242 = vector.shape_cast %241 : vector<9xf32> to vector<9x1xf32>
    %cst_88 = arith.constant 3.200000e+01 : f32
    %243 = vector.broadcast %cst_88 : f32 to vector<9x1xf32>
    %244 = arith.divf %242, %243 : vector<9x1xf32>
    %245 = vector.broadcast %237 : vector<9x1xf32> to vector<9x32xf32>
    %246 = arith.subf %233, %245 : vector<9x32xf32>
    %cst_89 = arith.constant 9.99999974E-6 : f32
    %247 = vector.broadcast %cst_89 : f32 to vector<9x1xf32>
    %248 = arith.addf %244, %247 : vector<9x1xf32>
    %249 = math.rsqrt %248 : vector<9x1xf32>
    %250 = vector.broadcast %249 : vector<9x1xf32> to vector<9x32xf32>
    %251 = arith.mulf %246, %250 : vector<9x32xf32>
    %252 = vector.broadcast %231 : vector<1x32xf32> to vector<9x32xf32>
    %253 = arith.mulf %251, %252 : vector<9x32xf32>
    %254 = vector.broadcast %232 : vector<1x32xf32> to vector<9x32xf32>
    %255 = arith.addf %253, %254 : vector<9x32xf32>
    %c0_90 = arith.constant 0 : index
    %c0_91 = arith.constant 0 : index
    %256 = vector.load %arg13[%c0_90, %c0_91] : memref<32x64xf32, #tpu.memory_space<vmem>>, vector<32x64xf32>
    %c0_92 = arith.constant 0 : index
    %c0_93 = arith.constant 0 : index
    %257 = vector.load %arg14[%c0_92, %c0_93] : memref<1x64xf32, #tpu.memory_space<vmem>>, vector<1x64xf32>
    %c0_94 = arith.constant 0 : index
    %c0_95 = arith.constant 0 : index
    %258 = vector.load %arg15[%c0_94, %c0_95] : memref<64x32xf32, #tpu.memory_space<vmem>>, vector<64x32xf32>
    %c0_96 = arith.constant 0 : index
    %c0_97 = arith.constant 0 : index
    %259 = vector.load %arg16[%c0_96, %c0_97] : memref<1x32xf32, #tpu.memory_space<vmem>>, vector<1x32xf32>
    %cst_98 = arith.constant dense<0.000000e+00> : vector<9x64xf32>
    %260 = tpu.matmul %255, %256, %cst_98 {dimension_numbers = #tpu.dot_dimension_numbers<[1], [0], [0], [1], [0, 0, 1, 1], [], []>} : vector<9x32xf32>, vector<32x64xf32>, vector<9x64xf32> -> vector<9x64xf32>
    %261 = vector.broadcast %257 : vector<1x64xf32> to vector<9x64xf32>
    %262 = arith.addf %260, %261 : vector<9x64xf32>
    %cst_99 = arith.constant 0.000000e+00 : f32
    %263 = vector.broadcast %cst_99 : f32 to vector<9x64xf32>
    %264 = arith.maximumf %262, %263 : vector<9x64xf32>
    %cst_100 = arith.constant dense<0.000000e+00> : vector<9x32xf32>
    %265 = tpu.matmul %264, %258, %cst_100 {dimension_numbers = #tpu.dot_dimension_numbers<[1], [0], [0], [1], [0, 0, 1, 1], [], []>} : vector<9x64xf32>, vector<64x32xf32>, vector<9x32xf32> -> vector<9x32xf32>
    %266 = vector.broadcast %259 : vector<1x32xf32> to vector<9x32xf32>
    %267 = arith.addf %265, %266 : vector<9x32xf32>
    %268 = vector.extract_strided_slice %4 {offsets = [2, 0], sizes = [1, 32], strides = [1, 1]} : vector<3x32xf32> to vector<1x32xf32>
    %269 = vector.extract_strided_slice %5 {offsets = [2, 0], sizes = [1, 32], strides = [1, 1]} : vector<3x32xf32> to vector<1x32xf32>
    %270 = arith.addf %255, %267 : vector<9x32xf32>
    %cst_101 = arith.constant dense<0.000000e+00> : vector<9xf32>
    %271 = vector.multi_reduction <add>, %270, %cst_101 [1] : vector<9x32xf32> to vector<9xf32>
    %272 = vector.shape_cast %271 : vector<9xf32> to vector<9x1xf32>
    %cst_102 = arith.constant 3.200000e+01 : f32
    %273 = vector.broadcast %cst_102 : f32 to vector<9x1xf32>
    %274 = arith.divf %272, %273 : vector<9x1xf32>
    %275 = vector.broadcast %274 : vector<9x1xf32> to vector<9x32xf32>
    %276 = arith.subf %270, %275 : vector<9x32xf32>
    %277 = arith.mulf %276, %276 : vector<9x32xf32>
    %cst_103 = arith.constant dense<0.000000e+00> : vector<9xf32>
    %278 = vector.multi_reduction <add>, %277, %cst_103 [1] : vector<9x32xf32> to vector<9xf32>
    %279 = vector.shape_cast %278 : vector<9xf32> to vector<9x1xf32>
    %cst_104 = arith.constant 3.200000e+01 : f32
    %280 = vector.broadcast %cst_104 : f32 to vector<9x1xf32>
    %281 = arith.divf %279, %280 : vector<9x1xf32>
    %282 = vector.broadcast %274 : vector<9x1xf32> to vector<9x32xf32>
    %283 = arith.subf %270, %282 : vector<9x32xf32>
    %cst_105 = arith.constant 9.99999974E-6 : f32
    %284 = vector.broadcast %cst_105 : f32 to vector<9x1xf32>
    %285 = arith.addf %281, %284 : vector<9x1xf32>
    %286 = math.rsqrt %285 : vector<9x1xf32>
    %287 = vector.broadcast %286 : vector<9x1xf32> to vector<9x32xf32>
    %288 = arith.mulf %283, %287 : vector<9x32xf32>
    %289 = vector.broadcast %268 : vector<1x32xf32> to vector<9x32xf32>
    %290 = arith.mulf %288, %289 : vector<9x32xf32>
    %291 = vector.broadcast %269 : vector<1x32xf32> to vector<9x32xf32>
    %292 = arith.addf %290, %291 : vector<9x32xf32>
    %293 = vector.broadcast %3 : vector<9x1xf32> to vector<9x32xf32>
    %294 = arith.mulf %292, %293 : vector<9x32xf32>
    %cst_106 = arith.constant dense<0.000000e+00> : vector<32xf32>
    %295 = vector.multi_reduction <add>, %294, %cst_106 [0] : vector<9x32xf32> to vector<32xf32>
    %296 = vector.shape_cast %295 : vector<32xf32> to vector<1x32xf32>
    %c0_107 = arith.constant 0 : index
    %c0_108 = arith.constant 0 : index
    %297 = vector.load %arg19[%c0_107, %c0_108] : memref<32x32xf32, #tpu.memory_space<vmem>>, vector<32x32xf32>
    %cst_109 = arith.constant dense<0.000000e+00> : vector<9x32xf32>
    %298 = tpu.matmul %0, %297, %cst_109 {dimension_numbers = #tpu.dot_dimension_numbers<[1], [0], [0], [1], [0, 0, 1, 1], [], []>} : vector<9x32xf32>, vector<32x32xf32>, vector<9x32xf32> -> vector<9x32xf32>
    %c0_110 = arith.constant 0 : index
    %c0_111 = arith.constant 0 : index
    %299 = vector.load %arg20[%c0_110, %c0_111] : memref<32x32xf32, #tpu.memory_space<vmem>>, vector<32x32xf32>
    %cst_112 = arith.constant dense<0.000000e+00> : vector<1x32xf32>
    %300 = tpu.matmul %296, %299, %cst_112 {dimension_numbers = #tpu.dot_dimension_numbers<[1], [0], [0], [1], [0, 0, 1, 1], [], []>} : vector<1x32xf32>, vector<32x32xf32>, vector<1x32xf32> -> vector<1x32xf32>
    %301 = vector.broadcast %300 : vector<1x32xf32> to vector<9x32xf32>
    %302 = arith.addf %298, %301 : vector<9x32xf32>
    %303 = math.tanh %302 : vector<9x32xf32>
    %c0_113 = arith.constant 0 : index
    %c0_114 = arith.constant 0 : index
    %304 = vector.load %arg21[%c0_113, %c0_114] : memref<1x32xf32, #tpu.memory_space<vmem>>, vector<1x32xf32>
    %cst_115 = arith.constant dense<0.000000e+00> : vector<1x9xf32>
    %305 = tpu.matmul %304, %303, %cst_115 {dimension_numbers = #tpu.dot_dimension_numbers<[1], [1], [0], [0], [0, 0, 1, 0], [], []>} : vector<1x32xf32>, vector<9x32xf32>, vector<1x9xf32> -> vector<1x9xf32>
    %cst_116 = arith.constant dense<0xFF800000> : vector<1xf32>
    %306 = vector.multi_reduction <maximumf>, %305, %cst_116 [1] : vector<1x9xf32> to vector<1xf32>
    %307 = vector.shape_cast %306 : vector<1xf32> to vector<1x1xf32>
    %308 = vector.broadcast %307 : vector<1x1xf32> to vector<1x9xf32>
    %309 = arith.subf %305, %308 : vector<1x9xf32>
    %310 = math.exp %309 : vector<1x9xf32>
    %cst_117 = arith.constant dense<0.000000e+00> : vector<1xf32>
    %311 = vector.multi_reduction <add>, %310, %cst_117 [1] : vector<1x9xf32> to vector<1xf32>
    %312 = vector.shape_cast %311 : vector<1xf32> to vector<1x1xf32>
    %313 = math.log %312 : vector<1x1xf32>
    %314 = arith.addf %307, %313 : vector<1x1xf32>
    %315 = vector.broadcast %314 : vector<1x1xf32> to vector<1x9xf32>
    %316 = arith.subf %305, %315 : vector<1x9xf32>
    %c0_118 = arith.constant 0 : index
    %c0_119 = arith.constant 0 : index
    %317 = vector.load %arg22[%c0_118, %c0_119] : memref<1x9xf32, #tpu.memory_space<vmem>>, vector<1x9xf32>
    tpu.vector_store %arg22[%c0_118, %c0_119], %316 {strides = array<i32>} : memref<1x9xf32, #tpu.memory_space<vmem>>, vector<1x9xf32>,
    return
  }
  func.func @transform_0(%arg0: i32) -> (i32, i32) {
    %c0_i32 = arith.constant 0 : i32
    %c0_i32_0 = arith.constant 0 : i32
    %c0_i32_1 = arith.constant 0 : i32
    return %c0_i32, %c0_i32_0 : i32, i32
  }
  func.func @transform_1(%arg0: i32) -> (i32, i32) {
    %c0_i32 = arith.constant 0 : i32
    %c0_i32_0 = arith.constant 0 : i32
    %c0_i32_1 = arith.constant 0 : i32
    return %c0_i32, %c0_i32_0 : i32, i32
  }
  func.func @transform_2(%arg0: i32) -> (i32, i32) {
    %c0_i32 = arith.constant 0 : i32
    %c0_i32_0 = arith.constant 0 : i32
    %c0_i32_1 = arith.constant 0 : i32
    return %c0_i32, %c0_i32_0 : i32, i32
  }
  func.func @transform_3(%arg0: i32) -> (i32, i32) {
    %c0_i32 = arith.constant 0 : i32
    %c0_i32_0 = arith.constant 0 : i32
    %c0_i32_1 = arith.constant 0 : i32
    return %c0_i32, %c0_i32_0 : i32, i32
  }
  func.func @transform_4(%arg0: i32) -> (i32, i32) {
    %c0_i32 = arith.constant 0 : i32
    %c0_i32_0 = arith.constant 0 : i32
    %c0_i32_1 = arith.constant 0 : i32
    return %c0_i32, %c0_i32_0 : i32, i32
  }
  func.func @transform_5(%arg0: i32) -> (i32, i32) {
    %c0_i32 = arith.constant 0 : i32
    %c0_i32_0 = arith.constant 0 : i32
    %c0_i32_1 = arith.constant 0 : i32
    return %c0_i32, %c0_i32_0 : i32, i32
  }
  func.func @transform_6(%arg0: i32) -> (i32, i32) {
    %c0_i32 = arith.constant 0 : i32
    %c0_i32_0 = arith.constant 0 : i32
    %c0_i32_1 = arith.constant 0 : i32
    return %c0_i32, %c0_i32_0 : i32, i32
  }
  func.func @transform_7(%arg0: i32) -> (i32, i32) {
    %c0_i32 = arith.constant 0 : i32
    %c0_i32_0 = arith.constant 0 : i32
    %c0_i32_1 = arith.constant 0 : i32
    return %c0_i32, %c0_i32_0 : i32, i32
  }
  func.func @transform_8(%arg0: i32) -> (i32, i32) {
    %c0_i32 = arith.constant 0 : i32
    %c0_i32_0 = arith.constant 0 : i32
    %c0_i32_1 = arith.constant 0 : i32
    return %c0_i32, %c0_i32_0 : i32, i32
  }
  func.func @transform_9(%arg0: i32) -> (i32, i32) {
    %c0_i32 = arith.constant 0 : i32
    %c0_i32_0 = arith.constant 0 : i32
    %c0_i32_1 = arith.constant 0 : i32
    return %c0_i32, %c0_i32_0 : i32, i32
  }
  func.func @transform_10(%arg0: i32) -> (i32, i32) {
    %c0_i32 = arith.constant 0 : i32
    %c0_i32_0 = arith.constant 0 : i32
    %c0_i32_1 = arith.constant 0 : i32
    return %c0_i32, %c0_i32_0 : i32, i32
  }
  func.func @transform_11(%arg0: i32) -> (i32, i32) {
    %c0_i32 = arith.constant 0 : i32
    %c0_i32_0 = arith.constant 0 : i32
    %c0_i32_1 = arith.constant 0 : i32
    return %c0_i32, %c0_i32_0 : i32, i32
  }
  func.func @transform_12(%arg0: i32) -> (i32, i32) {
    %c0_i32 = arith.constant 0 : i32
    %c0_i32_0 = arith.constant 0 : i32
    %c0_i32_1 = arith.constant 0 : i32
    return %c0_i32, %c0_i32_0 : i32, i32
  }
  func.func @transform_13(%arg0: i32) -> (i32, i32) {
    %c0_i32 = arith.constant 0 : i32
    %c0_i32_0 = arith.constant 0 : i32
    %c0_i32_1 = arith.constant 0 : i32
    return %c0_i32, %c0_i32_0 : i32, i32
  }
  func.func @transform_14(%arg0: i32) -> (i32, i32) {
    %c0_i32 = arith.constant 0 : i32
    %c0_i32_0 = arith.constant 0 : i32
    %c0_i32_1 = arith.constant 0 : i32
    return %c0_i32, %c0_i32_0 : i32, i32
  }
  func.func @transform_15(%arg0: i32) -> (i32, i32) {
    %c0_i32 = arith.constant 0 : i32
    %c0_i32_0 = arith.constant 0 : i32
    %c0_i32_1 = arith.constant 0 : i32
    return %c0_i32, %c0_i32_0 : i32, i32
  }
  func.func @transform_16(%arg0: i32) -> (i32, i32) {
    %c0_i32 = arith.constant 0 : i32
    %c0_i32_0 = arith.constant 0 : i32
    %c0_i32_1 = arith.constant 0 : i32
    return %c0_i32, %c0_i32_0 : i32, i32
  }
  func.func @transform_17(%arg0: i32) -> (i32, i32) {
    %c0_i32 = arith.constant 0 : i32
    %c0_i32_0 = arith.constant 0 : i32
    %c0_i32_1 = arith.constant 0 : i32
    return %c0_i32, %c0_i32_0 : i32, i32
  }
  func.func @transform_18(%arg0: i32) -> (i32, i32) {
    %c0_i32 = arith.constant 0 : i32
    %c0_i32_0 = arith.constant 0 : i32
    %c0_i32_1 = arith.constant 0 : i32
    return %c0_i32, %c0_i32_0 : i32, i32
  }
  func.func @transform_19(%arg0: i32) -> (i32, i32) {
    %c0_i32 = arith.constant 0 : i32
    %c0_i32_0 = arith.constant 0 : i32
    %c0_i32_1 = arith.constant 0 : i32
    return %c0_i32, %c0_i32_0 : i32, i32
  }
  func.func @transform_20(%arg0: i32) -> (i32, i32) {
    %c0_i32 = arith.constant 0 : i32
    %c0_i32_0 = arith.constant 0 : i32
    %c0_i32_1 = arith.constant 0 : i32
    return %c0_i32, %c0_i32_0 : i32, i32
  }
  func.func @transform_21(%arg0: i32) -> (i32, i32) {
    %c0_i32 = arith.constant 0 : i32
    %c0_i32_0 = arith.constant 0 : i32
    %c0_i32_1 = arith.constant 0 : i32
    return %c0_i32, %c0_i32_0 : i32, i32
  }
}

</mosaic_0001>

<llo_original>
// kernel: actor_core.1
$region0: #{actor_core.1}
  #allocation0 [shape = 'u32[]', space=smem, size = 0x4, offset = 0x4, fixed_abs, tag = 'smem constant byte address 0x4 - core index']
  #allocation1 [shape = 'u32[72,128]{1,0:T(1,128)}', space=vmem, size = 0x9000, scoped, tag = 'internal scratch']
  %s0 = inlined_call_operand.vmem [shape: f32[9,2], index: 0, kind: input, shape index: {}]
  %s1 = inlined_call_operand.vmem [shape: f32[2,32], index: 1, kind: input, shape index: {}]
  %s2 = inlined_call_operand.hbm [shape: f32[32,96], index: 2, kind: input, shape index: {}]
  %s3 = inlined_call_operand.vmem [shape: f32[1,96], index: 3, kind: input, shape index: {}]
  %s4 = inlined_call_operand.hbm [shape: f32[32,32], index: 4, kind: input, shape index: {}]
  %s5 = inlined_call_operand.vmem [shape: f32[1,32], index: 5, kind: input, shape index: {}]
  %s6 = inlined_call_operand.hbm [shape: f32[32,64], index: 6, kind: input, shape index: {}]
  %s7 = inlined_call_operand.vmem [shape: f32[1,64], index: 7, kind: input, shape index: {}]
  %s8 = inlined_call_operand.vmem [shape: f32[64,32], index: 8, kind: input, shape index: {}]
  %s9 = inlined_call_operand.vmem [shape: f32[1,32], index: 9, kind: input, shape index: {}]
  %s10 = inlined_call_operand.vmem [shape: f32[2,32], index: 10, kind: input, shape index: {}]
  %s11 = inlined_call_operand.vmem [shape: f32[2,32], index: 11, kind: input, shape index: {}]
  %s12 = inlined_call_operand.vmem [shape: f32[9,32], index: 12, kind: output, shape index: {}]
  %s13 = sld [smem:[#allocation0]]
  $region70: #{actor_core.1} parent=0
    _
  %s15 = ssub.s32 1, %s13
  %s16 = scalar_select 0, %s15, %s13
  $region1: #{actor_core.1} parent=0
    #allocation2 [shape = 'u8[16384]{0}', space=vmem, size = 0x4000, scoped, tag = 'input window, operand 2, single buffered']
    #allocation3 [shape = 's32[1]{0}', space=sflag, size = 0x4, scoped, tag = 'scoped memory for actor_core.1']
    #allocation4 [shape = 'u8[16384]{0}', space=vmem, size = 0x4000, scoped, tag = 'input window, operand 4, single buffered']
    #allocation5 [shape = 's32[1]{0}', space=sflag, size = 0x4, scoped, tag = 'scoped memory for actor_core.1']
    #allocation6 [shape = 'u8[16384]{0}', space=vmem, size = 0x4000, scoped, tag = 'input window, operand 6, single buffered']
    %17 = vsyncpa [#allocation3], 0
    %18 = vsyncpa [#allocation5], 0
    // Predicated region
    $region2: #{actor_core.1} parent=1 // pred_check
      _
    $region3: #{actor_core.1} parent=1 // pred_check_branch
      %20 = sbr.rel (0) target = $region5
    $region4: #{actor_core.1} parent=1 // pred_region
      _
    $region5: #{actor_core.1} parent=1 // pred_fallthru
      _
    // Predicated region
    $region6: #{actor_core.1} parent=1 // pred_check
      _
    $region7: #{actor_core.1} parent=1 // pred_check_branch
      %22 = sbr.rel (0) target = $region9
    $region8: #{actor_core.1} parent=1 // pred_region
      _
    $region9: #{actor_core.1} parent=1 // pred_fallthru
      _
    // Predicated region
    $region10: #{actor_core.1} parent=1 // pred_check
      _
    $region11: #{actor_core.1} parent=1 // pred_check_branch
      %24 = sbr.rel (0) target = $region13
    $region12: #{actor_core.1} parent=1 // pred_region
      %26 = vsyncadd [#allocation3], 0
      %s27 = sshll.u32 %s2, 4
      %s28 = int_to_ptr.hbm [resolvable:$true] %s27
      %s29 = sshll.u32 [#allocation2], 4
      %s30 = int_to_ptr.vmem [resolvable:$true] %s29
      %35 = dma.hbm_to_vmem [thread:$0]  %s28, 512, %s30, [#allocation3], 128, 128, 8
    $region13: #{actor_core.1} parent=1 // pred_fallthru
      _
    // Predicated region
    $region14: #{actor_core.1} parent=1 // pred_check
      _
    $region15: #{actor_core.1} parent=1 // pred_check_branch
      %37 = sbr.rel (0) target = $region17
    $region16: #{actor_core.1} parent=1 // pred_region
      _
    $region17: #{actor_core.1} parent=1 // pred_fallthru
      _
    // Predicated region
    $region18: #{actor_core.1} parent=1 // pred_check
      _
    $region19: #{actor_core.1} parent=1 // pred_check_branch
      %39 = sbr.rel (0) target = $region21
    $region20: #{actor_core.1} parent=1 // pred_region
      %41 = vsyncadd [#allocation5], 0
      %s42 = sshll.u32 %s4, 4
      %s43 = int_to_ptr.hbm [resolvable:$true] %s42
      %s44 = sshll.u32 [#allocation4], 4
      %s45 = int_to_ptr.vmem [resolvable:$true] %s44
      %50 = dma.hbm_to_vmem [thread:$0]  %s43, 512, %s45, [#allocation5], 128, 128, 8
    $region21: #{actor_core.1} parent=1 // pred_fallthru
      _
    // Predicated region
    $region22: #{actor_core.1} parent=1 // pred_check
      _
    $region23: #{actor_core.1} parent=1 // pred_check_branch
      %52 = sbr.rel (0) target = $region25
    $region24: #{actor_core.1} parent=1 // pred_region
      _
    $region25: #{actor_core.1} parent=1 // pred_fallthru
      _
    // Predicated region
    $region26: #{actor_core.1} parent=1 // pred_check
      _
    $region27: #{actor_core.1} parent=1 // pred_check_branch
      %54 = sbr.rel (0) target = $region29
    $region28: #{actor_core.1} parent=1 // pred_region
      %56 = vsyncadd [#allocation5], 0
      %s57 = sshll.u32 %s6, 4
      %s58 = int_to_ptr.hbm [resolvable:$true] %s57
      %s59 = sshll.u32 [#allocation6], 4
      %s60 = int_to_ptr.vmem [resolvable:$true] %s59
      %65 = dma.hbm_to_vmem [thread:$0]  %s58, 512, %s60, [#allocation5], 128, 128, 8
    $region29: #{actor_core.1} parent=1 // pred_fallthru
      _
    // Predicated region
    $region30: #{actor_core.1} parent=1 // pred_check
      _
    $region31: #{actor_core.1} parent=1 // pred_check_branch
      %67 = sbr.rel (0) target = $region33
    $region32: #{actor_core.1} parent=1 // pred_region
      _
    $region33: #{actor_core.1} parent=1 // pred_fallthru
      _
    // Predicated region
    $region34: #{actor_core.1} parent=1 // pred_check
      _
    $region35: #{actor_core.1} parent=1 // pred_check_branch
      %69 = sbr.rel (0) target = $region37
    $region36: #{actor_core.1} parent=1 // pred_region
      _
    $region37: #{actor_core.1} parent=1 // pred_fallthru
      _
    // Predicated region
    $region38: #{actor_core.1} parent=1 // pred_check
      _
    $region39: #{actor_core.1} parent=1 // pred_check_branch
      %71 = sbr.rel (0) target = $region41
    $region40: #{actor_core.1} parent=1 // pred_region
      _
    $region41: #{actor_core.1} parent=1 // pred_fallthru
      _
    // Predicated region
    $region42: #{actor_core.1} parent=1 // pred_check
      _
    $region43: #{actor_core.1} parent=1 // pred_check_branch
      %73 = sbr.rel (0) target = $region45
    $region44: #{actor_core.1} parent=1 // pred_region
      _
    $region45: #{actor_core.1} parent=1 // pred_fallthru
      _
    // Predicated region
    $region46: #{actor_core.1} parent=1 // pred_check
      _
    $region47: #{actor_core.1} parent=1 // pred_check_branch
      %75 = sbr.rel (0) target = $region49
    $region48: #{actor_core.1} parent=1 // pred_region
      _
    $region49: #{actor_core.1} parent=1 // pred_fallthru
      _
    // Predicated region
    $region50: #{actor_core.1} parent=1 // pred_check
      _
    $region51: #{actor_core.1} parent=1 // pred_check_branch
      %77 = sbr.rel (0) target = $region53
    $region52: #{actor_core.1} parent=1 // pred_region
      %79 = dma.done [#allocation3], 512
    $region53: #{actor_core.1} parent=1 // pred_fallthru
      _
    // Predicated region
    $region54: #{actor_core.1} parent=1 // pred_check
      _
    $region55: #{actor_core.1} parent=1 // pred_check_branch
      %81 = sbr.rel (0) target = $region57
    $region56: #{actor_core.1} parent=1 // pred_region
      %83 = dma.done [#allocation5], 512
    $region57: #{actor_core.1} parent=1 // pred_fallthru
      _
    // Predicated region
    $region58: #{actor_core.1} parent=1 // pred_check
      _
    $region59: #{actor_core.1} parent=1 // pred_check_branch
      %85 = sbr.rel (0) target = $region61
    $region60: #{actor_core.1} parent=1 // pred_region
      %87 = dma.done [#allocation5], 512
    $region61: #{actor_core.1} parent=1 // pred_fallthru
      _
    %v88 = vld [vmem:[%s0] sm:$0xff]
    %v89 = vld [vmem:[%s0 + $0x8] sm:$0x1]
    %v90 = vld [vmem:[%s1] sm:$0x3]
    %vm91 = vcmask 15360
    %v93 = vsel %vm91, %v88, 0
    %v96 = vsel %vm91, %v89, 0
    %vm98 = vcmask 1041408
    %v100 = vsel %vm98, %v90, 0
    %102 = vmatpush.msra.mxu0 0.0
    %103 = vmatpush.msra.mxu0 0.0
    %104 = vmatpush.msra.mxu0 0.0
    %105 = vmatpush.msra.mxu0 0.0
    %106 = vmatpush.msra.mxu0 0.0
    %107 = vmatpush.msra.mxu0 0.0
    %108 = vmatpush.msra.mxu0 0.0
    %109 = vmatpush.msra.mxu0 0.0
    %110 = vmatpush.msra.mxu0 0.0
    %111 = vmatpush.msra.mxu0 0.0
    %112 = vmatpush.msra.mxu0 0.0
    %113 = vmatpush.msra.mxu0 0.0
    %114 = vmatpush.msra.mxu0 0.0
    %115 = vmatpush.msra.mxu0 0.0
    %116 = vmatpush.msra.mxu0 0.0
    %117 = vmatpush.msra.mxu0 %v100
    %118 = vmatmul.f32.gmra.mxu0 %v93
    %v119 = vpop.f32.mrf.mxu0
    %v120 = vadd.f32 0.0, %v119
    %121 = vmatmul.f32.gmra.mxu0 %v96
    %v122 = vpop.f32.mrf.mxu0
    %v123 = vadd.f32 0.0, %v122
    %124 = vdwg.mxu0
    %v125 = vld [vmem:[%s10] sm:$0x3]
    %v126 = vld [vmem:[%s11] sm:$0x3]
    %v127 = vld [vmem:[#allocation2] sm:$0xff]
    %v128 = vld [vmem:[#allocation2 + $0x8] sm:$0xff]
    %v129 = vld [vmem:[#allocation2 + $0x10] sm:$0xff]
    %v130 = vld [vmem:[#allocation2 + $0x18] sm:$0xff]
    %v131 = vld [vmem:[%s3] sm:$0x1]
    %v132 = vld [vmem:[#allocation4] sm:$0xff]
    %v133 = vld [vmem:[#allocation4 + $0x8] sm:$0xff]
    %v134 = vld [vmem:[#allocation4 + $0x10] sm:$0xff]
    %v135 = vld [vmem:[#allocation4 + $0x18] sm:$0xff]
    %v136 = vld [vmem:[%s5] sm:$0x1]
    %v138 = vperm.slane %v131, 0
    %vm140 = vcmask 261120
    %v142 = vsel %vm140, %v120, 0
    %v145 = vsel %vm140, %v123, 0
    %147 = vmatpush.msra.mxu0 0.0
    %148 = vmatpush.msra.mxu0 0.0
    %149 = vmatpush.msra.mxu0 0.0
    %150 = vmatpush.msra.mxu0 0.0
    %151 = vmatpush.msra.mxu0 0.0
    %152 = vmatpush.msra.mxu0 0.0
    %153 = vmatpush.msra.mxu0 0.0
    %154 = vmatpush.msra.mxu0 0.0
    %155 = vmatpush.msra.mxu0 0.0
    %156 = vmatpush.msra.mxu0 0.0
    %157 = vmatpush.msra.mxu0 0.0
    %158 = vmatpush.msra.mxu0 0.0
    %159 = vmatpush.msra.mxu0 %v130
    %160 = vmatpush.msra.mxu0 %v129
    %161 = vmatpush.msra.mxu0 %v128
    %162 = vmatpush.msra.mxu0 %v127
    %163 = vmatmul.f32.gmra.mxu0 %v142
    %v164 = vpop.f32.mrf.mxu0
    %v165 = vadd.f32 %v138, %v164
    %166 = vmatmul.f32.gmra.mxu0 %v145
    %v167 = vpop.f32.mrf.mxu0
    %v168 = vadd.f32 %v138, %v167
    %169 = vdwg.mxu0
    %174 = vrot.lane.b32.xlu0 %v127, 96
    %v175 = vpop.permute.xlu0 %174
    %176 = vrot.lane.b32.xlu0 %v128, 96
    %v177 = vpop.permute.xlu0 %176
    %178 = vrot.lane.b32.xlu0 %v129, 96
    %v179 = vpop.permute.xlu0 %178
    %180 = vrot.lane.b32.xlu0 %v130, 96
    %v181 = vpop.permute.xlu0 %180
    %186 = vrot.lane.b32.xlu0 %v138, 96
    %v187 = vpop.permute.xlu0 %186
    %189 = vmatpush.msra.mxu0 0.0
    %190 = vmatpush.msra.mxu0 0.0
    %191 = vmatpush.msra.mxu0 0.0
    %192 = vmatpush.msra.mxu0 0.0
    %193 = vmatpush.msra.mxu0 0.0
    %194 = vmatpush.msra.mxu0 0.0
    %195 = vmatpush.msra.mxu0 0.0
    %196 = vmatpush.msra.mxu0 0.0
    %197 = vmatpush.msra.mxu0 0.0
    %198 = vmatpush.msra.mxu0 0.0
    %199 = vmatpush.msra.mxu0 0.0
    %200 = vmatpush.msra.mxu0 0.0
    %201 = vmatpush.msra.mxu0 %v181
    %202 = vmatpush.msra.mxu0 %v179
    %203 = vmatpush.msra.mxu0 %v177
    %204 = vmatpush.msra.mxu0 %v175
    %205 = vmatmul.f32.gmra.mxu0 %v142
    %v206 = vpop.f32.mrf.mxu0
    %v207 = vadd.f32 %v187, %v206
    %208 = vmatmul.f32.gmra.mxu0 %v145
    %v209 = vpop.f32.mrf.mxu0
    %v210 = vadd.f32 %v187, %v209
    %211 = vdwg.mxu0
    %212 = vrot.lane.b32.xlu0 %v127, 64
    %v213 = vpop.permute.xlu0 %212
    %214 = vrot.lane.b32.xlu0 %v128, 64
    %v215 = vpop.permute.xlu0 %214
    %216 = vrot.lane.b32.xlu0 %v129, 64
    %v217 = vpop.permute.xlu0 %216
    %218 = vrot.lane.b32.xlu0 %v130, 64
    %v219 = vpop.permute.xlu0 %218
    %224 = vrot.lane.b32.xlu0 %v138, 64
    %v225 = vpop.permute.xlu0 %224
    %227 = vmatpush.msra.mxu0 0.0
    %228 = vmatpush.msra.mxu0 0.0
    %229 = vmatpush.msra.mxu0 0.0
    %230 = vmatpush.msra.mxu0 0.0
    %231 = vmatpush.msra.mxu0 0.0
    %232 = vmatpush.msra.mxu0 0.0
    %233 = vmatpush.msra.mxu0 0.0
    %234 = vmatpush.msra.mxu0 0.0
    %235 = vmatpush.msra.mxu0 0.0
    %236 = vmatpush.msra.mxu0 0.0
    %237 = vmatpush.msra.mxu0 0.0
    %238 = vmatpush.msra.mxu0 0.0
    %239 = vmatpush.msra.mxu0 %v219
    %240 = vmatpush.msra.mxu0 %v217
    %241 = vmatpush.msra.mxu0 %v215
    %242 = vmatpush.msra.mxu0 %v213
    %243 = vmatmul.f32.gmra.mxu0 %v142
    %v244 = vpop.f32.mrf.mxu0
    %v245 = vadd.f32 %v225, %v244
    %246 = vmatmul.f32.gmra.mxu0 %v145
    %v247 = vpop.f32.mrf.mxu0
    %v248 = vadd.f32 %v225, %v247
    %249 = vdwg.mxu0
    %vm250 = vcmask 64512
    %v252 = vsel %vm250, %v165, 0
    %v255 = vsel %vm250, %v168, 0
    %v258 = vsel %vm250, %v207, 0
    %v261 = vsel %vm250, %v210, 0
    %263 = vmatpush.xpose.msra.mxu0 0.0
    %264 = vmatpush.xpose.msra.mxu0 0.0
    %265 = vmatpush.xpose.msra.mxu0 0.0
    %266 = vmatpush.xpose.msra.mxu0 0.0
    %267 = vmatpush.xpose.msra.mxu0 0.0
    %268 = vmatpush.xpose.msra.mxu0 0.0
    %269 = vmatpush.xpose.msra.mxu0 0.0
    %270 = vmatpush.xpose.msra.mxu0 0.0
    %271 = vmatpush.xpose.msra.mxu0 0.0
    %272 = vmatpush.xpose.msra.mxu0 0.0
    %273 = vmatpush.xpose.msra.mxu0 0.0
    %274 = vmatpush.xpose.msra.mxu0 0.0
    %275 = vmatpush.xpose.msra.mxu0 0.0
    %276 = vmatpush.xpose.msra.mxu0 0.0
    %277 = vmatpush.xpose.msra.mxu0 %v261
    %278 = vmatpush.xpose.msra.mxu0 %v258
    %279 = vmatmul.f32.gmra.mxu0 %v252
    %v280 = vpop.f32.mrf.mxu0
    %v281 = vadd.f32 0.0, %v280
    %282 = vmatmul.f32.gmra.mxu0 %v255
    %v283 = vpop.f32.mrf.mxu0
    %v284 = vadd.f32 0.0, %v283
    %285 = vdwg.mxu0
    %v286 = vmul.f32 %v281, 0.35355338
    %v287 = vmul.f32 %v284, 0.35355338
    %vm288 = vcmask 72704
    %v289 = vsel %vm288, %v286, -inf
    %290 = vmax.xlane.f32.xlu0 %v289
    %v291 = vpop.xlane.xlu0 %290
    %vm292 = vcmask 65536
    %v293 = vsel %vm292, %v287, -inf
    %294 = vmax.xlane.f32.xlu0 %v293
    %v295 = vpop.xlane.xlu0 %294
    %v296 = vsub.f32 %v286, %v291
    %v297 = vsub.f32 %v287, %v295
    %v298 = vmul.f32 %v296, 1.442695
    %v299 = vpow.pop %v298
    %v300 = vmul.f32 %v297, 1.442695
    %v301 = vpow.pop %v300
    %v302 = vsel %vm288, %v299, 0.0
    %303 = vadd.xlane.f32.xlu0 %v302
    %v304 = vpop.xlane.xlu0 %303
    %v305 = vsel %vm292, %v301, 0.0
    %306 = vadd.xlane.f32.xlu0 %v305
    %v307 = vpop.xlane.xlu0 %306
    %v308 = vrcp.pop %v304
    %v309 = vmul.f32 %v304, %v308
    %v310 = vsub.f32 1.0, %v309
    %v311 = vmul.f32 %v308, %v310
    %v312 = vadd.f32 %v308, %v311
    %vm313 = vweird.f32 %v304
    %vm314 = vweird.f32 %v308
    %vm315 = vmor %vm313, %vm314
    %v316 = vsel %vm315, %v308, %v312
    %v317 = vand.u32 2147483647, %v304
    %vm318 = vcmp.eq.f32.partialorder %v317, 8.507059e+37
    %v319 = vand.u32 %v304, 2147483648
    %v320 = vor.u32 1.1754944e-38, %v319
    %v321 = vsel %vm318, %v320, %v316
    %v322 = vmul.f32 %v299, %v321
    %v323 = vrcp.pop %v307
    %v324 = vmul.f32 %v307, %v323
    %v325 = vsub.f32 1.0, %v324
    %v326 = vmul.f32 %v323, %v325
    %v327 = vadd.f32 %v323, %v326
    %vm328 = vweird.f32 %v307
    %vm329 = vweird.f32 %v323
    %vm330 = vmor %vm328, %vm329
    %v331 = vsel %vm330, %v323, %v327
    %v332 = vand.u32 2147483647, %v307
    %vm333 = vcmp.eq.f32.partialorder %v332, 8.507059e+37
    %v334 = vand.u32 %v307, 2147483648
    %v335 = vor.u32 1.1754944e-38, %v334
    %v336 = vsel %vm333, %v335, %v331
    %v337 = vmul.f32 %v301, %v336
    %v339 = vsel %vm288, %v322, 0
    %v342 = vsel %vm288, %v337, 0
    %vm344 = vcmask 1040384
    %v346 = vsel %vm344, %v248, 0
    %348 = vmatpush.msra.mxu0 0.0
    %349 = vmatpush.msra.mxu0 0.0
    %350 = vmatpush.msra.mxu0 0.0
    %351 = vmatpush.msra.mxu0 0.0
    %352 = vmatpush.msra.mxu0 0.0
    %353 = vmatpush.msra.mxu0 0.0
    %354 = vmatpush.msra.mxu0 0.0
    %355 = vmatpush.msra.mxu0 0.0
    %356 = vmatpush.msra.mxu0 0.0
    %357 = vmatpush.msra.mxu0 0.0
    %358 = vmatpush.msra.mxu0 0.0
    %359 = vmatpush.msra.mxu0 0.0
    %360 = vmatpush.msra.mxu0 0.0
    %361 = vmatpush.msra.mxu0 0.0
    %362 = vmatpush.msra.mxu0 %v346
    %363 = vmatpush.msra.mxu0 %v245
    %364 = vmatmul.f32.gmra.mxu0 %v339
    %v365 = vpop.f32.mrf.mxu0
    %v366 = vadd.f32 0.0, %v365
    %367 = vmatmul.f32.gmra.mxu0 %v342
    %v368 = vpop.f32.mrf.mxu0
    %v369 = vadd.f32 0.0, %v368
    %370 = vdwg.mxu0
    %371 = vrot.lane.b32.xlu0 %v165, 120
    %v372 = vpop.permute.xlu0 %371
    %373 = vrot.lane.b32.xlu0 %v168, 120
    %v374 = vpop.permute.xlu0 %373
    %375 = vrot.lane.b32.xlu0 %v207, 120
    %v376 = vpop.permute.xlu0 %375
    %377 = vrot.lane.b32.xlu0 %v210, 120
    %v378 = vpop.permute.xlu0 %377
    %v379 = vsel %vm250, %v372, 0
    %v381 = vsel %vm250, %v374, 0
    %v383 = vsel %vm250, %v376, 0
    %v385 = vsel %vm250, %v378, 0
    %387 = vmatpush.xpose.msra.mxu0 0.0
    %388 = vmatpush.xpose.msra.mxu0 0.0
    %389 = vmatpush.xpose.msra.mxu0 0.0
    %390 = vmatpush.xpose.msra.mxu0 0.0
    %391 = vmatpush.xpose.msra.mxu0 0.0
    %392 = vmatpush.xpose.msra.mxu0 0.0
    %393 = vmatpush.xpose.msra.mxu0 0.0
    %394 = vmatpush.xpose.msra.mxu0 0.0
    %395 = vmatpush.xpose.msra.mxu0 0.0
    %396 = vmatpush.xpose.msra.mxu0 0.0
    %397 = vmatpush.xpose.msra.mxu0 0.0
    %398 = vmatpush.xpose.msra.mxu0 0.0
    %399 = vmatpush.xpose.msra.mxu0 0.0
    %400 = vmatpush.xpose.msra.mxu0 0.0
    %401 = vmatpush.xpose.msra.mxu0 %v385
    %402 = vmatpush.xpose.msra.mxu0 %v383
    %403 = vmatmul.f32.gmra.mxu0 %v379
    %v404 = vpop.f32.mrf.mxu0
    %v405 = vadd.f32 0.0, %v404
    %406 = vmatmul.f32.gmra.mxu0 %v381
    %v407 = vpop.f32.mrf.mxu0
    %v408 = vadd.f32 0.0, %v407
    %409 = vdwg.mxu0
    %v410 = vmul.f32 %v405, 0.35355338
    %v411 = vmul.f32 %v408, 0.35355338
    %v412 = vsel %vm288, %v410, -inf
    %413 = vmax.xlane.f32.xlu0 %v412
    %v414 = vpop.xlane.xlu0 %413
    %v415 = vsel %vm292, %v411, -inf
    %416 = vmax.xlane.f32.xlu0 %v415
    %v417 = vpop.xlane.xlu0 %416
    %v418 = vsub.f32 %v410, %v414
    %v419 = vsub.f32 %v411, %v417
    %v420 = vmul.f32 %v418, 1.442695
    %v421 = vpow.pop %v420
    %v422 = vmul.f32 %v419, 1.442695
    %v423 = vpow.pop %v422
    %v424 = vsel %vm288, %v421, 0.0
    %425 = vadd.xlane.f32.xlu0 %v424
    %v426 = vpop.xlane.xlu0 %425
    %v427 = vsel %vm292, %v423, 0.0
    %428 = vadd.xlane.f32.xlu0 %v427
    %v429 = vpop.xlane.xlu0 %428
    %v430 = vrcp.pop %v426
    %v431 = vmul.f32 %v426, %v430
    %v432 = vsub.f32 1.0, %v431
    %v433 = vmul.f32 %v430, %v432
    %v434 = vadd.f32 %v430, %v433
    %vm435 = vweird.f32 %v426
    %vm436 = vweird.f32 %v430
    %vm437 = vmor %vm435, %vm436
    %v438 = vsel %vm437, %v430, %v434
    %v439 = vand.u32 2147483647, %v426
    %vm440 = vcmp.eq.f32.partialorder %v439, 8.507059e+37
    %v441 = vand.u32 %v426, 2147483648
    %v442 = vor.u32 1.1754944e-38, %v441
    %v443 = vsel %vm440, %v442, %v438
    %v444 = vmul.f32 %v421, %v443
    %v445 = vrcp.pop %v429
    %v446 = vmul.f32 %v429, %v445
    %v447 = vsub.f32 1.0, %v446
    %v448 = vmul.f32 %v445, %v447
    %v449 = vadd.f32 %v445, %v448
    %vm450 = vweird.f32 %v429
    %vm451 = vweird.f32 %v445
    %vm452 = vmor %vm450, %vm451
    %v453 = vsel %vm452, %v445, %v449
    %v454 = vand.u32 2147483647, %v429
    %vm455 = vcmp.eq.f32.partialorder %v454, 8.507059e+37
    %v456 = vand.u32 %v429, 2147483648
    %v457 = vor.u32 1.1754944e-38, %v456
    %v458 = vsel %vm455, %v457, %v453
    %v459 = vmul.f32 %v423, %v458
    %461 = vrot.lane.b32.xlu0 %v245, 120
    %v462 = vpop.permute.xlu0 %461
    %463 = vrot.lane.b32.xlu0 %v248, 120
    %v464 = vpop.permute.xlu0 %463
    %v467 = vsel %vm288, %v444, 0
    %v470 = vsel %vm288, %v459, 0
    %v472 = vsel %vm344, %v464, 0
    %474 = vmatpush.msra.mxu0 0.0
    %475 = vmatpush.msra.mxu0 0.0
    %476 = vmatpush.msra.mxu0 0.0
    %477 = vmatpush.msra.mxu0 0.0
    %478 = vmatpush.msra.mxu0 0.0
    %479 = vmatpush.msra.mxu0 0.0
    %480 = vmatpush.msra.mxu0 0.0
    %481 = vmatpush.msra.mxu0 0.0
    %482 = vmatpush.msra.mxu0 0.0
    %483 = vmatpush.msra.mxu0 0.0
    %484 = vmatpush.msra.mxu0 0.0
    %485 = vmatpush.msra.mxu0 0.0
    %486 = vmatpush.msra.mxu0 0.0
    %487 = vmatpush.msra.mxu0 0.0
    %488 = vmatpush.msra.mxu0 %v472
    %489 = vmatpush.msra.mxu0 %v462
    %490 = vmatmul.f32.gmra.mxu0 %v467
    %v491 = vpop.f32.mrf.mxu0
    %v492 = vadd.f32 0.0, %v491
    %493 = vmatmul.f32.gmra.mxu0 %v470
    %v494 = vpop.f32.mrf.mxu0
    %v495 = vadd.f32 0.0, %v494
    %496 = vdwg.mxu0
    %v498 = vsel %vm250, %v492, 0
    %v501 = vsel %vm250, %v495, 0
    %503 = vmatpush.msra.mxu0 0.0
    %504 = vmatpush.msra.mxu0 0.0
    %505 = vmatpush.msra.mxu0 0.0
    %506 = vmatpush.msra.mxu0 0.0
    %507 = vmatpush.msra.mxu0 0.0
    %508 = vmatpush.msra.mxu0 0.0
    %509 = vmatpush.msra.mxu0 0.0
    %510 = vmatpush.msra.mxu0 0.0
    %511 = vmatpush.msra.mxu0 0.0
    %512 = vmatpush.msra.mxu0 0.0
    %513 = vmatpush.msra.mxu0 0.0
    %514 = vmatpush.msra.mxu0 0.0
    %515 = vmatpush.msra.mxu0 0.0
    %516 = vmatpush.msra.mxu0 0.0
    %517 = vmatpush.msra.mxu0 0.0
    %518 = vmatpush.msra.mxu0 %v133
    %519 = vmatmul.f32.gmra.mxu0 %v498
    %v520 = vpop.f32.mrf.mxu0
    %v521 = vadd.f32 0.0, %v520
    %522 = vmatmul.f32.gmra.mxu0 %v501
    %v523 = vpop.f32.mrf.mxu0
    %v524 = vadd.f32 0.0, %v523
    %525 = vdwg.mxu0
    %v527 = vsel %vm250, %v366, 0
    %v530 = vsel %vm250, %v369, 0
    %532 = vmatpush.msra.mxu0 0.0
    %533 = vmatpush.msra.mxu0 0.0
    %534 = vmatpush.msra.mxu0 0.0
    %535 = vmatpush.msra.mxu0 0.0
    %536 = vmatpush.msra.mxu0 0.0
    %537 = vmatpush.msra.mxu0 0.0
    %538 = vmatpush.msra.mxu0 0.0
    %539 = vmatpush.msra.mxu0 0.0
    %540 = vmatpush.msra.mxu0 0.0
    %541 = vmatpush.msra.mxu0 0.0
    %542 = vmatpush.msra.mxu0 0.0
    %543 = vmatpush.msra.mxu0 0.0
    %544 = vmatpush.msra.mxu0 0.0
    %545 = vmatpush.msra.mxu0 0.0
    %546 = vmatpush.msra.mxu0 0.0
    %547 = vmatpush.msra.mxu0 %v132
    %548 = vmatmul.f32.gmra.mxu0 %v527
    %v549 = vpop.f32.mrf.mxu0
    %v550 = vadd.f32 %v521, %v549
    %551 = vmatmul.f32.gmra.mxu0 %v530
    %v552 = vpop.f32.mrf.mxu0
    %v553 = vadd.f32 %v524, %v552
    %554 = vdwg.mxu0
    %555 = vrot.lane.b32.xlu0 %v165, 112
    %v556 = vpop.permute.xlu0 %555
    %557 = vrot.lane.b32.xlu0 %v168, 112
    %v558 = vpop.permute.xlu0 %557
    %559 = vrot.lane.b32.xlu0 %v207, 112
    %v560 = vpop.permute.xlu0 %559
    %561 = vrot.lane.b32.xlu0 %v210, 112
    %v562 = vpop.permute.xlu0 %561
    %v563 = vsel %vm250, %v556, 0
    %v565 = vsel %vm250, %v558, 0
    %v567 = vsel %vm250, %v560, 0
    %v569 = vsel %vm250, %v562, 0
    %571 = vmatpush.xpose.msra.mxu0 0.0
    %572 = vmatpush.xpose.msra.mxu0 0.0
    %573 = vmatpush.xpose.msra.mxu0 0.0
    %574 = vmatpush.xpose.msra.mxu0 0.0
    %575 = vmatpush.xpose.msra.mxu0 0.0
    %576 = vmatpush.xpose.msra.mxu0 0.0
    %577 = vmatpush.xpose.msra.mxu0 0.0
    %578 = vmatpush.xpose.msra.mxu0 0.0
    %579 = vmatpush.xpose.msra.mxu0 0.0
    %580 = vmatpush.xpose.msra.mxu0 0.0
    %581 = vmatpush.xpose.msra.mxu0 0.0
    %582 = vmatpush.xpose.msra.mxu0 0.0
    %583 = vmatpush.xpose.msra.mxu0 0.0
    %584 = vmatpush.xpose.msra.mxu0 0.0
    %585 = vmatpush.xpose.msra.mxu0 %v569
    %586 = vmatpush.xpose.msra.mxu0 %v567
    %587 = vmatmul.f32.gmra.mxu0 %v563
    %v588 = vpop.f32.mrf.mxu0
    %v589 = vadd.f32 0.0, %v588
    %590 = vmatmul.f32.gmra.mxu0 %v565
    %v591 = vpop.f32.mrf.mxu0
    %v592 = vadd.f32 0.0, %v591
    %593 = vdwg.mxu0
    %v594 = vmul.f32 %v589, 0.35355338
    %v595 = vmul.f32 %v592, 0.35355338
    %v596 = vsel %vm288, %v594, -inf
    %597 = vmax.xlane.f32.xlu0 %v596
    %v598 = vpop.xlane.xlu0 %597
    %v599 = vsel %vm292, %v595, -inf
    %600 = vmax.xlane.f32.xlu0 %v599
    %v601 = vpop.xlane.xlu0 %600
    %v602 = vsub.f32 %v594, %v598
    %v603 = vsub.f32 %v595, %v601
    %v604 = vmul.f32 %v602, 1.442695
    %v605 = vpow.pop %v604
    %v606 = vmul.f32 %v603, 1.442695
    %v607 = vpow.pop %v606
    %v608 = vsel %vm288, %v605, 0.0
    %609 = vadd.xlane.f32.xlu0 %v608
    %v610 = vpop.xlane.xlu0 %609
    %v611 = vsel %vm292, %v607, 0.0
    %612 = vadd.xlane.f32.xlu0 %v611
    %v613 = vpop.xlane.xlu0 %612
    %v614 = vrcp.pop %v610
    %v615 = vmul.f32 %v610, %v614
    %v616 = vsub.f32 1.0, %v615
    %v617 = vmul.f32 %v614, %v616
    %v618 = vadd.f32 %v614, %v617
    %vm619 = vweird.f32 %v610
    %vm620 = vweird.f32 %v614
    %vm621 = vmor %vm619, %vm620
    %v622 = vsel %vm621, %v614, %v618
    %v623 = vand.u32 2147483647, %v610
    %vm624 = vcmp.eq.f32.partialorder %v623, 8.507059e+37
    %v625 = vand.u32 %v610, 2147483648
    %v626 = vor.u32 1.1754944e-38, %v625
    %v627 = vsel %vm624, %v626, %v622
    %v628 = vmul.f32 %v605, %v627
    %v629 = vrcp.pop %v613
    %v630 = vmul.f32 %v613, %v629
    %v631 = vsub.f32 1.0, %v630
    %v632 = vmul.f32 %v629, %v631
    %v633 = vadd.f32 %v629, %v632
    %vm634 = vweird.f32 %v613
    %vm635 = vweird.f32 %v629
    %vm636 = vmor %vm634, %vm635
    %v637 = vsel %vm636, %v629, %v633
    %v638 = vand.u32 2147483647, %v613
    %vm639 = vcmp.eq.f32.partialorder %v638, 8.507059e+37
    %v640 = vand.u32 %v613, 2147483648
    %v641 = vor.u32 1.1754944e-38, %v640
    %v642 = vsel %vm639, %v641, %v637
    %v643 = vmul.f32 %v607, %v642
    %644 = vrot.lane.b32.xlu0 %v245, 112
    %v645 = vpop.permute.xlu0 %644
    %646 = vrot.lane.b32.xlu0 %v248, 112
    %v647 = vpop.permute.xlu0 %646
    %v650 = vsel %vm288, %v628, 0
    %v653 = vsel %vm288, %v643, 0
    %v655 = vsel %vm344, %v647, 0
    %657 = vmatpush.msra.mxu0 0.0
    %658 = vmatpush.msra.mxu0 0.0
    %659 = vmatpush.msra.mxu0 0.0
    %660 = vmatpush.msra.mxu0 0.0
    %661 = vmatpush.msra.mxu0 0.0
    %662 = vmatpush.msra.mxu0 0.0
    %663 = vmatpush.msra.mxu0 0.0
    %664 = vmatpush.msra.mxu0 0.0
    %665 = vmatpush.msra.mxu0 0.0
    %666 = vmatpush.msra.mxu0 0.0
    %667 = vmatpush.msra.mxu0 0.0
    %668 = vmatpush.msra.mxu0 0.0
    %669 = vmatpush.msra.mxu0 0.0
    %670 = vmatpush.msra.mxu0 0.0
    %671 = vmatpush.msra.mxu0 %v655
    %672 = vmatpush.msra.mxu0 %v645
    %673 = vmatmul.f32.gmra.mxu0 %v650
    %v674 = vpop.f32.mrf.mxu0
    %v675 = vadd.f32 0.0, %v674
    %676 = vmatmul.f32.gmra.mxu0 %v653
    %v677 = vpop.f32.mrf.mxu0
    %v678 = vadd.f32 0.0, %v677
    %679 = vdwg.mxu0
    %v681 = vsel %vm250, %v675, 0
    %v684 = vsel %vm250, %v678, 0
    %686 = vmatpush.msra.mxu0 0.0
    %687 = vmatpush.msra.mxu0 0.0
    %688 = vmatpush.msra.mxu0 0.0
    %689 = vmatpush.msra.mxu0 0.0
    %690 = vmatpush.msra.mxu0 0.0
    %691 = vmatpush.msra.mxu0 0.0
    %692 = vmatpush.msra.mxu0 0.0
    %693 = vmatpush.msra.mxu0 0.0
    %694 = vmatpush.msra.mxu0 0.0
    %695 = vmatpush.msra.mxu0 0.0
    %696 = vmatpush.msra.mxu0 0.0
    %697 = vmatpush.msra.mxu0 0.0
    %698 = vmatpush.msra.mxu0 0.0
    %699 = vmatpush.msra.mxu0 0.0
    %700 = vmatpush.msra.mxu0 0.0
    %701 = vmatpush.msra.mxu0 %v134
    %702 = vmatmul.f32.gmra.mxu0 %v681
    %v703 = vpop.f32.mrf.mxu0
    %v704 = vadd.f32 0.0, %v703
    %705 = vmatmul.f32.gmra.mxu0 %v684
    %v706 = vpop.f32.mrf.mxu0
    %v707 = vadd.f32 0.0, %v706
    %708 = vdwg.mxu0
    %v709 = vadd.f32 %v550, %v704
    %v710 = vadd.f32 %v553, %v707
    %711 = vrot.lane.b32.xlu0 %v165, 104
    %v712 = vpop.permute.xlu0 %711
    %713 = vrot.lane.b32.xlu0 %v168, 104
    %v714 = vpop.permute.xlu0 %713
    %715 = vrot.lane.b32.xlu0 %v207, 104
    %v716 = vpop.permute.xlu0 %715
    %717 = vrot.lane.b32.xlu0 %v210, 104
    %v718 = vpop.permute.xlu0 %717
    %v719 = vsel %vm250, %v712, 0
    %v721 = vsel %vm250, %v714, 0
    %v723 = vsel %vm250, %v716, 0
    %v725 = vsel %vm250, %v718, 0
    %727 = vmatpush.xpose.msra.mxu0 0.0
    %728 = vmatpush.xpose.msra.mxu0 0.0
    %729 = vmatpush.xpose.msra.mxu0 0.0
    %730 = vmatpush.xpose.msra.mxu0 0.0
    %731 = vmatpush.xpose.msra.mxu0 0.0
    %732 = vmatpush.xpose.msra.mxu0 0.0
    %733 = vmatpush.xpose.msra.mxu0 0.0
    %734 = vmatpush.xpose.msra.mxu0 0.0
    %735 = vmatpush.xpose.msra.mxu0 0.0
    %736 = vmatpush.xpose.msra.mxu0 0.0
    %737 = vmatpush.xpose.msra.mxu0 0.0
    %738 = vmatpush.xpose.msra.mxu0 0.0
    %739 = vmatpush.xpose.msra.mxu0 0.0
    %740 = vmatpush.xpose.msra.mxu0 0.0
    %741 = vmatpush.xpose.msra.mxu0 %v725
    %742 = vmatpush.xpose.msra.mxu0 %v723
    %743 = vmatmul.f32.gmra.mxu0 %v719
    %v744 = vpop.f32.mrf.mxu0
    %v745 = vadd.f32 0.0, %v744
    %746 = vmatmul.f32.gmra.mxu0 %v721
    %v747 = vpop.f32.mrf.mxu0
    %v748 = vadd.f32 0.0, %v747
    %749 = vdwg.mxu0
    %v750 = vmul.f32 %v745, 0.35355338
    %v751 = vmul.f32 %v748, 0.35355338
    %v752 = vsel %vm288, %v750, -inf
    %753 = vmax.xlane.f32.xlu0 %v752
    %v754 = vpop.xlane.xlu0 %753
    %v755 = vsel %vm292, %v751, -inf
    %756 = vmax.xlane.f32.xlu0 %v755
    %v757 = vpop.xlane.xlu0 %756
    %v758 = vsub.f32 %v750, %v754
    %v759 = vsub.f32 %v751, %v757
    %v760 = vmul.f32 %v758, 1.442695
    %v761 = vpow.pop %v760
    %v762 = vmul.f32 %v759, 1.442695
    %v763 = vpow.pop %v762
    %v764 = vsel %vm288, %v761, 0.0
    %765 = vadd.xlane.f32.xlu0 %v764
    %v766 = vpop.xlane.xlu0 %765
    %v767 = vsel %vm292, %v763, 0.0
    %768 = vadd.xlane.f32.xlu0 %v767
    %v769 = vpop.xlane.xlu0 %768
    %v770 = vrcp.pop %v766
    %v771 = vmul.f32 %v766, %v770
    %v772 = vsub.f32 1.0, %v771
    %v773 = vmul.f32 %v770, %v772
    %v774 = vadd.f32 %v770, %v773
    %vm775 = vweird.f32 %v766
    %vm776 = vweird.f32 %v770
    %vm777 = vmor %vm775, %vm776
    %v778 = vsel %vm777, %v770, %v774
    %v779 = vand.u32 2147483647, %v766
    %vm780 = vcmp.eq.f32.partialorder %v779, 8.507059e+37
    %v781 = vand.u32 %v766, 2147483648
    %v782 = vor.u32 1.1754944e-38, %v781
    %v783 = vsel %vm780, %v782, %v778
    %v784 = vmul.f32 %v761, %v783
    %v785 = vrcp.pop %v769
    %v786 = vmul.f32 %v769, %v785
    %v787 = vsub.f32 1.0, %v786
    %v788 = vmul.f32 %v785, %v787
    %v789 = vadd.f32 %v785, %v788
    %vm790 = vweird.f32 %v769
    %vm791 = vweird.f32 %v785
    %vm792 = vmor %vm790, %vm791
    %v793 = vsel %vm792, %v785, %v789
    %v794 = vand.u32 2147483647, %v769
    %vm795 = vcmp.eq.f32.partialorder %v794, 8.507059e+37
    %v796 = vand.u32 %v769, 2147483648
    %v797 = vor.u32 1.1754944e-38, %v796
    %v798 = vsel %vm795, %v797, %v793
    %v799 = vmul.f32 %v763, %v798
    %800 = vrot.lane.b32.xlu0 %v245, 104
    %v801 = vpop.permute.xlu0 %800
    %802 = vrot.lane.b32.xlu0 %v248, 104
    %v803 = vpop.permute.xlu0 %802
    %v806 = vsel %vm288, %v784, 0
    %v809 = vsel %vm288, %v799, 0
    %v811 = vsel %vm344, %v803, 0
    %813 = vmatpush.msra.mxu0 0.0
    %814 = vmatpush.msra.mxu0 0.0
    %815 = vmatpush.msra.mxu0 0.0
    %816 = vmatpush.msra.mxu0 0.0
    %817 = vmatpush.msra.mxu0 0.0
    %818 = vmatpush.msra.mxu0 0.0
    %819 = vmatpush.msra.mxu0 0.0
    %820 = vmatpush.msra.mxu0 0.0
    %821 = vmatpush.msra.mxu0 0.0
    %822 = vmatpush.msra.mxu0 0.0
    %823 = vmatpush.msra.mxu0 0.0
    %824 = vmatpush.msra.mxu0 0.0
    %825 = vmatpush.msra.mxu0 0.0
    %826 = vmatpush.msra.mxu0 0.0
    %827 = vmatpush.msra.mxu0 %v811
    %828 = vmatpush.msra.mxu0 %v801
    %829 = vmatmul.f32.gmra.mxu0 %v806
    %v830 = vpop.f32.mrf.mxu0
    %v831 = vadd.f32 0.0, %v830
    %832 = vmatmul.f32.gmra.mxu0 %v809
    %v833 = vpop.f32.mrf.mxu0
    %v834 = vadd.f32 0.0, %v833
    %835 = vdwg.mxu0
    %v837 = vsel %vm250, %v831, 0
    %v840 = vsel %vm250, %v834, 0
    %842 = vmatpush.msra.mxu0 0.0
    %843 = vmatpush.msra.mxu0 0.0
    %844 = vmatpush.msra.mxu0 0.0
    %845 = vmatpush.msra.mxu0 0.0
    %846 = vmatpush.msra.mxu0 0.0
    %847 = vmatpush.msra.mxu0 0.0
    %848 = vmatpush.msra.mxu0 0.0
    %849 = vmatpush.msra.mxu0 0.0
    %850 = vmatpush.msra.mxu0 0.0
    %851 = vmatpush.msra.mxu0 0.0
    %852 = vmatpush.msra.mxu0 0.0
    %853 = vmatpush.msra.mxu0 0.0
    %854 = vmatpush.msra.mxu0 0.0
    %855 = vmatpush.msra.mxu0 0.0
    %856 = vmatpush.msra.mxu0 0.0
    %857 = vmatpush.msra.mxu0 %v135
    %858 = vmatmul.f32.gmra.mxu0 %v837
    %v859 = vpop.f32.mrf.mxu0
    %v860 = vadd.f32 0.0, %v859
    %861 = vmatmul.f32.gmra.mxu0 %v840
    %v862 = vpop.f32.mrf.mxu0
    %v863 = vadd.f32 0.0, %v862
    %864 = vdwg.mxu0
    %v865 = vadd.f32 %v709, %v860
    %v866 = vadd.f32 %v710, %v863
    %v868 = vperm.slane %v136, 0
    %v870 = vadd.f32 %v865, %v868
    %v871 = vadd.f32 %v866, %v868
    %v872 = vadd.f32 %v120, %v870
    %v873 = vadd.f32 %v123, %v871
    %v874 = vsel %vm140, %v872, 0.0
    %875 = vadd.xlane.f32.xlu0 %v874
    %v876 = vpop.xlane.xlu0 %875
    %vm877 = vcmask 253952
    %v878 = vsel %vm877, %v873, 0.0
    %879 = vadd.xlane.f32.xlu0 %v878
    %v880 = vpop.xlane.xlu0 %879
    %v881 = vrcp.pop 32.0
    %v882 = vmul.f32 32.0, %v881
    %v883 = vsub.f32 1.0, %v882
    %v884 = vmul.f32 %v881, %v883
    %v885 = vadd.f32 %v881, %v884
    %vm886 = vweird.f32 %v881
    %v887 = vsel %vm886, %v881, %v885
    %v888 = vmul.f32 %v876, %v887
    %v889 = vmul.f32 %v880, %v887
    %v890 = vsub.f32 %v872, %v888
    %v891 = vsub.f32 %v873, %v889
    %v892 = vmul.f32 %v890, %v890
    %v893 = vmul.f32 %v891, %v891
    %v894 = vsel %vm140, %v892, 0.0
    %895 = vadd.xlane.f32.xlu0 %v894
    %v896 = vpop.xlane.xlu0 %895
    %v897 = vsel %vm877, %v893, 0.0
    %898 = vadd.xlane.f32.xlu0 %v897
    %v899 = vpop.xlane.xlu0 %898
    %v900 = vmul.f32 %v896, %v887
    %v901 = vmul.f32 %v899, %v887
    %v902 = vadd.f32 %v900, 1e-05
    %v903 = vadd.f32 %v901, 1e-05
    %v904 = vrsqrt.pop %v902
    %v905 = vmul.f32 %v904, %v902
    %v906 = vmul.f32 %v905, %v904
    %v907 = vmul.f32 0.5, %v906
    %v908 = vsub.f32 1.5, %v907
    %v909 = vmul.f32 %v904, %v908
    %vm910 = vweird.f32 %v902
    %vm911 = vweird.f32 %v904
    %vm912 = vmor %vm910, %vm911
    %v913 = vsel %vm912, %v904, %v909
    %v914 = vrsqrt.pop %v903
    %v915 = vmul.f32 %v914, %v903
    %v916 = vmul.f32 %v915, %v914
    %v917 = vmul.f32 0.5, %v916
    %v918 = vsub.f32 1.5, %v917
    %v919 = vmul.f32 %v914, %v918
    %vm920 = vweird.f32 %v903
    %vm921 = vweird.f32 %v914
    %vm922 = vmor %vm920, %vm921
    %v923 = vsel %vm922, %v914, %v919
    %v924 = vmul.f32 %v890, %v913
    %v925 = vmul.f32 %v891, %v923
    %v926 = vperm.slane %v125, 0
    %v927 = vmul.f32 %v924, %v926
    %v928 = vmul.f32 %v925, %v926
    %v929 = vperm.slane %v126, 0
    %v930 = vadd.f32 %v927, %v929
    %v931 = vadd.f32 %v928, %v929
    %v932 = vld [vmem:[#allocation6] sm:$0xff]
    %v933 = vld [vmem:[#allocation6 + $0x8] sm:$0xff]
    %v934 = vld [vmem:[#allocation6 + $0x10] sm:$0xff]
    %v935 = vld [vmem:[#allocation6 + $0x18] sm:$0xff]
    %v936 = vld [vmem:[%s7] sm:$0x1]
    %v937 = vld [vmem:[%s8] sm:$0xff]
    %v938 = vld [vmem:[%s8 + $0x8] sm:$0xff]
    %v939 = vld [vmem:[%s8 + $0x10] sm:$0xff]
    %v940 = vld [vmem:[%s8 + $0x18] sm:$0xff]
    %v941 = vld [vmem:[%s8 + $0x20] sm:$0xff]
    %v942 = vld [vmem:[%s8 + $0x28] sm:$0xff]
    %v943 = vld [vmem:[%s8 + $0x30] sm:$0xff]
    %v944 = vld [vmem:[%s8 + $0x38] sm:$0xff]
    %v945 = vld [vmem:[%s9] sm:$0x1]
    %v947 = vperm.slane %v936, 0
    %v950 = vsel %vm140, %v930, 0
    %v953 = vsel %vm140, %v931, 0
    %955 = vmatpush.msra.mxu0 0.0
    %956 = vmatpush.msra.mxu0 0.0
    %957 = vmatpush.msra.mxu0 0.0
    %958 = vmatpush.msra.mxu0 0.0
    %959 = vmatpush.msra.mxu0 0.0
    %960 = vmatpush.msra.mxu0 0.0
    %961 = vmatpush.msra.mxu0 0.0
    %962 = vmatpush.msra.mxu0 0.0
    %963 = vmatpush.msra.mxu0 0.0
    %964 = vmatpush.msra.mxu0 0.0
    %965 = vmatpush.msra.mxu0 0.0
    %966 = vmatpush.msra.mxu0 0.0
    %967 = vmatpush.msra.mxu0 %v935
    %968 = vmatpush.msra.mxu0 %v934
    %969 = vmatpush.msra.mxu0 %v933
    %970 = vmatpush.msra.mxu0 %v932
    %971 = vmatmul.f32.gmra.mxu0 %v950
    %v972 = vpop.f32.mrf.mxu0
    %v973 = vadd.f32 %v947, %v972
    %974 = vmatmul.f32.gmra.mxu0 %v953
    %v975 = vpop.f32.mrf.mxu0
    %v976 = vadd.f32 %v947, %v975
    %977 = vdwg.mxu0
    %v978 = vmax.f32 %v973, 0.0
    %v979 = vmax.f32 %v976, 0.0
    %v981 = vperm.slane %v945, 0
    %vm983 = vcmask 523264
    %v985 = vsel %vm983, %v978, 0
    %v988 = vsel %vm983, %v979, 0
    %990 = vmatpush.msra.mxu0 0.0
    %991 = vmatpush.msra.mxu0 0.0
    %992 = vmatpush.msra.mxu0 0.0
    %993 = vmatpush.msra.mxu0 0.0
    %994 = vmatpush.msra.mxu0 0.0
    %995 = vmatpush.msra.mxu0 0.0
    %996 = vmatpush.msra.mxu0 0.0
    %997 = vmatpush.msra.mxu0 0.0
    %998 = vmatpush.msra.mxu0 %v944
    %999 = vmatpush.msra.mxu0 %v943
    %1000 = vmatpush.msra.mxu0 %v942
    %1001 = vmatpush.msra.mxu0 %v941
    %1002 = vmatpush.msra.mxu0 %v940
    %1003 = vmatpush.msra.mxu0 %v939
    %1004 = vmatpush.msra.mxu0 %v938
    %1005 = vmatpush.msra.mxu0 %v937
    %1006 = vmatmul.f32.gmra.mxu0 %v985
    %v1007 = vpop.f32.mrf.mxu0
    %v1008 = vadd.f32 %v981, %v1007
    %1009 = vmatmul.f32.gmra.mxu0 %v988
    %v1010 = vpop.f32.mrf.mxu0
    %v1011 = vadd.f32 %v981, %v1010
    %1012 = vdwg.mxu0
    %v1013 = vadd.f32 %v930, %v1008
    %v1014 = vadd.f32 %v931, %v1011
    %v1015 = vsel %vm140, %v1013, 0.0
    %1016 = vadd.xlane.f32.xlu0 %v1015
    %v1017 = vpop.xlane.xlu0 %1016
    %v1018 = vsel %vm877, %v1014, 0.0
    %1019 = vadd.xlane.f32.xlu0 %v1018
    %v1020 = vpop.xlane.xlu0 %1019
    %v1021 = vmul.f32 %v1017, %v887
    %v1022 = vmul.f32 %v1020, %v887
    %v1023 = vsub.f32 %v1013, %v1021
    %v1024 = vsub.f32 %v1014, %v1022
    %v1025 = vmul.f32 %v1023, %v1023
    %v1026 = vmul.f32 %v1024, %v1024
    %v1027 = vsel %vm140, %v1025, 0.0
    %1028 = vadd.xlane.f32.xlu0 %v1027
    %v1029 = vpop.xlane.xlu0 %1028
    %v1030 = vsel %vm877, %v1026, 0.0
    %1031 = vadd.xlane.f32.xlu0 %v1030
    %v1032 = vpop.xlane.xlu0 %1031
    %v1033 = vmul.f32 %v1029, %v887
    %v1034 = vmul.f32 %v1032, %v887
    %v1035 = vadd.f32 %v1033, 1e-05
    %v1036 = vadd.f32 %v1034, 1e-05
    %v1037 = vrsqrt.pop %v1035
    %v1038 = vmul.f32 %v1037, %v1035
    %v1039 = vmul.f32 %v1038, %v1037
    %v1040 = vmul.f32 0.5, %v1039
    %v1041 = vsub.f32 1.5, %v1040
    %v1042 = vmul.f32 %v1037, %v1041
    %vm1043 = vweird.f32 %v1035
    %vm1044 = vweird.f32 %v1037
    %vm1045 = vmor %vm1043, %vm1044
    %v1046 = vsel %vm1045, %v1037, %v1042
    %v1047 = vrsqrt.pop %v1036
    %v1048 = vmul.f32 %v1047, %v1036
    %v1049 = vmul.f32 %v1048, %v1047
    %v1050 = vmul.f32 0.5, %v1049
    %v1051 = vsub.f32 1.5, %v1050
    %v1052 = vmul.f32 %v1047, %v1051
    %vm1053 = vweird.f32 %v1036
    %vm1054 = vweird.f32 %v1047
    %vm1055 = vmor %vm1053, %vm1054
    %v1056 = vsel %vm1055, %v1047, %v1052
    %v1057 = vmul.f32 %v1023, %v1046
    %v1058 = vmul.f32 %v1024, %v1056
    %v1059 = vperm.slane %v125, 1
    %v1060 = vmul.f32 %v1057, %v1059
    %v1061 = vmul.f32 %v1058, %v1059
    %v1062 = vperm.slane %v126, 1
    %v1063 = vadd.f32 %v1060, %v1062
    %v1064 = vadd.f32 %v1061, %v1062
    %1065 = vst.msk [vmem:[%s12] sm:$0xff] %vm140, %v1063
    %1066 = vst.msk [vmem:[%s12 + $0x8] sm:$0x1] %vm877, %v1064
    // Predicated region
    $region62: #{actor_core.1} parent=1 // pred_check
      _
    $region63: #{actor_core.1} parent=1 // pred_check_branch
      %1068 = sbr.rel (0) target = $region65
    $region64: #{actor_core.1} parent=1 // pred_region
      _
    $region65: #{actor_core.1} parent=1 // pred_fallthru
      _
    // Predicated region
    $region66: #{actor_core.1} parent=1 // pred_check
      _
    $region67: #{actor_core.1} parent=1 // pred_check_branch
      %1070 = sbr.rel (0) target = $region69
    $region68: #{actor_core.1} parent=1 // pred_region
      _
    $region69: #{actor_core.1} parent=1 // pred_fallthru
      _
    %1071 = vsyncpa [#allocation3], 1
    %1072 = vsyncpa [#allocation5], 1

// kernel: body.12
$region0: #{body.12}
  #allocation0 [shape = 'u32[]', space=smem, size = 0x4, offset = 0x4, fixed_abs, tag = 'smem constant byte address 0x4 - core index']
  #allocation1 [shape = 'u32[72,128]{1,0:T(1,128)}', space=vmem, size = 0x9000, scoped, tag = 'internal scratch']
  %s0 = inlined_call_operand.vmem [shape: f32[9,32], index: 0, kind: input, shape index: {}]
  %s1 = inlined_call_operand.vmem [shape: f32[9,32], index: 1, kind: input, shape index: {}]
  %s2 = inlined_call_operand.vmem [shape: f32[1,9], index: 2, kind: input, shape index: {}]
  %s3 = inlined_call_operand.vmem [shape: f32[9,1], index: 3, kind: input, shape index: {}]
  %s4 = inlined_call_operand.vmem [shape: f32[32,96], index: 4, kind: input, shape index: {}]
  %s5 = inlined_call_operand.vmem [shape: f32[1,96], index: 5, kind: input, shape index: {}]
  %s6 = inlined_call_operand.vmem [shape: f32[32,32], index: 6, kind: input, shape index: {}]
  %s7 = inlined_call_operand.vmem [shape: f32[1,32], index: 7, kind: input, shape index: {}]
  %s8 = inlined_call_operand.vmem [shape: f32[32,96], index: 8, kind: input, shape index: {}]
  %s9 = inlined_call_operand.vmem [shape: f32[1,96], index: 9, kind: input, shape index: {}]
  %s10 = inlined_call_operand.vmem [shape: f32[32,32], index: 10, kind: input, shape index: {}]
  %s11 = inlined_call_operand.vmem [shape: f32[1,32], index: 11, kind: input, shape index: {}]
  %s12 = inlined_call_operand.vmem [shape: f32[32,64], index: 12, kind: input, shape index: {}]
  %s13 = inlined_call_operand.vmem [shape: f32[1,64], index: 13, kind: input, shape index: {}]
  %s14 = inlined_call_operand.vmem [shape: f32[64,32], index: 14, kind: input, shape index: {}]
  %s15 = inlined_call_operand.vmem [shape: f32[1,32], index: 15, kind: input, shape index: {}]
  %s16 = inlined_call_operand.vmem [shape: f32[3,32], index: 16, kind: input, shape index: {}]
  %s17 = inlined_call_operand.vmem [shape: f32[3,32], index: 17, kind: input, shape index: {}]
  %s18 = inlined_call_operand.vmem [shape: f32[32,32], index: 18, kind: input, shape index: {}]
  %s19 = inlined_call_operand.vmem [shape: f32[32,32], index: 19, kind: input, shape index: {}]
  %s20 = inlined_call_operand.vmem [shape: f32[1,32], index: 20, kind: input, shape index: {}]
  %s21 = inlined_call_operand.vmem [shape: f32[1,9], index: 21, kind: output, shape index: {}]
  %s22 = sld [smem:[#allocation0]]
  $region94: #{body.12} parent=0
    _
  %s24 = ssub.s32 1, %s22
  %s25 = scalar_select 0, %s24, %s22
  // Predicated region
  $region2: #{body.12} parent=0 // pred_check
    _
  $region3: #{body.12} parent=0 // pred_check_branch
    %27 = sbr.rel (0) target = $region5
  $region4: #{body.12} parent=0 // pred_region
    _
  $region5: #{body.12} parent=0 // pred_fallthru
    _
  // Predicated region
  $region6: #{body.12} parent=0 // pred_check
    _
  $region7: #{body.12} parent=0 // pred_check_branch
    %29 = sbr.rel (0) target = $region9
  $region8: #{body.12} parent=0 // pred_region
    _
  $region9: #{body.12} parent=0 // pred_fallthru
    _
  // Predicated region
  $region10: #{body.12} parent=0 // pred_check
    _
  $region11: #{body.12} parent=0 // pred_check_branch
    %31 = sbr.rel (0) target = $region13
  $region12: #{body.12} parent=0 // pred_region
    _
  $region13: #{body.12} parent=0 // pred_fallthru
    _
  // Predicated region
  $region14: #{body.12} parent=0 // pred_check
    _
  $region15: #{body.12} parent=0 // pred_check_branch
    %33 = sbr.rel (0) target = $region17
  $region16: #{body.12} parent=0 // pred_region
    _
  $region17: #{body.12} parent=0 // pred_fallthru
    _
  // Predicated region
  $region18: #{body.12} parent=0 // pred_check
    _
  $region19: #{body.12} parent=0 // pred_check_branch
    %35 = sbr.rel (0) target = $region21
  $region20: #{body.12} parent=0 // pred_region
    _
  $region21: #{body.12} parent=0 // pred_fallthru
    _
  // Predicated region
  $region22: #{body.12} parent=0 // pred_check
    _
  $region23: #{body.12} parent=0 // pred_check_branch
    %37 = sbr.rel (0) target = $region25
  $region24: #{body.12} parent=0 // pred_region
    _
  $region25: #{body.12} parent=0 // pred_fallthru
    _
  // Predicated region
  $region26: #{body.12} parent=0 // pred_check
    _
  $region27: #{body.12} parent=0 // pred_check_branch
    %39 = sbr.rel (0) target = $region29
  $region28: #{body.12} parent=0 // pred_region
    _
  $region29: #{body.12} parent=0 // pred_fallthru
    _
  // Predicated region
  $region30: #{body.12} parent=0 // pred_check
    _
  $region31: #{body.12} parent=0 // pred_check_branch
    %41 = sbr.rel (0) target = $region33
  $region32: #{body.12} parent=0 // pred_region
    _
  $region33: #{body.12} parent=0 // pred_fallthru
    _
  // Predicated region
  $region34: #{body.12} parent=0 // pred_check
    _
  $region35: #{body.12} parent=0 // pred_check_branch
    %43 = sbr.rel (0) target = $region37
  $region36: #{body.12} parent=0 // pred_region
    _
  $region37: #{body.12} parent=0 // pred_fallthru
    _
  // Predicated region
  $region38: #{body.12} parent=0 // pred_check
    _
  $region39: #{body.12} parent=0 // pred_check_branch
    %45 = sbr.rel (0) target = $region41
  $region40: #{body.12} parent=0 // pred_region
    _
  $region41: #{body.12} parent=0 // pred_fallthru
    _
  // Predicated region
  $region42: #{body.12} parent=0 // pred_check
    _
  $region43: #{body.12} parent=0 // pred_check_branch
    %47 = sbr.rel (0) target = $region45
  $region44: #{body.12} parent=0 // pred_region
    _
  $region45: #{body.12} parent=0 // pred_fallthru
    _
  // Predicated region
  $region46: #{body.12} parent=0 // pred_check
    _
  $region47: #{body.12} parent=0 // pred_check_branch
    %49 = sbr.rel (0) target = $region49
  $region48: #{body.12} parent=0 // pred_region
    _
  $region49: #{body.12} parent=0 // pred_fallthru
    _
  // Predicated region
  $region50: #{body.12} parent=0 // pred_check
    _
  $region51: #{body.12} parent=0 // pred_check_branch
    %51 = sbr.rel (0) target = $region53
  $region52: #{body.12} parent=0 // pred_region
    _
  $region53: #{body.12} parent=0 // pred_fallthru
    _
  // Predicated region
  $region54: #{body.12} parent=0 // pred_check
    _
  $region55: #{body.12} parent=0 // pred_check_branch
    %53 = sbr.rel (0) target = $region57
  $region56: #{body.12} parent=0 // pred_region
    _
  $region57: #{body.12} parent=0 // pred_fallthru
    _
  // Predicated region
  $region58: #{body.12} parent=0 // pred_check
    _
  $region59: #{body.12} parent=0 // pred_check_branch
    %55 = sbr.rel (0) target = $region61
  $region60: #{body.12} parent=0 // pred_region
    _
  $region61: #{body.12} parent=0 // pred_fallthru
    _
  // Predicated region
  $region62: #{body.12} parent=0 // pred_check
    _
  $region63: #{body.12} parent=0 // pred_check_branch
    %57 = sbr.rel (0) target = $region65
  $region64: #{body.12} parent=0 // pred_region
    _
  $region65: #{body.12} parent=0 // pred_fallthru
    _
  // Predicated region
  $region66: #{body.12} parent=0 // pred_check
    _
  $region67: #{body.12} parent=0 // pred_check_branch
    %59 = sbr.rel (0) target = $region69
  $region68: #{body.12} parent=0 // pred_region
    _
  $region69: #{body.12} parent=0 // pred_fallthru
    _
  // Predicated region
  $region70: #{body.12} parent=0 // pred_check
    _
  $region71: #{body.12} parent=0 // pred_check_branch
    %61 = sbr.rel (0) target = $region73
  $region72: #{body.12} parent=0 // pred_region
    _
  $region73: #{body.12} parent=0 // pred_fallthru
    _
  // Predicated region
  $region74: #{body.12} parent=0 // pred_check
    _
  $region75: #{body.12} parent=0 // pred_check_branch
    %63 = sbr.rel (0) target = $region77
  $region76: #{body.12} parent=0 // pred_region
    _
  $region77: #{body.12} parent=0 // pred_fallthru
    _
  // Predicated region
  $region78: #{body.12} parent=0 // pred_check
    _
  $region79: #{body.12} parent=0 // pred_check_branch
    %65 = sbr.rel (0) target = $region81
  $region80: #{body.12} parent=0 // pred_region
    _
  $region81: #{body.12} parent=0 // pred_fallthru
    _
  // Predicated region
  $region82: #{body.12} parent=0 // pred_check
    _
  $region83: #{body.12} parent=0 // pred_check_branch
    %67 = sbr.rel (0) target = $region85
  $region84: #{body.12} parent=0 // pred_region
    _
  $region85: #{body.12} parent=0 // pred_fallthru
    _
  %v68 = vld [vmem:[%s0] sm:$0xff]
  %v69 = vld [vmem:[%s0 + $0x8] sm:$0x1]
  %v70 = vld [vmem:[%s1] sm:$0xff]
  %v71 = vld [vmem:[%s1 + $0x8] sm:$0x1]
  %v72 = vld [vmem:[%s2] sm:$0x1]
  %v73 = vld [vmem:[%s3] sm:$0xff]
  %v74 = vld [vmem:[%s3 + $0x8] sm:$0x1]
  %v75 = vld [vmem:[%s16] sm:$0x7]
  %v76 = vld [vmem:[%s17] sm:$0x7]
  %v77 = vld [vmem:[%s4] sm:$0xff]
  %v78 = vld [vmem:[%s4 + $0x8] sm:$0xff]
  %v79 = vld [vmem:[%s4 + $0x10] sm:$0xff]
  %v80 = vld [vmem:[%s4 + $0x18] sm:$0xff]
  %v81 = vld [vmem:[%s5] sm:$0x1]
  %v82 = vld [vmem:[%s6] sm:$0xff]
  %v83 = vld [vmem:[%s6 + $0x8] sm:$0xff]
  %v84 = vld [vmem:[%s6 + $0x10] sm:$0xff]
  %v85 = vld [vmem:[%s6 + $0x18] sm:$0xff]
  %v86 = vld [vmem:[%s7] sm:$0x1]
  %v88 = vperm.slane %v81, 0
  %vm90 = vcmask 261120
  %v92 = vsel %vm90, %v70, 0
  %v95 = vsel %vm90, %v71, 0
  %97 = vmatpush.msra.mxu0 0.0
  %98 = vmatpush.msra.mxu0 0.0
  %99 = vmatpush.msra.mxu0 0.0
  %100 = vmatpush.msra.mxu0 0.0
  %101 = vmatpush.msra.mxu0 0.0
  %102 = vmatpush.msra.mxu0 0.0
  %103 = vmatpush.msra.mxu0 0.0
  %104 = vmatpush.msra.mxu0 0.0
  %105 = vmatpush.msra.mxu0 0.0
  %106 = vmatpush.msra.mxu0 0.0
  %107 = vmatpush.msra.mxu0 0.0
  %108 = vmatpush.msra.mxu0 0.0
  %109 = vmatpush.msra.mxu0 %v80
  %110 = vmatpush.msra.mxu0 %v79
  %111 = vmatpush.msra.mxu0 %v78
  %112 = vmatpush.msra.mxu0 %v77
  %113 = vmatmul.f32.gmra.mxu0 %v92
  %v114 = vpop.f32.mrf.mxu0
  %v115 = vadd.f32 %v88, %v114
  %116 = vmatmul.f32.gmra.mxu0 %v95
  %v117 = vpop.f32.mrf.mxu0
  %v118 = vadd.f32 %v88, %v117
  %119 = vdwg.mxu0
  %124 = vrot.lane.b32.xlu0 %v77, 96
  %v125 = vpop.permute.xlu0 %124
  %126 = vrot.lane.b32.xlu0 %v78, 96
  %v127 = vpop.permute.xlu0 %126
  %128 = vrot.lane.b32.xlu0 %v79, 96
  %v129 = vpop.permute.xlu0 %128
  %130 = vrot.lane.b32.xlu0 %v80, 96
  %v131 = vpop.permute.xlu0 %130
  %136 = vrot.lane.b32.xlu0 %v88, 96
  %v137 = vpop.permute.xlu0 %136
  %139 = vmatpush.msra.mxu0 0.0
  %140 = vmatpush.msra.mxu0 0.0
  %141 = vmatpush.msra.mxu0 0.0
  %142 = vmatpush.msra.mxu0 0.0
  %143 = vmatpush.msra.mxu0 0.0
  %144 = vmatpush.msra.mxu0 0.0
  %145 = vmatpush.msra.mxu0 0.0
  %146 = vmatpush.msra.mxu0 0.0
  %147 = vmatpush.msra.mxu0 0.0
  %148 = vmatpush.msra.mxu0 0.0
  %149 = vmatpush.msra.mxu0 0.0
  %150 = vmatpush.msra.mxu0 0.0
  %151 = vmatpush.msra.mxu0 %v131
  %152 = vmatpush.msra.mxu0 %v129
  %153 = vmatpush.msra.mxu0 %v127
  %154 = vmatpush.msra.mxu0 %v125
  %155 = vmatmul.f32.gmra.mxu0 %v92
  %v156 = vpop.f32.mrf.mxu0
  %v157 = vadd.f32 %v137, %v156
  %158 = vmatmul.f32.gmra.mxu0 %v95
  %v159 = vpop.f32.mrf.mxu0
  %v160 = vadd.f32 %v137, %v159
  %161 = vdwg.mxu0
  %162 = vrot.lane.b32.xlu0 %v77, 64
  %v163 = vpop.permute.xlu0 %162
  %164 = vrot.lane.b32.xlu0 %v78, 64
  %v165 = vpop.permute.xlu0 %164
  %166 = vrot.lane.b32.xlu0 %v79, 64
  %v167 = vpop.permute.xlu0 %166
  %168 = vrot.lane.b32.xlu0 %v80, 64
  %v169 = vpop.permute.xlu0 %168
  %174 = vrot.lane.b32.xlu0 %v88, 64
  %v175 = vpop.permute.xlu0 %174
  %177 = vmatpush.msra.mxu0 0.0
  %178 = vmatpush.msra.mxu0 0.0
  %179 = vmatpush.msra.mxu0 0.0
  %180 = vmatpush.msra.mxu0 0.0
  %181 = vmatpush.msra.mxu0 0.0
  %182 = vmatpush.msra.mxu0 0.0
  %183 = vmatpush.msra.mxu0 0.0
  %184 = vmatpush.msra.mxu0 0.0
  %185 = vmatpush.msra.mxu0 0.0
  %186 = vmatpush.msra.mxu0 0.0
  %187 = vmatpush.msra.mxu0 0.0
  %188 = vmatpush.msra.mxu0 0.0
  %189 = vmatpush.msra.mxu0 %v169
  %190 = vmatpush.msra.mxu0 %v167
  %191 = vmatpush.msra.mxu0 %v165
  %192 = vmatpush.msra.mxu0 %v163
  %193 = vmatmul.f32.gmra.mxu0 %v92
  %v194 = vpop.f32.mrf.mxu0
  %v195 = vadd.f32 %v175, %v194
  %196 = vmatmul.f32.gmra.mxu0 %v95
  %v197 = vpop.f32.mrf.mxu0
  %v198 = vadd.f32 %v175, %v197
  %199 = vdwg.mxu0
  %vm200 = vcmask 64512
  %v202 = vsel %vm200, %v115, 0
  %v205 = vsel %vm200, %v118, 0
  %v208 = vsel %vm200, %v157, 0
  %v211 = vsel %vm200, %v160, 0
  %213 = vmatpush.xpose.msra.mxu0 0.0
  %214 = vmatpush.xpose.msra.mxu0 0.0
  %215 = vmatpush.xpose.msra.mxu0 0.0
  %216 = vmatpush.xpose.msra.mxu0 0.0
  %217 = vmatpush.xpose.msra.mxu0 0.0
  %218 = vmatpush.xpose.msra.mxu0 0.0
  %219 = vmatpush.xpose.msra.mxu0 0.0
  %220 = vmatpush.xpose.msra.mxu0 0.0
  %221 = vmatpush.xpose.msra.mxu0 0.0
  %222 = vmatpush.xpose.msra.mxu0 0.0
  %223 = vmatpush.xpose.msra.mxu0 0.0
  %224 = vmatpush.xpose.msra.mxu0 0.0
  %225 = vmatpush.xpose.msra.mxu0 0.0
  %226 = vmatpush.xpose.msra.mxu0 0.0
  %227 = vmatpush.xpose.msra.mxu0 %v211
  %228 = vmatpush.xpose.msra.mxu0 %v208
  %229 = vmatmul.f32.gmra.mxu0 %v202
  %v230 = vpop.f32.mrf.mxu0
  %v231 = vadd.f32 0.0, %v230
  %232 = vmatmul.f32.gmra.mxu0 %v205
  %v233 = vpop.f32.mrf.mxu0
  %v234 = vadd.f32 0.0, %v233
  %235 = vdwg.mxu0
  %v236 = vmul.f32 %v231, 0.35355338
  %v237 = vmul.f32 %v234, 0.35355338
  %v239 = vperm.slane %v72, 0
  %v241 = vadd.f32 %v236, %v239
  %v242 = vadd.f32 %v237, %v239
  %vm243 = vcmask 72704
  %v244 = vsel %vm243, %v241, -inf
  %245 = vmax.xlane.f32.xlu0 %v244
  %v246 = vpop.xlane.xlu0 %245
  %vm247 = vcmask 65536
  %v248 = vsel %vm247, %v242, -inf
  %249 = vmax.xlane.f32.xlu0 %v248
  %v250 = vpop.xlane.xlu0 %249
  %v251 = vsub.f32 %v241, %v246
  %v252 = vsub.f32 %v242, %v250
  %v253 = vmul.f32 %v251, 1.442695
  %v254 = vpow.pop %v253
  %v255 = vmul.f32 %v252, 1.442695
  %v256 = vpow.pop %v255
  %v257 = vsel %vm243, %v254, 0.0
  %258 = vadd.xlane.f32.xlu0 %v257
  %v259 = vpop.xlane.xlu0 %258
  %v260 = vsel %vm247, %v256, 0.0
  %261 = vadd.xlane.f32.xlu0 %v260
  %v262 = vpop.xlane.xlu0 %261
  %v263 = vrcp.pop %v259
  %v264 = vmul.f32 %v259, %v263
  %v265 = vsub.f32 1.0, %v264
  %v266 = vmul.f32 %v263, %v265
  %v267 = vadd.f32 %v263, %v266
  %vm268 = vweird.f32 %v259
  %vm269 = vweird.f32 %v263
  %vm270 = vmor %vm268, %vm269
  %v271 = vsel %vm270, %v263, %v267
  %v272 = vand.u32 2147483647, %v259
  %vm273 = vcmp.eq.f32.partialorder %v272, 8.507059e+37
  %v274 = vand.u32 %v259, 2147483648
  %v275 = vor.u32 1.1754944e-38, %v274
  %v276 = vsel %vm273, %v275, %v271
  %v277 = vmul.f32 %v254, %v276
  %v278 = vrcp.pop %v262
  %v279 = vmul.f32 %v262, %v278
  %v280 = vsub.f32 1.0, %v279
  %v281 = vmul.f32 %v278, %v280
  %v282 = vadd.f32 %v278, %v281
  %vm283 = vweird.f32 %v262
  %vm284 = vweird.f32 %v278
  %vm285 = vmor %vm283, %vm284
  %v286 = vsel %vm285, %v278, %v282
  %v287 = vand.u32 2147483647, %v262
  %vm288 = vcmp.eq.f32.partialorder %v287, 8.507059e+37
  %v289 = vand.u32 %v262, 2147483648
  %v290 = vor.u32 1.1754944e-38, %v289
  %v291 = vsel %vm288, %v290, %v286
  %v292 = vmul.f32 %v256, %v291
  %v294 = vsel %vm243, %v277, 0
  %v297 = vsel %vm243, %v292, 0
  %vm299 = vcmask 1040384
  %v301 = vsel %vm299, %v198, 0
  %303 = vmatpush.msra.mxu0 0.0
  %304 = vmatpush.msra.mxu0 0.0
  %305 = vmatpush.msra.mxu0 0.0
  %306 = vmatpush.msra.mxu0 0.0
  %307 = vmatpush.msra.mxu0 0.0
  %308 = vmatpush.msra.mxu0 0.0
  %309 = vmatpush.msra.mxu0 0.0
  %310 = vmatpush.msra.mxu0 0.0
  %311 = vmatpush.msra.mxu0 0.0
  %312 = vmatpush.msra.mxu0 0.0
  %313 = vmatpush.msra.mxu0 0.0
  %314 = vmatpush.msra.mxu0 0.0
  %315 = vmatpush.msra.mxu0 0.0
  %316 = vmatpush.msra.mxu0 0.0
  %317 = vmatpush.msra.mxu0 %v301
  %318 = vmatpush.msra.mxu0 %v195
  %319 = vmatmul.f32.gmra.mxu0 %v294
  %v320 = vpop.f32.mrf.mxu0
  %v321 = vadd.f32 0.0, %v320
  %322 = vmatmul.f32.gmra.mxu0 %v297
  %v323 = vpop.f32.mrf.mxu0
  %v324 = vadd.f32 0.0, %v323
  %325 = vdwg.mxu0
  %326 = vrot.lane.b32.xlu0 %v115, 120
  %v327 = vpop.permute.xlu0 %326
  %328 = vrot.lane.b32.xlu0 %v118, 120
  %v329 = vpop.permute.xlu0 %328
  %330 = vrot.lane.b32.xlu0 %v157, 120
  %v331 = vpop.permute.xlu0 %330
  %332 = vrot.lane.b32.xlu0 %v160, 120
  %v333 = vpop.permute.xlu0 %332
  %v334 = vsel %vm200, %v327, 0
  %v336 = vsel %vm200, %v329, 0
  %v338 = vsel %vm200, %v331, 0
  %v340 = vsel %vm200, %v333, 0
  %342 = vmatpush.xpose.msra.mxu0 0.0
  %343 = vmatpush.xpose.msra.mxu0 0.0
  %344 = vmatpush.xpose.msra.mxu0 0.0
  %345 = vmatpush.xpose.msra.mxu0 0.0
  %346 = vmatpush.xpose.msra.mxu0 0.0
  %347 = vmatpush.xpose.msra.mxu0 0.0
  %348 = vmatpush.xpose.msra.mxu0 0.0
  %349 = vmatpush.xpose.msra.mxu0 0.0
  %350 = vmatpush.xpose.msra.mxu0 0.0
  %351 = vmatpush.xpose.msra.mxu0 0.0
  %352 = vmatpush.xpose.msra.mxu0 0.0
  %353 = vmatpush.xpose.msra.mxu0 0.0
  %354 = vmatpush.xpose.msra.mxu0 0.0
  %355 = vmatpush.xpose.msra.mxu0 0.0
  %356 = vmatpush.xpose.msra.mxu0 %v340
  %357 = vmatpush.xpose.msra.mxu0 %v338
  %358 = vmatmul.f32.gmra.mxu0 %v334
  %v359 = vpop.f32.mrf.mxu0
  %v360 = vadd.f32 0.0, %v359
  %361 = vmatmul.f32.gmra.mxu0 %v336
  %v362 = vpop.f32.mrf.mxu0
  %v363 = vadd.f32 0.0, %v362
  %364 = vdwg.mxu0
  %v365 = vmul.f32 %v360, 0.35355338
  %v366 = vmul.f32 %v363, 0.35355338
  %v367 = vadd.f32 %v365, %v239
  %v368 = vadd.f32 %v366, %v239
  %v369 = vsel %vm243, %v367, -inf
  %370 = vmax.xlane.f32.xlu0 %v369
  %v371 = vpop.xlane.xlu0 %370
  %v372 = vsel %vm247, %v368, -inf
  %373 = vmax.xlane.f32.xlu0 %v372
  %v374 = vpop.xlane.xlu0 %373
  %v375 = vsub.f32 %v367, %v371
  %v376 = vsub.f32 %v368, %v374
  %v377 = vmul.f32 %v375, 1.442695
  %v378 = vpow.pop %v377
  %v379 = vmul.f32 %v376, 1.442695
  %v380 = vpow.pop %v379
  %v381 = vsel %vm243, %v378, 0.0
  %382 = vadd.xlane.f32.xlu0 %v381
  %v383 = vpop.xlane.xlu0 %382
  %v384 = vsel %vm247, %v380, 0.0
  %385 = vadd.xlane.f32.xlu0 %v384
  %v386 = vpop.xlane.xlu0 %385
  %v387 = vrcp.pop %v383
  %v388 = vmul.f32 %v383, %v387
  %v389 = vsub.f32 1.0, %v388
  %v390 = vmul.f32 %v387, %v389
  %v391 = vadd.f32 %v387, %v390
  %vm392 = vweird.f32 %v383
  %vm393 = vweird.f32 %v387
  %vm394 = vmor %vm392, %vm393
  %v395 = vsel %vm394, %v387, %v391
  %v396 = vand.u32 2147483647, %v383
  %vm397 = vcmp.eq.f32.partialorder %v396, 8.507059e+37
  %v398 = vand.u32 %v383, 2147483648
  %v399 = vor.u32 1.1754944e-38, %v398
  %v400 = vsel %vm397, %v399, %v395
  %v401 = vmul.f32 %v378, %v400
  %v402 = vrcp.pop %v386
  %v403 = vmul.f32 %v386, %v402
  %v404 = vsub.f32 1.0, %v403
  %v405 = vmul.f32 %v402, %v404
  %v406 = vadd.f32 %v402, %v405
  %vm407 = vweird.f32 %v386
  %vm408 = vweird.f32 %v402
  %vm409 = vmor %vm407, %vm408
  %v410 = vsel %vm409, %v402, %v406
  %v411 = vand.u32 2147483647, %v386
  %vm412 = vcmp.eq.f32.partialorder %v411, 8.507059e+37
  %v413 = vand.u32 %v386, 2147483648
  %v414 = vor.u32 1.1754944e-38, %v413
  %v415 = vsel %vm412, %v414, %v410
  %v416 = vmul.f32 %v380, %v415
  %418 = vrot.lane.b32.xlu0 %v195, 120
  %v419 = vpop.permute.xlu0 %418
  %420 = vrot.lane.b32.xlu0 %v198, 120
  %v421 = vpop.permute.xlu0 %420
  %v424 = vsel %vm243, %v401, 0
  %v427 = vsel %vm243, %v416, 0
  %v429 = vsel %vm299, %v421, 0
  %431 = vmatpush.msra.mxu0 0.0
  %432 = vmatpush.msra.mxu0 0.0
  %433 = vmatpush.msra.mxu0 0.0
  %434 = vmatpush.msra.mxu0 0.0
  %435 = vmatpush.msra.mxu0 0.0
  %436 = vmatpush.msra.mxu0 0.0
  %437 = vmatpush.msra.mxu0 0.0
  %438 = vmatpush.msra.mxu0 0.0
  %439 = vmatpush.msra.mxu0 0.0
  %440 = vmatpush.msra.mxu0 0.0
  %441 = vmatpush.msra.mxu0 0.0
  %442 = vmatpush.msra.mxu0 0.0
  %443 = vmatpush.msra.mxu0 0.0
  %444 = vmatpush.msra.mxu0 0.0
  %445 = vmatpush.msra.mxu0 %v429
  %446 = vmatpush.msra.mxu0 %v419
  %447 = vmatmul.f32.gmra.mxu0 %v424
  %v448 = vpop.f32.mrf.mxu0
  %v449 = vadd.f32 0.0, %v448
  %450 = vmatmul.f32.gmra.mxu0 %v427
  %v451 = vpop.f32.mrf.mxu0
  %v452 = vadd.f32 0.0, %v451
  %453 = vdwg.mxu0
  %v455 = vsel %vm200, %v449, 0
  %v458 = vsel %vm200, %v452, 0
  %460 = vmatpush.msra.mxu0 0.0
  %461 = vmatpush.msra.mxu0 0.0
  %462 = vmatpush.msra.mxu0 0.0
  %463 = vmatpush.msra.mxu0 0.0
  %464 = vmatpush.msra.mxu0 0.0
  %465 = vmatpush.msra.mxu0 0.0
  %466 = vmatpush.msra.mxu0 0.0
  %467 = vmatpush.msra.mxu0 0.0
  %468 = vmatpush.msra.mxu0 0.0
  %469 = vmatpush.msra.mxu0 0.0
  %470 = vmatpush.msra.mxu0 0.0
  %471 = vmatpush.msra.mxu0 0.0
  %472 = vmatpush.msra.mxu0 0.0
  %473 = vmatpush.msra.mxu0 0.0
  %474 = vmatpush.msra.mxu0 0.0
  %475 = vmatpush.msra.mxu0 %v83
  %476 = vmatmul.f32.gmra.mxu0 %v455
  %v477 = vpop.f32.mrf.mxu0
  %v478 = vadd.f32 0.0, %v477
  %479 = vmatmul.f32.gmra.mxu0 %v458
  %v480 = vpop.f32.mrf.mxu0
  %v481 = vadd.f32 0.0, %v480
  %482 = vdwg.mxu0
  %v484 = vsel %vm200, %v321, 0
  %v487 = vsel %vm200, %v324, 0
  %489 = vmatpush.msra.mxu0 0.0
  %490 = vmatpush.msra.mxu0 0.0
  %491 = vmatpush.msra.mxu0 0.0
  %492 = vmatpush.msra.mxu0 0.0
  %493 = vmatpush.msra.mxu0 0.0
  %494 = vmatpush.msra.mxu0 0.0
  %495 = vmatpush.msra.mxu0 0.0
  %496 = vmatpush.msra.mxu0 0.0
  %497 = vmatpush.msra.mxu0 0.0
  %498 = vmatpush.msra.mxu0 0.0
  %499 = vmatpush.msra.mxu0 0.0
  %500 = vmatpush.msra.mxu0 0.0
  %501 = vmatpush.msra.mxu0 0.0
  %502 = vmatpush.msra.mxu0 0.0
  %503 = vmatpush.msra.mxu0 0.0
  %504 = vmatpush.msra.mxu0 %v82
  %505 = vmatmul.f32.gmra.mxu0 %v484
  %v506 = vpop.f32.mrf.mxu0
  %v507 = vadd.f32 %v478, %v506
  %508 = vmatmul.f32.gmra.mxu0 %v487
  %v509 = vpop.f32.mrf.mxu0
  %v510 = vadd.f32 %v481, %v509
  %511 = vdwg.mxu0
  %512 = vrot.lane.b32.xlu0 %v115, 112
  %v513 = vpop.permute.xlu0 %512
  %514 = vrot.lane.b32.xlu0 %v118, 112
  %v515 = vpop.permute.xlu0 %514
  %516 = vrot.lane.b32.xlu0 %v157, 112
  %v517 = vpop.permute.xlu0 %516
  %518 = vrot.lane.b32.xlu0 %v160, 112
  %v519 = vpop.permute.xlu0 %518
  %v520 = vsel %vm200, %v513, 0
  %v522 = vsel %vm200, %v515, 0
  %v524 = vsel %vm200, %v517, 0
  %v526 = vsel %vm200, %v519, 0
  %528 = vmatpush.xpose.msra.mxu0 0.0
  %529 = vmatpush.xpose.msra.mxu0 0.0
  %530 = vmatpush.xpose.msra.mxu0 0.0
  %531 = vmatpush.xpose.msra.mxu0 0.0
  %532 = vmatpush.xpose.msra.mxu0 0.0
  %533 = vmatpush.xpose.msra.mxu0 0.0
  %534 = vmatpush.xpose.msra.mxu0 0.0
  %535 = vmatpush.xpose.msra.mxu0 0.0
  %536 = vmatpush.xpose.msra.mxu0 0.0
  %537 = vmatpush.xpose.msra.mxu0 0.0
  %538 = vmatpush.xpose.msra.mxu0 0.0
  %539 = vmatpush.xpose.msra.mxu0 0.0
  %540 = vmatpush.xpose.msra.mxu0 0.0
  %541 = vmatpush.xpose.msra.mxu0 0.0
  %542 = vmatpush.xpose.msra.mxu0 %v526
  %543 = vmatpush.xpose.msra.mxu0 %v524
  %544 = vmatmul.f32.gmra.mxu0 %v520
  %v545 = vpop.f32.mrf.mxu0
  %v546 = vadd.f32 0.0, %v545
  %547 = vmatmul.f32.gmra.mxu0 %v522
  %v548 = vpop.f32.mrf.mxu0
  %v549 = vadd.f32 0.0, %v548
  %550 = vdwg.mxu0
  %v551 = vmul.f32 %v546, 0.35355338
  %v552 = vmul.f32 %v549, 0.35355338
  %v553 = vadd.f32 %v551, %v239
  %v554 = vadd.f32 %v552, %v239
  %v555 = vsel %vm243, %v553, -inf
  %556 = vmax.xlane.f32.xlu0 %v555
  %v557 = vpop.xlane.xlu0 %556
  %v558 = vsel %vm247, %v554, -inf
  %559 = vmax.xlane.f32.xlu0 %v558
  %v560 = vpop.xlane.xlu0 %559
  %v561 = vsub.f32 %v553, %v557
  %v562 = vsub.f32 %v554, %v560
  %v563 = vmul.f32 %v561, 1.442695
  %v564 = vpow.pop %v563
  %v565 = vmul.f32 %v562, 1.442695
  %v566 = vpow.pop %v565
  %v567 = vsel %vm243, %v564, 0.0
  %568 = vadd.xlane.f32.xlu0 %v567
  %v569 = vpop.xlane.xlu0 %568
  %v570 = vsel %vm247, %v566, 0.0
  %571 = vadd.xlane.f32.xlu0 %v570
  %v572 = vpop.xlane.xlu0 %571
  %v573 = vrcp.pop %v569
  %v574 = vmul.f32 %v569, %v573
  %v575 = vsub.f32 1.0, %v574
  %v576 = vmul.f32 %v573, %v575
  %v577 = vadd.f32 %v573, %v576
  %vm578 = vweird.f32 %v569
  %vm579 = vweird.f32 %v573
  %vm580 = vmor %vm578, %vm579
  %v581 = vsel %vm580, %v573, %v577
  %v582 = vand.u32 2147483647, %v569
  %vm583 = vcmp.eq.f32.partialorder %v582, 8.507059e+37
  %v584 = vand.u32 %v569, 2147483648
  %v585 = vor.u32 1.1754944e-38, %v584
  %v586 = vsel %vm583, %v585, %v581
  %v587 = vmul.f32 %v564, %v586
  %v588 = vrcp.pop %v572
  %v589 = vmul.f32 %v572, %v588
  %v590 = vsub.f32 1.0, %v589
  %v591 = vmul.f32 %v588, %v590
  %v592 = vadd.f32 %v588, %v591
  %vm593 = vweird.f32 %v572
  %vm594 = vweird.f32 %v588
  %vm595 = vmor %vm593, %vm594
  %v596 = vsel %vm595, %v588, %v592
  %v597 = vand.u32 2147483647, %v572
  %vm598 = vcmp.eq.f32.partialorder %v597, 8.507059e+37
  %v599 = vand.u32 %v572, 2147483648
  %v600 = vor.u32 1.1754944e-38, %v599
  %v601 = vsel %vm598, %v600, %v596
  %v602 = vmul.f32 %v566, %v601
  %603 = vrot.lane.b32.xlu0 %v195, 112
  %v604 = vpop.permute.xlu0 %603
  %605 = vrot.lane.b32.xlu0 %v198, 112
  %v606 = vpop.permute.xlu0 %605
  %v609 = vsel %vm243, %v587, 0
  %v612 = vsel %vm243, %v602, 0
  %v614 = vsel %vm299, %v606, 0
  %616 = vmatpush.msra.mxu0 0.0
  %617 = vmatpush.msra.mxu0 0.0
  %618 = vmatpush.msra.mxu0 0.0
  %619 = vmatpush.msra.mxu0 0.0
  %620 = vmatpush.msra.mxu0 0.0
  %621 = vmatpush.msra.mxu0 0.0
  %622 = vmatpush.msra.mxu0 0.0
  %623 = vmatpush.msra.mxu0 0.0
  %624 = vmatpush.msra.mxu0 0.0
  %625 = vmatpush.msra.mxu0 0.0
  %626 = vmatpush.msra.mxu0 0.0
  %627 = vmatpush.msra.mxu0 0.0
  %628 = vmatpush.msra.mxu0 0.0
  %629 = vmatpush.msra.mxu0 0.0
  %630 = vmatpush.msra.mxu0 %v614
  %631 = vmatpush.msra.mxu0 %v604
  %632 = vmatmul.f32.gmra.mxu0 %v609
  %v633 = vpop.f32.mrf.mxu0
  %v634 = vadd.f32 0.0, %v633
  %635 = vmatmul.f32.gmra.mxu0 %v612
  %v636 = vpop.f32.mrf.mxu0
  %v637 = vadd.f32 0.0, %v636
  %638 = vdwg.mxu0
  %v640 = vsel %vm200, %v634, 0
  %v643 = vsel %vm200, %v637, 0
  %645 = vmatpush.msra.mxu0 0.0
  %646 = vmatpush.msra.mxu0 0.0
  %647 = vmatpush.msra.mxu0 0.0
  %648 = vmatpush.msra.mxu0 0.0
  %649 = vmatpush.msra.mxu0 0.0
  %650 = vmatpush.msra.mxu0 0.0
  %651 = vmatpush.msra.mxu0 0.0
  %652 = vmatpush.msra.mxu0 0.0
  %653 = vmatpush.msra.mxu0 0.0
  %654 = vmatpush.msra.mxu0 0.0
  %655 = vmatpush.msra.mxu0 0.0
  %656 = vmatpush.msra.mxu0 0.0
  %657 = vmatpush.msra.mxu0 0.0
  %658 = vmatpush.msra.mxu0 0.0
  %659 = vmatpush.msra.mxu0 0.0
  %660 = vmatpush.msra.mxu0 %v84
  %661 = vmatmul.f32.gmra.mxu0 %v640
  %v662 = vpop.f32.mrf.mxu0
  %v663 = vadd.f32 0.0, %v662
  %664 = vmatmul.f32.gmra.mxu0 %v643
  %v665 = vpop.f32.mrf.mxu0
  %v666 = vadd.f32 0.0, %v665
  %667 = vdwg.mxu0
  %v668 = vadd.f32 %v507, %v663
  %v669 = vadd.f32 %v510, %v666
  %670 = vrot.lane.b32.xlu0 %v115, 104
  %v671 = vpop.permute.xlu0 %670
  %672 = vrot.lane.b32.xlu0 %v118, 104
  %v673 = vpop.permute.xlu0 %672
  %674 = vrot.lane.b32.xlu0 %v157, 104
  %v675 = vpop.permute.xlu0 %674
  %676 = vrot.lane.b32.xlu0 %v160, 104
  %v677 = vpop.permute.xlu0 %676
  %v678 = vsel %vm200, %v671, 0
  %v680 = vsel %vm200, %v673, 0
  %v682 = vsel %vm200, %v675, 0
  %v684 = vsel %vm200, %v677, 0
  %686 = vmatpush.xpose.msra.mxu0 0.0
  %687 = vmatpush.xpose.msra.mxu0 0.0
  %688 = vmatpush.xpose.msra.mxu0 0.0
  %689 = vmatpush.xpose.msra.mxu0 0.0
  %690 = vmatpush.xpose.msra.mxu0 0.0
  %691 = vmatpush.xpose.msra.mxu0 0.0
  %692 = vmatpush.xpose.msra.mxu0 0.0
  %693 = vmatpush.xpose.msra.mxu0 0.0
  %694 = vmatpush.xpose.msra.mxu0 0.0
  %695 = vmatpush.xpose.msra.mxu0 0.0
  %696 = vmatpush.xpose.msra.mxu0 0.0
  %697 = vmatpush.xpose.msra.mxu0 0.0
  %698 = vmatpush.xpose.msra.mxu0 0.0
  %699 = vmatpush.xpose.msra.mxu0 0.0
  %700 = vmatpush.xpose.msra.mxu0 %v684
  %701 = vmatpush.xpose.msra.mxu0 %v682
  %702 = vmatmul.f32.gmra.mxu0 %v678
  %v703 = vpop.f32.mrf.mxu0
  %v704 = vadd.f32 0.0, %v703
  %705 = vmatmul.f32.gmra.mxu0 %v680
  %v706 = vpop.f32.mrf.mxu0
  %v707 = vadd.f32 0.0, %v706
  %708 = vdwg.mxu0
  %v709 = vmul.f32 %v704, 0.35355338
  %v710 = vmul.f32 %v707, 0.35355338
  %v711 = vadd.f32 %v709, %v239
  %v712 = vadd.f32 %v710, %v239
  %v713 = vsel %vm243, %v711, -inf
  %714 = vmax.xlane.f32.xlu0 %v713
  %v715 = vpop.xlane.xlu0 %714
  %v716 = vsel %vm247, %v712, -inf
  %717 = vmax.xlane.f32.xlu0 %v716
  %v718 = vpop.xlane.xlu0 %717
  %v719 = vsub.f32 %v711, %v715
  %v720 = vsub.f32 %v712, %v718
  %v721 = vmul.f32 %v719, 1.442695
  %v722 = vpow.pop %v721
  %v723 = vmul.f32 %v720, 1.442695
  %v724 = vpow.pop %v723
  %v725 = vsel %vm243, %v722, 0.0
  %726 = vadd.xlane.f32.xlu0 %v725
  %v727 = vpop.xlane.xlu0 %726
  %v728 = vsel %vm247, %v724, 0.0
  %729 = vadd.xlane.f32.xlu0 %v728
  %v730 = vpop.xlane.xlu0 %729
  %v731 = vrcp.pop %v727
  %v732 = vmul.f32 %v727, %v731
  %v733 = vsub.f32 1.0, %v732
  %v734 = vmul.f32 %v731, %v733
  %v735 = vadd.f32 %v731, %v734
  %vm736 = vweird.f32 %v727
  %vm737 = vweird.f32 %v731
  %vm738 = vmor %vm736, %vm737
  %v739 = vsel %vm738, %v731, %v735
  %v740 = vand.u32 2147483647, %v727
  %vm741 = vcmp.eq.f32.partialorder %v740, 8.507059e+37
  %v742 = vand.u32 %v727, 2147483648
  %v743 = vor.u32 1.1754944e-38, %v742
  %v744 = vsel %vm741, %v743, %v739
  %v745 = vmul.f32 %v722, %v744
  %v746 = vrcp.pop %v730
  %v747 = vmul.f32 %v730, %v746
  %v748 = vsub.f32 1.0, %v747
  %v749 = vmul.f32 %v746, %v748
  %v750 = vadd.f32 %v746, %v749
  %vm751 = vweird.f32 %v730
  %vm752 = vweird.f32 %v746
  %vm753 = vmor %vm751, %vm752
  %v754 = vsel %vm753, %v746, %v750
  %v755 = vand.u32 2147483647, %v730
  %vm756 = vcmp.eq.f32.partialorder %v755, 8.507059e+37
  %v757 = vand.u32 %v730, 2147483648
  %v758 = vor.u32 1.1754944e-38, %v757
  %v759 = vsel %vm756, %v758, %v754
  %v760 = vmul.f32 %v724, %v759
  %761 = vrot.lane.b32.xlu0 %v195, 104
  %v762 = vpop.permute.xlu0 %761
  %763 = vrot.lane.b32.xlu0 %v198, 104
  %v764 = vpop.permute.xlu0 %763
  %v767 = vsel %vm243, %v745, 0
  %v770 = vsel %vm243, %v760, 0
  %v772 = vsel %vm299, %v764, 0
  %774 = vmatpush.msra.mxu0 0.0
  %775 = vmatpush.msra.mxu0 0.0
  %776 = vmatpush.msra.mxu0 0.0
  %777 = vmatpush.msra.mxu0 0.0
  %778 = vmatpush.msra.mxu0 0.0
  %779 = vmatpush.msra.mxu0 0.0
  %780 = vmatpush.msra.mxu0 0.0
  %781 = vmatpush.msra.mxu0 0.0
  %782 = vmatpush.msra.mxu0 0.0
  %783 = vmatpush.msra.mxu0 0.0
  %784 = vmatpush.msra.mxu0 0.0
  %785 = vmatpush.msra.mxu0 0.0
  %786 = vmatpush.msra.mxu0 0.0
  %787 = vmatpush.msra.mxu0 0.0
  %788 = vmatpush.msra.mxu0 %v772
  %789 = vmatpush.msra.mxu0 %v762
  %790 = vmatmul.f32.gmra.mxu0 %v767
  %v791 = vpop.f32.mrf.mxu0
  %v792 = vadd.f32 0.0, %v791
  %793 = vmatmul.f32.gmra.mxu0 %v770
  %v794 = vpop.f32.mrf.mxu0
  %v795 = vadd.f32 0.0, %v794
  %796 = vdwg.mxu0
  %v798 = vsel %vm200, %v792, 0
  %v801 = vsel %vm200, %v795, 0
  %803 = vmatpush.msra.mxu0 0.0
  %804 = vmatpush.msra.mxu0 0.0
  %805 = vmatpush.msra.mxu0 0.0
  %806 = vmatpush.msra.mxu0 0.0
  %807 = vmatpush.msra.mxu0 0.0
  %808 = vmatpush.msra.mxu0 0.0
  %809 = vmatpush.msra.mxu0 0.0
  %810 = vmatpush.msra.mxu0 0.0
  %811 = vmatpush.msra.mxu0 0.0
  %812 = vmatpush.msra.mxu0 0.0
  %813 = vmatpush.msra.mxu0 0.0
  %814 = vmatpush.msra.mxu0 0.0
  %815 = vmatpush.msra.mxu0 0.0
  %816 = vmatpush.msra.mxu0 0.0
  %817 = vmatpush.msra.mxu0 0.0
  %818 = vmatpush.msra.mxu0 %v85
  %819 = vmatmul.f32.gmra.mxu0 %v798
  %v820 = vpop.f32.mrf.mxu0
  %v821 = vadd.f32 0.0, %v820
  %822 = vmatmul.f32.gmra.mxu0 %v801
  %v823 = vpop.f32.mrf.mxu0
  %v824 = vadd.f32 0.0, %v823
  %825 = vdwg.mxu0
  %v826 = vadd.f32 %v668, %v821
  %v827 = vadd.f32 %v669, %v824
  %v829 = vperm.slane %v86, 0
  %v831 = vadd.f32 %v826, %v829
  %v832 = vadd.f32 %v827, %v829
  %v833 = vadd.f32 %v70, %v831
  %v834 = vadd.f32 %v71, %v832
  %v835 = vsel %vm90, %v833, 0.0
  %836 = vadd.xlane.f32.xlu0 %v835
  %v837 = vpop.xlane.xlu0 %836
  %vm838 = vcmask 253952
  %v839 = vsel %vm838, %v834, 0.0
  %840 = vadd.xlane.f32.xlu0 %v839
  %v841 = vpop.xlane.xlu0 %840
  %v842 = vrcp.pop 32.0
  %v843 = vmul.f32 32.0, %v842
  %v844 = vsub.f32 1.0, %v843
  %v845 = vmul.f32 %v842, %v844
  %v846 = vadd.f32 %v842, %v845
  %vm847 = vweird.f32 %v842
  %v848 = vsel %vm847, %v842, %v846
  %v849 = vmul.f32 %v837, %v848
  %v850 = vmul.f32 %v841, %v848
  %v851 = vsub.f32 %v833, %v849
  %v852 = vsub.f32 %v834, %v850
  %v853 = vmul.f32 %v851, %v851
  %v854 = vmul.f32 %v852, %v852
  %v855 = vsel %vm90, %v853, 0.0
  %856 = vadd.xlane.f32.xlu0 %v855
  %v857 = vpop.xlane.xlu0 %856
  %v858 = vsel %vm838, %v854, 0.0
  %859 = vadd.xlane.f32.xlu0 %v858
  %v860 = vpop.xlane.xlu0 %859
  %v861 = vmul.f32 %v857, %v848
  %v862 = vmul.f32 %v860, %v848
  %v863 = vadd.f32 %v861, 1e-05
  %v864 = vadd.f32 %v862, 1e-05
  %v865 = vrsqrt.pop %v863
  %v866 = vmul.f32 %v865, %v863
  %v867 = vmul.f32 %v866, %v865
  %v868 = vmul.f32 0.5, %v867
  %v869 = vsub.f32 1.5, %v868
  %v870 = vmul.f32 %v865, %v869
  %vm871 = vweird.f32 %v863
  %vm872 = vweird.f32 %v865
  %vm873 = vmor %vm871, %vm872
  %v874 = vsel %vm873, %v865, %v870
  %v875 = vrsqrt.pop %v864
  %v876 = vmul.f32 %v875, %v864
  %v877 = vmul.f32 %v876, %v875
  %v878 = vmul.f32 0.5, %v877
  %v879 = vsub.f32 1.5, %v878
  %v880 = vmul.f32 %v875, %v879
  %vm881 = vweird.f32 %v864
  %vm882 = vweird.f32 %v875
  %vm883 = vmor %vm881, %vm882
  %v884 = vsel %vm883, %v875, %v880
  %v885 = vmul.f32 %v851, %v874
  %v886 = vmul.f32 %v852, %v884
  %v887 = vperm.slane %v75, 0
  %v888 = vmul.f32 %v885, %v887
  %v889 = vmul.f32 %v886, %v887
  %v890 = vperm.slane %v76, 0
  %v891 = vadd.f32 %v888, %v890
  %v892 = vadd.f32 %v889, %v890
  %v893 = vld [vmem:[%s8] sm:$0xff]
  %v894 = vld [vmem:[%s8 + $0x8] sm:$0xff]
  %v895 = vld [vmem:[%s8 + $0x10] sm:$0xff]
  %v896 = vld [vmem:[%s8 + $0x18] sm:$0xff]
  %v897 = vld [vmem:[%s9] sm:$0x1]
  %v898 = vld [vmem:[%s10] sm:$0xff]
  %v899 = vld [vmem:[%s10 + $0x8] sm:$0xff]
  %v900 = vld [vmem:[%s10 + $0x10] sm:$0xff]
  %v901 = vld [vmem:[%s10 + $0x18] sm:$0xff]
  %v902 = vld [vmem:[%s11] sm:$0x1]
  %v904 = vperm.slane %v897, 0
  %v907 = vsel %vm90, %v891, 0
  %v910 = vsel %vm90, %v892, 0
  %912 = vmatpush.msra.mxu0 0.0
  %913 = vmatpush.msra.mxu0 0.0
  %914 = vmatpush.msra.mxu0 0.0
  %915 = vmatpush.msra.mxu0 0.0
  %916 = vmatpush.msra.mxu0 0.0
  %917 = vmatpush.msra.mxu0 0.0
  %918 = vmatpush.msra.mxu0 0.0
  %919 = vmatpush.msra.mxu0 0.0
  %920 = vmatpush.msra.mxu0 0.0
  %921 = vmatpush.msra.mxu0 0.0
  %922 = vmatpush.msra.mxu0 0.0
  %923 = vmatpush.msra.mxu0 0.0
  %924 = vmatpush.msra.mxu0 %v896
  %925 = vmatpush.msra.mxu0 %v895
  %926 = vmatpush.msra.mxu0 %v894
  %927 = vmatpush.msra.mxu0 %v893
  %928 = vmatmul.f32.gmra.mxu0 %v907
  %v929 = vpop.f32.mrf.mxu0
  %v930 = vadd.f32 %v904, %v929
  %931 = vmatmul.f32.gmra.mxu0 %v910
  %v932 = vpop.f32.mrf.mxu0
  %v933 = vadd.f32 %v904, %v932
  %934 = vdwg.mxu0
  %939 = vrot.lane.b32.xlu0 %v893, 96
  %v940 = vpop.permute.xlu0 %939
  %941 = vrot.lane.b32.xlu0 %v894, 96
  %v942 = vpop.permute.xlu0 %941
  %943 = vrot.lane.b32.xlu0 %v895, 96
  %v944 = vpop.permute.xlu0 %943
  %945 = vrot.lane.b32.xlu0 %v896, 96
  %v946 = vpop.permute.xlu0 %945
  %951 = vrot.lane.b32.xlu0 %v904, 96
  %v952 = vpop.permute.xlu0 %951
  %v955 = vsel %vm90, %v68, 0
  %v958 = vsel %vm90, %v69, 0
  %960 = vmatpush.msra.mxu0 0.0
  %961 = vmatpush.msra.mxu0 0.0
  %962 = vmatpush.msra.mxu0 0.0
  %963 = vmatpush.msra.mxu0 0.0
  %964 = vmatpush.msra.mxu0 0.0
  %965 = vmatpush.msra.mxu0 0.0
  %966 = vmatpush.msra.mxu0 0.0
  %967 = vmatpush.msra.mxu0 0.0
  %968 = vmatpush.msra.mxu0 0.0
  %969 = vmatpush.msra.mxu0 0.0
  %970 = vmatpush.msra.mxu0 0.0
  %971 = vmatpush.msra.mxu0 0.0
  %972 = vmatpush.msra.mxu0 %v946
  %973 = vmatpush.msra.mxu0 %v944
  %974 = vmatpush.msra.mxu0 %v942
  %975 = vmatpush.msra.mxu0 %v940
  %976 = vmatmul.f32.gmra.mxu0 %v955
  %v977 = vpop.f32.mrf.mxu0
  %v978 = vadd.f32 %v952, %v977
  %979 = vmatmul.f32.gmra.mxu0 %v958
  %v980 = vpop.f32.mrf.mxu0
  %v981 = vadd.f32 %v952, %v980
  %982 = vdwg.mxu0
  %983 = vrot.lane.b32.xlu0 %v893, 64
  %v984 = vpop.permute.xlu0 %983
  %985 = vrot.lane.b32.xlu0 %v894, 64
  %v986 = vpop.permute.xlu0 %985
  %987 = vrot.lane.b32.xlu0 %v895, 64
  %v988 = vpop.permute.xlu0 %987
  %989 = vrot.lane.b32.xlu0 %v896, 64
  %v990 = vpop.permute.xlu0 %989
  %995 = vrot.lane.b32.xlu0 %v904, 64
  %v996 = vpop.permute.xlu0 %995
  %998 = vmatpush.msra.mxu0 0.0
  %999 = vmatpush.msra.mxu0 0.0
  %1000 = vmatpush.msra.mxu0 0.0
  %1001 = vmatpush.msra.mxu0 0.0
  %1002 = vmatpush.msra.mxu0 0.0
  %1003 = vmatpush.msra.mxu0 0.0
  %1004 = vmatpush.msra.mxu0 0.0
  %1005 = vmatpush.msra.mxu0 0.0
  %1006 = vmatpush.msra.mxu0 0.0
  %1007 = vmatpush.msra.mxu0 0.0
  %1008 = vmatpush.msra.mxu0 0.0
  %1009 = vmatpush.msra.mxu0 0.0
  %1010 = vmatpush.msra.mxu0 %v990
  %1011 = vmatpush.msra.mxu0 %v988
  %1012 = vmatpush.msra.mxu0 %v986
  %1013 = vmatpush.msra.mxu0 %v984
  %1014 = vmatmul.f32.gmra.mxu0 %v955
  %v1015 = vpop.f32.mrf.mxu0
  %v1016 = vadd.f32 %v996, %v1015
  %1017 = vmatmul.f32.gmra.mxu0 %v958
  %v1018 = vpop.f32.mrf.mxu0
  %v1019 = vadd.f32 %v996, %v1018
  %1020 = vdwg.mxu0
  %v1022 = vsel %vm200, %v930, 0
  %v1025 = vsel %vm200, %v933, 0
  %v1028 = vsel %vm200, %v978, 0
  %v1031 = vsel %vm200, %v981, 0
  %1033 = vmatpush.xpose.msra.mxu0 0.0
  %1034 = vmatpush.xpose.msra.mxu0 0.0
  %1035 = vmatpush.xpose.msra.mxu0 0.0
  %1036 = vmatpush.xpose.msra.mxu0 0.0
  %1037 = vmatpush.xpose.msra.mxu0 0.0
  %1038 = vmatpush.xpose.msra.mxu0 0.0
  %1039 = vmatpush.xpose.msra.mxu0 0.0
  %1040 = vmatpush.xpose.msra.mxu0 0.0
  %1041 = vmatpush.xpose.msra.mxu0 0.0
  %1042 = vmatpush.xpose.msra.mxu0 0.0
  %1043 = vmatpush.xpose.msra.mxu0 0.0
  %1044 = vmatpush.xpose.msra.mxu0 0.0
  %1045 = vmatpush.xpose.msra.mxu0 0.0
  %1046 = vmatpush.xpose.msra.mxu0 0.0
  %1047 = vmatpush.xpose.msra.mxu0 %v1031
  %1048 = vmatpush.xpose.msra.mxu0 %v1028
  %1049 = vmatmul.f32.gmra.mxu0 %v1022
  %v1050 = vpop.f32.mrf.mxu0
  %v1051 = vadd.f32 0.0, %v1050
  %1052 = vmatmul.f32.gmra.mxu0 %v1025
  %v1053 = vpop.f32.mrf.mxu0
  %v1054 = vadd.f32 0.0, %v1053
  %1055 = vdwg.mxu0
  %v1056 = vmul.f32 %v1051, 0.35355338
  %v1057 = vmul.f32 %v1054, 0.35355338
  %v1058 = vsel %vm243, %v1056, -inf
  %1059 = vmax.xlane.f32.xlu0 %v1058
  %v1060 = vpop.xlane.xlu0 %1059
  %v1061 = vsel %vm247, %v1057, -inf
  %1062 = vmax.xlane.f32.xlu0 %v1061
  %v1063 = vpop.xlane.xlu0 %1062
  %v1064 = vsub.f32 %v1056, %v1060
  %v1065 = vsub.f32 %v1057, %v1063
  %v1066 = vmul.f32 %v1064, 1.442695
  %v1067 = vpow.pop %v1066
  %v1068 = vmul.f32 %v1065, 1.442695
  %v1069 = vpow.pop %v1068
  %v1070 = vsel %vm243, %v1067, 0.0
  %1071 = vadd.xlane.f32.xlu0 %v1070
  %v1072 = vpop.xlane.xlu0 %1071
  %v1073 = vsel %vm247, %v1069, 0.0
  %1074 = vadd.xlane.f32.xlu0 %v1073
  %v1075 = vpop.xlane.xlu0 %1074
  %v1076 = vrcp.pop %v1072
  %v1077 = vmul.f32 %v1072, %v1076
  %v1078 = vsub.f32 1.0, %v1077
  %v1079 = vmul.f32 %v1076, %v1078
  %v1080 = vadd.f32 %v1076, %v1079
  %vm1081 = vweird.f32 %v1072
  %vm1082 = vweird.f32 %v1076
  %vm1083 = vmor %vm1081, %vm1082
  %v1084 = vsel %vm1083, %v1076, %v1080
  %v1085 = vand.u32 2147483647, %v1072
  %vm1086 = vcmp.eq.f32.partialorder %v1085, 8.507059e+37
  %v1087 = vand.u32 %v1072, 2147483648
  %v1088 = vor.u32 1.1754944e-38, %v1087
  %v1089 = vsel %vm1086, %v1088, %v1084
  %v1090 = vmul.f32 %v1067, %v1089
  %v1091 = vrcp.pop %v1075
  %v1092 = vmul.f32 %v1075, %v1091
  %v1093 = vsub.f32 1.0, %v1092
  %v1094 = vmul.f32 %v1091, %v1093
  %v1095 = vadd.f32 %v1091, %v1094
  %vm1096 = vweird.f32 %v1075
  %vm1097 = vweird.f32 %v1091
  %vm1098 = vmor %vm1096, %vm1097
  %v1099 = vsel %vm1098, %v1091, %v1095
  %v1100 = vand.u32 2147483647, %v1075
  %vm1101 = vcmp.eq.f32.partialorder %v1100, 8.507059e+37
  %v1102 = vand.u32 %v1075, 2147483648
  %v1103 = vor.u32 1.1754944e-38, %v1102
  %v1104 = vsel %vm1101, %v1103, %v1099
  %v1105 = vmul.f32 %v1069, %v1104
  %v1107 = vsel %vm243, %v1090, 0
  %v1110 = vsel %vm243, %v1105, 0
  %v1113 = vsel %vm299, %v1019, 0
  %1115 = vmatpush.msra.mxu0 0.0
  %1116 = vmatpush.msra.mxu0 0.0
  %1117 = vmatpush.msra.mxu0 0.0
  %1118 = vmatpush.msra.mxu0 0.0
  %1119 = vmatpush.msra.mxu0 0.0
  %1120 = vmatpush.msra.mxu0 0.0
  %1121 = vmatpush.msra.mxu0 0.0
  %1122 = vmatpush.msra.mxu0 0.0
  %1123 = vmatpush.msra.mxu0 0.0
  %1124 = vmatpush.msra.mxu0 0.0
  %1125 = vmatpush.msra.mxu0 0.0
  %1126 = vmatpush.msra.mxu0 0.0
  %1127 = vmatpush.msra.mxu0 0.0
  %1128 = vmatpush.msra.mxu0 0.0
  %1129 = vmatpush.msra.mxu0 %v1113
  %1130 = vmatpush.msra.mxu0 %v1016
  %1131 = vmatmul.f32.gmra.mxu0 %v1107
  %v1132 = vpop.f32.mrf.mxu0
  %v1133 = vadd.f32 0.0, %v1132
  %1134 = vmatmul.f32.gmra.mxu0 %v1110
  %v1135 = vpop.f32.mrf.mxu0
  %v1136 = vadd.f32 0.0, %v1135
  %1137 = vdwg.mxu0
  %1138 = vrot.lane.b32.xlu0 %v930, 120
  %v1139 = vpop.permute.xlu0 %1138
  %1140 = vrot.lane.b32.xlu0 %v933, 120
  %v1141 = vpop.permute.xlu0 %1140
  %1142 = vrot.lane.b32.xlu0 %v978, 120
  %v1143 = vpop.permute.xlu0 %1142
  %1144 = vrot.lane.b32.xlu0 %v981, 120
  %v1145 = vpop.permute.xlu0 %1144
  %v1146 = vsel %vm200, %v1139, 0
  %v1148 = vsel %vm200, %v1141, 0
  %v1150 = vsel %vm200, %v1143, 0
  %v1152 = vsel %vm200, %v1145, 0
  %1154 = vmatpush.xpose.msra.mxu0 0.0
  %1155 = vmatpush.xpose.msra.mxu0 0.0
  %1156 = vmatpush.xpose.msra.mxu0 0.0
  %1157 = vmatpush.xpose.msra.mxu0 0.0
  %1158 = vmatpush.xpose.msra.mxu0 0.0
  %1159 = vmatpush.xpose.msra.mxu0 0.0
  %1160 = vmatpush.xpose.msra.mxu0 0.0
  %1161 = vmatpush.xpose.msra.mxu0 0.0
  %1162 = vmatpush.xpose.msra.mxu0 0.0
  %1163 = vmatpush.xpose.msra.mxu0 0.0
  %1164 = vmatpush.xpose.msra.mxu0 0.0
  %1165 = vmatpush.xpose.msra.mxu0 0.0
  %1166 = vmatpush.xpose.msra.mxu0 0.0
  %1167 = vmatpush.xpose.msra.mxu0 0.0
  %1168 = vmatpush.xpose.msra.mxu0 %v1152
  %1169 = vmatpush.xpose.msra.mxu0 %v1150
  %1170 = vmatmul.f32.gmra.mxu0 %v1146
  %v1171 = vpop.f32.mrf.mxu0
  %v1172 = vadd.f32 0.0, %v1171
  %1173 = vmatmul.f32.gmra.mxu0 %v1148
  %v1174 = vpop.f32.mrf.mxu0
  %v1175 = vadd.f32 0.0, %v1174
  %1176 = vdwg.mxu0
  %v1177 = vmul.f32 %v1172, 0.35355338
  %v1178 = vmul.f32 %v1175, 0.35355338
  %v1179 = vsel %vm243, %v1177, -inf
  %1180 = vmax.xlane.f32.xlu0 %v1179
  %v1181 = vpop.xlane.xlu0 %1180
  %v1182 = vsel %vm247, %v1178, -inf
  %1183 = vmax.xlane.f32.xlu0 %v1182
  %v1184 = vpop.xlane.xlu0 %1183
  %v1185 = vsub.f32 %v1177, %v1181
  %v1186 = vsub.f32 %v1178, %v1184
  %v1187 = vmul.f32 %v1185, 1.442695
  %v1188 = vpow.pop %v1187
  %v1189 = vmul.f32 %v1186, 1.442695
  %v1190 = vpow.pop %v1189
  %v1191 = vsel %vm243, %v1188, 0.0
  %1192 = vadd.xlane.f32.xlu0 %v1191
  %v1193 = vpop.xlane.xlu0 %1192
  %v1194 = vsel %vm247, %v1190, 0.0
  %1195 = vadd.xlane.f32.xlu0 %v1194
  %v1196 = vpop.xlane.xlu0 %1195
  %v1197 = vrcp.pop %v1193
  %v1198 = vmul.f32 %v1193, %v1197
  %v1199 = vsub.f32 1.0, %v1198
  %v1200 = vmul.f32 %v1197, %v1199
  %v1201 = vadd.f32 %v1197, %v1200
  %vm1202 = vweird.f32 %v1193
  %vm1203 = vweird.f32 %v1197
  %vm1204 = vmor %vm1202, %vm1203
  %v1205 = vsel %vm1204, %v1197, %v1201
  %v1206 = vand.u32 2147483647, %v1193
  %vm1207 = vcmp.eq.f32.partialorder %v1206, 8.507059e+37
  %v1208 = vand.u32 %v1193, 2147483648
  %v1209 = vor.u32 1.1754944e-38, %v1208
  %v1210 = vsel %vm1207, %v1209, %v1205
  %v1211 = vmul.f32 %v1188, %v1210
  %v1212 = vrcp.pop %v1196
  %v1213 = vmul.f32 %v1196, %v1212
  %v1214 = vsub.f32 1.0, %v1213
  %v1215 = vmul.f32 %v1212, %v1214
  %v1216 = vadd.f32 %v1212, %v1215
  %vm1217 = vweird.f32 %v1196
  %vm1218 = vweird.f32 %v1212
  %vm1219 = vmor %vm1217, %vm1218
  %v1220 = vsel %vm1219, %v1212, %v1216
  %v1221 = vand.u32 2147483647, %v1196
  %vm1222 = vcmp.eq.f32.partialorder %v1221, 8.507059e+37
  %v1223 = vand.u32 %v1196, 2147483648
  %v1224 = vor.u32 1.1754944e-38, %v1223
  %v1225 = vsel %vm1222, %v1224, %v1220
  %v1226 = vmul.f32 %v1190, %v1225
  %1228 = vrot.lane.b32.xlu0 %v1016, 120
  %v1229 = vpop.permute.xlu0 %1228
  %1230 = vrot.lane.b32.xlu0 %v1019, 120
  %v1231 = vpop.permute.xlu0 %1230
  %v1234 = vsel %vm243, %v1211, 0
  %v1237 = vsel %vm243, %v1226, 0
  %v1239 = vsel %vm299, %v1231, 0
  %1241 = vmatpush.msra.mxu0 0.0
  %1242 = vmatpush.msra.mxu0 0.0
  %1243 = vmatpush.msra.mxu0 0.0
  %1244 = vmatpush.msra.mxu0 0.0
  %1245 = vmatpush.msra.mxu0 0.0
  %1246 = vmatpush.msra.mxu0 0.0
  %1247 = vmatpush.msra.mxu0 0.0
  %1248 = vmatpush.msra.mxu0 0.0
  %1249 = vmatpush.msra.mxu0 0.0
  %1250 = vmatpush.msra.mxu0 0.0
  %1251 = vmatpush.msra.mxu0 0.0
  %1252 = vmatpush.msra.mxu0 0.0
  %1253 = vmatpush.msra.mxu0 0.0
  %1254 = vmatpush.msra.mxu0 0.0
  %1255 = vmatpush.msra.mxu0 %v1239
  %1256 = vmatpush.msra.mxu0 %v1229
  %1257 = vmatmul.f32.gmra.mxu0 %v1234
  %v1258 = vpop.f32.mrf.mxu0
  %v1259 = vadd.f32 0.0, %v1258
  %1260 = vmatmul.f32.gmra.mxu0 %v1237
  %v1261 = vpop.f32.mrf.mxu0
  %v1262 = vadd.f32 0.0, %v1261
  %1263 = vdwg.mxu0
  %v1265 = vsel %vm200, %v1259, 0
  %v1268 = vsel %vm200, %v1262, 0
  %1270 = vmatpush.msra.mxu0 0.0
  %1271 = vmatpush.msra.mxu0 0.0
  %1272 = vmatpush.msra.mxu0 0.0
  %1273 = vmatpush.msra.mxu0 0.0
  %1274 = vmatpush.msra.mxu0 0.0
  %1275 = vmatpush.msra.mxu0 0.0
  %1276 = vmatpush.msra.mxu0 0.0
  %1277 = vmatpush.msra.mxu0 0.0
  %1278 = vmatpush.msra.mxu0 0.0
  %1279 = vmatpush.msra.mxu0 0.0
  %1280 = vmatpush.msra.mxu0 0.0
  %1281 = vmatpush.msra.mxu0 0.0
  %1282 = vmatpush.msra.mxu0 0.0
  %1283 = vmatpush.msra.mxu0 0.0
  %1284 = vmatpush.msra.mxu0 0.0
  %1285 = vmatpush.msra.mxu0 %v899
  %1286 = vmatmul.f32.gmra.mxu0 %v1265
  %v1287 = vpop.f32.mrf.mxu0
  %v1288 = vadd.f32 0.0, %v1287
  %1289 = vmatmul.f32.gmra.mxu0 %v1268
  %v1290 = vpop.f32.mrf.mxu0
  %v1291 = vadd.f32 0.0, %v1290
  %1292 = vdwg.mxu0
  %v1294 = vsel %vm200, %v1133, 0
  %v1297 = vsel %vm200, %v1136, 0
  %1299 = vmatpush.msra.mxu0 0.0
  %1300 = vmatpush.msra.mxu0 0.0
  %1301 = vmatpush.msra.mxu0 0.0
  %1302 = vmatpush.msra.mxu0 0.0
  %1303 = vmatpush.msra.mxu0 0.0
  %1304 = vmatpush.msra.mxu0 0.0
  %1305 = vmatpush.msra.mxu0 0.0
  %1306 = vmatpush.msra.mxu0 0.0
  %1307 = vmatpush.msra.mxu0 0.0
  %1308 = vmatpush.msra.mxu0 0.0
  %1309 = vmatpush.msra.mxu0 0.0
  %1310 = vmatpush.msra.mxu0 0.0
  %1311 = vmatpush.msra.mxu0 0.0
  %1312 = vmatpush.msra.mxu0 0.0
  %1313 = vmatpush.msra.mxu0 0.0
  %1314 = vmatpush.msra.mxu0 %v898
  %1315 = vmatmul.f32.gmra.mxu0 %v1294
  %v1316 = vpop.f32.mrf.mxu0
  %v1317 = vadd.f32 %v1288, %v1316
  %1318 = vmatmul.f32.gmra.mxu0 %v1297
  %v1319 = vpop.f32.mrf.mxu0
  %v1320 = vadd.f32 %v1291, %v1319
  %1321 = vdwg.mxu0
  %1322 = vrot.lane.b32.xlu0 %v930, 112
  %v1323 = vpop.permute.xlu0 %1322
  %1324 = vrot.lane.b32.xlu0 %v933, 112
  %v1325 = vpop.permute.xlu0 %1324
  %1326 = vrot.lane.b32.xlu0 %v978, 112
  %v1327 = vpop.permute.xlu0 %1326
  %1328 = vrot.lane.b32.xlu0 %v981, 112
  %v1329 = vpop.permute.xlu0 %1328
  %v1330 = vsel %vm200, %v1323, 0
  %v1332 = vsel %vm200, %v1325, 0
  %v1334 = vsel %vm200, %v1327, 0
  %v1336 = vsel %vm200, %v1329, 0
  %1338 = vmatpush.xpose.msra.mxu0 0.0
  %1339 = vmatpush.xpose.msra.mxu0 0.0
  %1340 = vmatpush.xpose.msra.mxu0 0.0
  %1341 = vmatpush.xpose.msra.mxu0 0.0
  %1342 = vmatpush.xpose.msra.mxu0 0.0
  %1343 = vmatpush.xpose.msra.mxu0 0.0
  %1344 = vmatpush.xpose.msra.mxu0 0.0
  %1345 = vmatpush.xpose.msra.mxu0 0.0
  %1346 = vmatpush.xpose.msra.mxu0 0.0
  %1347 = vmatpush.xpose.msra.mxu0 0.0
  %1348 = vmatpush.xpose.msra.mxu0 0.0
  %1349 = vmatpush.xpose.msra.mxu0 0.0
  %1350 = vmatpush.xpose.msra.mxu0 0.0
  %1351 = vmatpush.xpose.msra.mxu0 0.0
  %1352 = vmatpush.xpose.msra.mxu0 %v1336
  %1353 = vmatpush.xpose.msra.mxu0 %v1334
  %1354 = vmatmul.f32.gmra.mxu0 %v1330
  %v1355 = vpop.f32.mrf.mxu0
  %v1356 = vadd.f32 0.0, %v1355
  %1357 = vmatmul.f32.gmra.mxu0 %v1332
  %v1358 = vpop.f32.mrf.mxu0
  %v1359 = vadd.f32 0.0, %v1358
  %1360 = vdwg.mxu0
  %v1361 = vmul.f32 %v1356, 0.35355338
  %v1362 = vmul.f32 %v1359, 0.35355338
  %v1363 = vsel %vm243, %v1361, -inf
  %1364 = vmax.xlane.f32.xlu0 %v1363
  %v1365 = vpop.xlane.xlu0 %1364
  %v1366 = vsel %vm247, %v1362, -inf
  %1367 = vmax.xlane.f32.xlu0 %v1366
  %v1368 = vpop.xlane.xlu0 %1367
  %v1369 = vsub.f32 %v1361, %v1365
  %v1370 = vsub.f32 %v1362, %v1368
  %v1371 = vmul.f32 %v1369, 1.442695
  %v1372 = vpow.pop %v1371
  %v1373 = vmul.f32 %v1370, 1.442695
  %v1374 = vpow.pop %v1373
  %v1375 = vsel %vm243, %v1372, 0.0
  %1376 = vadd.xlane.f32.xlu0 %v1375
  %v1377 = vpop.xlane.xlu0 %1376
  %v1378 = vsel %vm247, %v1374, 0.0
  %1379 = vadd.xlane.f32.xlu0 %v1378
  %v1380 = vpop.xlane.xlu0 %1379
  %v1381 = vrcp.pop %v1377
  %v1382 = vmul.f32 %v1377, %v1381
  %v1383 = vsub.f32 1.0, %v1382
  %v1384 = vmul.f32 %v1381, %v1383
  %v1385 = vadd.f32 %v1381, %v1384
  %vm1386 = vweird.f32 %v1377
  %vm1387 = vweird.f32 %v1381
  %vm1388 = vmor %vm1386, %vm1387
  %v1389 = vsel %vm1388, %v1381, %v1385
  %v1390 = vand.u32 2147483647, %v1377
  %vm1391 = vcmp.eq.f32.partialorder %v1390, 8.507059e+37
  %v1392 = vand.u32 %v1377, 2147483648
  %v1393 = vor.u32 1.1754944e-38, %v1392
  %v1394 = vsel %vm1391, %v1393, %v1389
  %v1395 = vmul.f32 %v1372, %v1394
  %v1396 = vrcp.pop %v1380
  %v1397 = vmul.f32 %v1380, %v1396
  %v1398 = vsub.f32 1.0, %v1397
  %v1399 = vmul.f32 %v1396, %v1398
  %v1400 = vadd.f32 %v1396, %v1399
  %vm1401 = vweird.f32 %v1380
  %vm1402 = vweird.f32 %v1396
  %vm1403 = vmor %vm1401, %vm1402
  %v1404 = vsel %vm1403, %v1396, %v1400
  %v1405 = vand.u32 2147483647, %v1380
  %vm1406 = vcmp.eq.f32.partialorder %v1405, 8.507059e+37
  %v1407 = vand.u32 %v1380, 2147483648
  %v1408 = vor.u32 1.1754944e-38, %v1407
  %v1409 = vsel %vm1406, %v1408, %v1404
  %v1410 = vmul.f32 %v1374, %v1409
  %1411 = vrot.lane.b32.xlu0 %v1016, 112
  %v1412 = vpop.permute.xlu0 %1411
  %1413 = vrot.lane.b32.xlu0 %v1019, 112
  %v1414 = vpop.permute.xlu0 %1413
  %v1417 = vsel %vm243, %v1395, 0
  %v1420 = vsel %vm243, %v1410, 0
  %v1422 = vsel %vm299, %v1414, 0
  %1424 = vmatpush.msra.mxu0 0.0
  %1425 = vmatpush.msra.mxu0 0.0
  %1426 = vmatpush.msra.mxu0 0.0
  %1427 = vmatpush.msra.mxu0 0.0
  %1428 = vmatpush.msra.mxu0 0.0
  %1429 = vmatpush.msra.mxu0 0.0
  %1430 = vmatpush.msra.mxu0 0.0
  %1431 = vmatpush.msra.mxu0 0.0
  %1432 = vmatpush.msra.mxu0 0.0
  %1433 = vmatpush.msra.mxu0 0.0
  %1434 = vmatpush.msra.mxu0 0.0
  %1435 = vmatpush.msra.mxu0 0.0
  %1436 = vmatpush.msra.mxu0 0.0
  %1437 = vmatpush.msra.mxu0 0.0
  %1438 = vmatpush.msra.mxu0 %v1422
  %1439 = vmatpush.msra.mxu0 %v1412
  %1440 = vmatmul.f32.gmra.mxu0 %v1417
  %v1441 = vpop.f32.mrf.mxu0
  %v1442 = vadd.f32 0.0, %v1441
  %1443 = vmatmul.f32.gmra.mxu0 %v1420
  %v1444 = vpop.f32.mrf.mxu0
  %v1445 = vadd.f32 0.0, %v1444
  %1446 = vdwg.mxu0
  %v1448 = vsel %vm200, %v1442, 0
  %v1451 = vsel %vm200, %v1445, 0
  %1453 = vmatpush.msra.mxu0 0.0
  %1454 = vmatpush.msra.mxu0 0.0
  %1455 = vmatpush.msra.mxu0 0.0
  %1456 = vmatpush.msra.mxu0 0.0
  %1457 = vmatpush.msra.mxu0 0.0
  %1458 = vmatpush.msra.mxu0 0.0
  %1459 = vmatpush.msra.mxu0 0.0
  %1460 = vmatpush.msra.mxu0 0.0
  %1461 = vmatpush.msra.mxu0 0.0
  %1462 = vmatpush.msra.mxu0 0.0
  %1463 = vmatpush.msra.mxu0 0.0
  %1464 = vmatpush.msra.mxu0 0.0
  %1465 = vmatpush.msra.mxu0 0.0
  %1466 = vmatpush.msra.mxu0 0.0
  %1467 = vmatpush.msra.mxu0 0.0
  %1468 = vmatpush.msra.mxu0 %v900
  %1469 = vmatmul.f32.gmra.mxu0 %v1448
  %v1470 = vpop.f32.mrf.mxu0
  %v1471 = vadd.f32 0.0, %v1470
  %1472 = vmatmul.f32.gmra.mxu0 %v1451
  %v1473 = vpop.f32.mrf.mxu0
  %v1474 = vadd.f32 0.0, %v1473
  %1475 = vdwg.mxu0
  %v1476 = vadd.f32 %v1317, %v1471
  %v1477 = vadd.f32 %v1320, %v1474
  %1478 = vrot.lane.b32.xlu0 %v930, 104
  %v1479 = vpop.permute.xlu0 %1478
  %1480 = vrot.lane.b32.xlu0 %v933, 104
  %v1481 = vpop.permute.xlu0 %1480
  %1482 = vrot.lane.b32.xlu0 %v978, 104
  %v1483 = vpop.permute.xlu0 %1482
  %1484 = vrot.lane.b32.xlu0 %v981, 104
  %v1485 = vpop.permute.xlu0 %1484
  %v1486 = vsel %vm200, %v1479, 0
  %v1488 = vsel %vm200, %v1481, 0
  %v1490 = vsel %vm200, %v1483, 0
  %v1492 = vsel %vm200, %v1485, 0
  %1494 = vmatpush.xpose.msra.mxu0 0.0
  %1495 = vmatpush.xpose.msra.mxu0 0.0
  %1496 = vmatpush.xpose.msra.mxu0 0.0
  %1497 = vmatpush.xpose.msra.mxu0 0.0
  %1498 = vmatpush.xpose.msra.mxu0 0.0
  %1499 = vmatpush.xpose.msra.mxu0 0.0
  %1500 = vmatpush.xpose.msra.mxu0 0.0
  %1501 = vmatpush.xpose.msra.mxu0 0.0
  %1502 = vmatpush.xpose.msra.mxu0 0.0
  %1503 = vmatpush.xpose.msra.mxu0 0.0
  %1504 = vmatpush.xpose.msra.mxu0 0.0
  %1505 = vmatpush.xpose.msra.mxu0 0.0
  %1506 = vmatpush.xpose.msra.mxu0 0.0
  %1507 = vmatpush.xpose.msra.mxu0 0.0
  %1508 = vmatpush.xpose.msra.mxu0 %v1492
  %1509 = vmatpush.xpose.msra.mxu0 %v1490
  %1510 = vmatmul.f32.gmra.mxu0 %v1486
  %v1511 = vpop.f32.mrf.mxu0
  %v1512 = vadd.f32 0.0, %v1511
  %1513 = vmatmul.f32.gmra.mxu0 %v1488
  %v1514 = vpop.f32.mrf.mxu0
  %v1515 = vadd.f32 0.0, %v1514
  %1516 = vdwg.mxu0
  %v1517 = vmul.f32 %v1512, 0.35355338
  %v1518 = vmul.f32 %v1515, 0.35355338
  %v1519 = vsel %vm243, %v1517, -inf
  %1520 = vmax.xlane.f32.xlu0 %v1519
  %v1521 = vpop.xlane.xlu0 %1520
  %v1522 = vsel %vm247, %v1518, -inf
  %1523 = vmax.xlane.f32.xlu0 %v1522
  %v1524 = vpop.xlane.xlu0 %1523
  %v1525 = vsub.f32 %v1517, %v1521
  %v1526 = vsub.f32 %v1518, %v1524
  %v1527 = vmul.f32 %v1525, 1.442695
  %v1528 = vpow.pop %v1527
  %v1529 = vmul.f32 %v1526, 1.442695
  %v1530 = vpow.pop %v1529
  %v1531 = vsel %vm243, %v1528, 0.0
  %1532 = vadd.xlane.f32.xlu0 %v1531
  %v1533 = vpop.xlane.xlu0 %1532
  %v1534 = vsel %vm247, %v1530, 0.0
  %1535 = vadd.xlane.f32.xlu0 %v1534
  %v1536 = vpop.xlane.xlu0 %1535
  %v1537 = vrcp.pop %v1533
  %v1538 = vmul.f32 %v1533, %v1537
  %v1539 = vsub.f32 1.0, %v1538
  %v1540 = vmul.f32 %v1537, %v1539
  %v1541 = vadd.f32 %v1537, %v1540
  %vm1542 = vweird.f32 %v1533
  %vm1543 = vweird.f32 %v1537
  %vm1544 = vmor %vm1542, %vm1543
  %v1545 = vsel %vm1544, %v1537, %v1541
  %v1546 = vand.u32 2147483647, %v1533
  %vm1547 = vcmp.eq.f32.partialorder %v1546, 8.507059e+37
  %v1548 = vand.u32 %v1533, 2147483648
  %v1549 = vor.u32 1.1754944e-38, %v1548
  %v1550 = vsel %vm1547, %v1549, %v1545
  %v1551 = vmul.f32 %v1528, %v1550
  %v1552 = vrcp.pop %v1536
  %v1553 = vmul.f32 %v1536, %v1552
  %v1554 = vsub.f32 1.0, %v1553
  %v1555 = vmul.f32 %v1552, %v1554
  %v1556 = vadd.f32 %v1552, %v1555
  %vm1557 = vweird.f32 %v1536
  %vm1558 = vweird.f32 %v1552
  %vm1559 = vmor %vm1557, %vm1558
  %v1560 = vsel %vm1559, %v1552, %v1556
  %v1561 = vand.u32 2147483647, %v1536
  %vm1562 = vcmp.eq.f32.partialorder %v1561, 8.507059e+37
  %v1563 = vand.u32 %v1536, 2147483648
  %v1564 = vor.u32 1.1754944e-38, %v1563
  %v1565 = vsel %vm1562, %v1564, %v1560
  %v1566 = vmul.f32 %v1530, %v1565
  %1567 = vrot.lane.b32.xlu0 %v1016, 104
  %v1568 = vpop.permute.xlu0 %1567
  %1569 = vrot.lane.b32.xlu0 %v1019, 104
  %v1570 = vpop.permute.xlu0 %1569
  %v1573 = vsel %vm243, %v1551, 0
  %v1576 = vsel %vm243, %v1566, 0
  %v1578 = vsel %vm299, %v1570, 0
  %1580 = vmatpush.msra.mxu0 0.0
  %1581 = vmatpush.msra.mxu0 0.0
  %1582 = vmatpush.msra.mxu0 0.0
  %1583 = vmatpush.msra.mxu0 0.0
  %1584 = vmatpush.msra.mxu0 0.0
  %1585 = vmatpush.msra.mxu0 0.0
  %1586 = vmatpush.msra.mxu0 0.0
  %1587 = vmatpush.msra.mxu0 0.0
  %1588 = vmatpush.msra.mxu0 0.0
  %1589 = vmatpush.msra.mxu0 0.0
  %1590 = vmatpush.msra.mxu0 0.0
  %1591 = vmatpush.msra.mxu0 0.0
  %1592 = vmatpush.msra.mxu0 0.0
  %1593 = vmatpush.msra.mxu0 0.0
  %1594 = vmatpush.msra.mxu0 %v1578
  %1595 = vmatpush.msra.mxu0 %v1568
  %1596 = vmatmul.f32.gmra.mxu0 %v1573
  %v1597 = vpop.f32.mrf.mxu0
  %v1598 = vadd.f32 0.0, %v1597
  %1599 = vmatmul.f32.gmra.mxu0 %v1576
  %v1600 = vpop.f32.mrf.mxu0
  %v1601 = vadd.f32 0.0, %v1600
  %1602 = vdwg.mxu0
  %v1604 = vsel %vm200, %v1598, 0
  %v1607 = vsel %vm200, %v1601, 0
  %1609 = vmatpush.msra.mxu0 0.0
  %1610 = vmatpush.msra.mxu0 0.0
  %1611 = vmatpush.msra.mxu0 0.0
  %1612 = vmatpush.msra.mxu0 0.0
  %1613 = vmatpush.msra.mxu0 0.0
  %1614 = vmatpush.msra.mxu0 0.0
  %1615 = vmatpush.msra.mxu0 0.0
  %1616 = vmatpush.msra.mxu0 0.0
  %1617 = vmatpush.msra.mxu0 0.0
  %1618 = vmatpush.msra.mxu0 0.0
  %1619 = vmatpush.msra.mxu0 0.0
  %1620 = vmatpush.msra.mxu0 0.0
  %1621 = vmatpush.msra.mxu0 0.0
  %1622 = vmatpush.msra.mxu0 0.0
  %1623 = vmatpush.msra.mxu0 0.0
  %1624 = vmatpush.msra.mxu0 %v901
  %1625 = vmatmul.f32.gmra.mxu0 %v1604
  %v1626 = vpop.f32.mrf.mxu0
  %v1627 = vadd.f32 0.0, %v1626
  %1628 = vmatmul.f32.gmra.mxu0 %v1607
  %v1629 = vpop.f32.mrf.mxu0
  %v1630 = vadd.f32 0.0, %v1629
  %1631 = vdwg.mxu0
  %v1632 = vadd.f32 %v1476, %v1627
  %v1633 = vadd.f32 %v1477, %v1630
  %v1635 = vperm.slane %v902, 0
  %v1637 = vadd.f32 %v1632, %v1635
  %v1638 = vadd.f32 %v1633, %v1635
  %v1639 = vadd.f32 %v891, %v1637
  %v1640 = vadd.f32 %v892, %v1638
  %v1641 = vsel %vm90, %v1639, 0.0
  %1642 = vadd.xlane.f32.xlu0 %v1641
  %v1643 = vpop.xlane.xlu0 %1642
  %v1644 = vsel %vm838, %v1640, 0.0
  %1645 = vadd.xlane.f32.xlu0 %v1644
  %v1646 = vpop.xlane.xlu0 %1645
  %v1647 = vmul.f32 %v1643, %v848
  %v1648 = vmul.f32 %v1646, %v848
  %v1649 = vsub.f32 %v1639, %v1647
  %v1650 = vsub.f32 %v1640, %v1648
  %v1651 = vmul.f32 %v1649, %v1649
  %v1652 = vmul.f32 %v1650, %v1650
  %v1653 = vsel %vm90, %v1651, 0.0
  %1654 = vadd.xlane.f32.xlu0 %v1653
  %v1655 = vpop.xlane.xlu0 %1654
  %v1656 = vsel %vm838, %v1652, 0.0
  %1657 = vadd.xlane.f32.xlu0 %v1656
  %v1658 = vpop.xlane.xlu0 %1657
  %v1659 = vmul.f32 %v1655, %v848
  %v1660 = vmul.f32 %v1658, %v848
  %v1661 = vadd.f32 %v1659, 1e-05
  %v1662 = vadd.f32 %v1660, 1e-05
  %v1663 = vrsqrt.pop %v1661
  %v1664 = vmul.f32 %v1663, %v1661
  %v1665 = vmul.f32 %v1664, %v1663
  %v1666 = vmul.f32 0.5, %v1665
  %v1667 = vsub.f32 1.5, %v1666
  %v1668 = vmul.f32 %v1663, %v1667
  %vm1669 = vweird.f32 %v1661
  %vm1670 = vweird.f32 %v1663
  %vm1671 = vmor %vm1669, %vm1670
  %v1672 = vsel %vm1671, %v1663, %v1668
  %v1673 = vrsqrt.pop %v1662
  %v1674 = vmul.f32 %v1673, %v1662
  %v1675 = vmul.f32 %v1674, %v1673
  %v1676 = vmul.f32 0.5, %v1675
  %v1677 = vsub.f32 1.5, %v1676
  %v1678 = vmul.f32 %v1673, %v1677
  %vm1679 = vweird.f32 %v1662
  %vm1680 = vweird.f32 %v1673
  %vm1681 = vmor %vm1679, %vm1680
  %v1682 = vsel %vm1681, %v1673, %v1678
  %v1683 = vmul.f32 %v1649, %v1672
  %v1684 = vmul.f32 %v1650, %v1682
  %v1685 = vperm.slane %v75, 1
  %v1686 = vmul.f32 %v1683, %v1685
  %v1687 = vmul.f32 %v1684, %v1685
  %v1688 = vperm.slane %v76, 1
  %v1689 = vadd.f32 %v1686, %v1688
  %v1690 = vadd.f32 %v1687, %v1688
  %v1691 = vld [vmem:[%s12] sm:$0xff]
  %v1692 = vld [vmem:[%s12 + $0x8] sm:$0xff]
  %v1693 = vld [vmem:[%s12 + $0x10] sm:$0xff]
  %v1694 = vld [vmem:[%s12 + $0x18] sm:$0xff]
  %v1695 = vld [vmem:[%s13] sm:$0x1]
  %v1696 = vld [vmem:[%s14] sm:$0xff]
  %v1697 = vld [vmem:[%s14 + $0x8] sm:$0xff]
  %v1698 = vld [vmem:[%s14 + $0x10] sm:$0xff]
  %v1699 = vld [vmem:[%s14 + $0x18] sm:$0xff]
  %v1700 = vld [vmem:[%s14 + $0x20] sm:$0xff]
  %v1701 = vld [vmem:[%s14 + $0x28] sm:$0xff]
  %v1702 = vld [vmem:[%s14 + $0x30] sm:$0xff]
  %v1703 = vld [vmem:[%s14 + $0x38] sm:$0xff]
  %v1704 = vld [vmem:[%s15] sm:$0x1]
  %v1706 = vperm.slane %v1695, 0
  %v1709 = vsel %vm90, %v1689, 0
  %v1712 = vsel %vm90, %v1690, 0
  %1714 = vmatpush.msra.mxu0 0.0
  %1715 = vmatpush.msra.mxu0 0.0
  %1716 = vmatpush.msra.mxu0 0.0
  %1717 = vmatpush.msra.mxu0 0.0
  %1718 = vmatpush.msra.mxu0 0.0
  %1719 = vmatpush.msra.mxu0 0.0
  %1720 = vmatpush.msra.mxu0 0.0
  %1721 = vmatpush.msra.mxu0 0.0
  %1722 = vmatpush.msra.mxu0 0.0
  %1723 = vmatpush.msra.mxu0 0.0
  %1724 = vmatpush.msra.mxu0 0.0
  %1725 = vmatpush.msra.mxu0 0.0
  %1726 = vmatpush.msra.mxu0 %v1694
  %1727 = vmatpush.msra.mxu0 %v1693
  %1728 = vmatpush.msra.mxu0 %v1692
  %1729 = vmatpush.msra.mxu0 %v1691
  %1730 = vmatmul.f32.gmra.mxu0 %v1709
  %v1731 = vpop.f32.mrf.mxu0
  %v1732 = vadd.f32 %v1706, %v1731
  %1733 = vmatmul.f32.gmra.mxu0 %v1712
  %v1734 = vpop.f32.mrf.mxu0
  %v1735 = vadd.f32 %v1706, %v1734
  %1736 = vdwg.mxu0
  %v1737 = vmax.f32 %v1732, 0.0
  %v1738 = vmax.f32 %v1735, 0.0
  %v1740 = vperm.slane %v1704, 0
  %vm1742 = vcmask 523264
  %v1744 = vsel %vm1742, %v1737, 0
  %v1747 = vsel %vm1742, %v1738, 0
  %1749 = vmatpush.msra.mxu0 0.0
  %1750 = vmatpush.msra.mxu0 0.0
  %1751 = vmatpush.msra.mxu0 0.0
  %1752 = vmatpush.msra.mxu0 0.0
  %1753 = vmatpush.msra.mxu0 0.0
  %1754 = vmatpush.msra.mxu0 0.0
  %1755 = vmatpush.msra.mxu0 0.0
  %1756 = vmatpush.msra.mxu0 0.0
  %1757 = vmatpush.msra.mxu0 %v1703
  %1758 = vmatpush.msra.mxu0 %v1702
  %1759 = vmatpush.msra.mxu0 %v1701
  %1760 = vmatpush.msra.mxu0 %v1700
  %1761 = vmatpush.msra.mxu0 %v1699
  %1762 = vmatpush.msra.mxu0 %v1698
  %1763 = vmatpush.msra.mxu0 %v1697
  %1764 = vmatpush.msra.mxu0 %v1696
  %1765 = vmatmul.f32.gmra.mxu0 %v1744
  %v1766 = vpop.f32.mrf.mxu0
  %v1767 = vadd.f32 %v1740, %v1766
  %1768 = vmatmul.f32.gmra.mxu0 %v1747
  %v1769 = vpop.f32.mrf.mxu0
  %v1770 = vadd.f32 %v1740, %v1769
  %1771 = vdwg.mxu0
  %v1772 = vadd.f32 %v1689, %v1767
  %v1773 = vadd.f32 %v1690, %v1770
  %v1774 = vsel %vm90, %v1772, 0.0
  %1775 = vadd.xlane.f32.xlu0 %v1774
  %v1776 = vpop.xlane.xlu0 %1775
  %v1777 = vsel %vm838, %v1773, 0.0
  %1778 = vadd.xlane.f32.xlu0 %v1777
  %v1779 = vpop.xlane.xlu0 %1778
  %v1780 = vmul.f32 %v1776, %v848
  %v1781 = vmul.f32 %v1779, %v848
  %v1782 = vsub.f32 %v1772, %v1780
  %v1783 = vsub.f32 %v1773, %v1781
  %v1784 = vmul.f32 %v1782, %v1782
  %v1785 = vmul.f32 %v1783, %v1783
  %v1786 = vsel %vm90, %v1784, 0.0
  %1787 = vadd.xlane.f32.xlu0 %v1786
  %v1788 = vpop.xlane.xlu0 %1787
  %v1789 = vsel %vm838, %v1785, 0.0
  %1790 = vadd.xlane.f32.xlu0 %v1789
  %v1791 = vpop.xlane.xlu0 %1790
  %v1792 = vmul.f32 %v1788, %v848
  %v1793 = vmul.f32 %v1791, %v848
  %v1794 = vadd.f32 %v1792, 1e-05
  %v1795 = vadd.f32 %v1793, 1e-05
  %v1796 = vrsqrt.pop %v1794
  %v1797 = vmul.f32 %v1796, %v1794
  %v1798 = vmul.f32 %v1797, %v1796
  %v1799 = vmul.f32 0.5, %v1798
  %v1800 = vsub.f32 1.5, %v1799
  %v1801 = vmul.f32 %v1796, %v1800
  %vm1802 = vweird.f32 %v1794
  %vm1803 = vweird.f32 %v1796
  %vm1804 = vmor %vm1802, %vm1803
  %v1805 = vsel %vm1804, %v1796, %v1801
  %v1806 = vrsqrt.pop %v1795
  %v1807 = vmul.f32 %v1806, %v1795
  %v1808 = vmul.f32 %v1807, %v1806
  %v1809 = vmul.f32 0.5, %v1808
  %v1810 = vsub.f32 1.5, %v1809
  %v1811 = vmul.f32 %v1806, %v1810
  %vm1812 = vweird.f32 %v1795
  %vm1813 = vweird.f32 %v1806
  %vm1814 = vmor %vm1812, %vm1813
  %v1815 = vsel %vm1814, %v1806, %v1811
  %v1816 = vmul.f32 %v1782, %v1805
  %v1817 = vmul.f32 %v1783, %v1815
  %v1818 = vperm.slane %v75, 2
  %v1819 = vmul.f32 %v1816, %v1818
  %v1820 = vmul.f32 %v1817, %v1818
  %v1821 = vperm.slane %v76, 2
  %v1822 = vadd.f32 %v1819, %v1821
  %v1823 = vadd.f32 %v1820, %v1821
  %1825 = vset.pattern.permute.xlu0 0
  %1826 = vperm.xlu0 %1825, %v73
  %v1827 = vpop.permute.xlu0 %1826
  %1830 = vset.pattern.permute.xlu0 0
  %1831 = vperm.xlu0 %1830, %v74
  %v1832 = vpop.permute.xlu0 %1831
  %v1834 = vmul.f32 %v1822, %v1827
  %v1835 = vmul.f32 %v1823, %v1832
  %v1836 = vsel %vm90, %v1834, 0.0
  %v1837 = vsel %vm838, %v1835, 0.0
  %v1838 = vadd.f32 %v1836, %v1837
  %v1839 = vrot.slane %v1838, 4
  %v1840 = vadd.f32 %v1838, %v1839
  %v1841 = vrot.slane %v1840, 2
  %v1842 = vadd.f32 %v1840, %v1841
  %v1843 = vrot.slane %v1842, 1
  %v1844 = vadd.f32 %v1842, %v1843
  %v1845 = vld [vmem:[%s18] sm:$0xff]
  %v1846 = vld [vmem:[%s18 + $0x8] sm:$0xff]
  %v1847 = vld [vmem:[%s18 + $0x10] sm:$0xff]
  %v1848 = vld [vmem:[%s18 + $0x18] sm:$0xff]
  %v1849 = vld [vmem:[%s19] sm:$0xff]
  %v1850 = vld [vmem:[%s19 + $0x8] sm:$0xff]
  %v1851 = vld [vmem:[%s19 + $0x10] sm:$0xff]
  %v1852 = vld [vmem:[%s19 + $0x18] sm:$0xff]
  %v1854 = vsel %vm90, %v1844, 0
  %1856 = vmatpush.msra.mxu0 0.0
  %1857 = vmatpush.msra.mxu0 0.0
  %1858 = vmatpush.msra.mxu0 0.0
  %1859 = vmatpush.msra.mxu0 0.0
  %1860 = vmatpush.msra.mxu0 0.0
  %1861 = vmatpush.msra.mxu0 0.0
  %1862 = vmatpush.msra.mxu0 0.0
  %1863 = vmatpush.msra.mxu0 0.0
  %1864 = vmatpush.msra.mxu0 0.0
  %1865 = vmatpush.msra.mxu0 0.0
  %1866 = vmatpush.msra.mxu0 0.0
  %1867 = vmatpush.msra.mxu0 0.0
  %1868 = vmatpush.msra.mxu0 %v1852
  %1869 = vmatpush.msra.mxu0 %v1851
  %1870 = vmatpush.msra.mxu0 %v1850
  %1871 = vmatpush.msra.mxu0 %v1849
  %1872 = vmatmul.f32.gmra.mxu0 %v1854
  %v1873 = vpop.f32.mrf.mxu0
  %v1874 = vadd.f32 0.0, %v1873
  %1875 = vdwg.mxu0
  %v1876 = vperm.slane %v1874, 0
  %1877 = vmatpush.msra.mxu0 0.0
  %1878 = vmatpush.msra.mxu0 0.0
  %1879 = vmatpush.msra.mxu0 0.0
  %1880 = vmatpush.msra.mxu0 0.0
  %1881 = vmatpush.msra.mxu0 0.0
  %1882 = vmatpush.msra.mxu0 0.0
  %1883 = vmatpush.msra.mxu0 0.0
  %1884 = vmatpush.msra.mxu0 0.0
  %1885 = vmatpush.msra.mxu0 0.0
  %1886 = vmatpush.msra.mxu0 0.0
  %1887 = vmatpush.msra.mxu0 0.0
  %1888 = vmatpush.msra.mxu0 0.0
  %1889 = vmatpush.msra.mxu0 %v1848
  %1890 = vmatpush.msra.mxu0 %v1847
  %1891 = vmatpush.msra.mxu0 %v1846
  %1892 = vmatpush.msra.mxu0 %v1845
  %1893 = vmatmul.f32.gmra.mxu0 %v955
  %v1894 = vpop.f32.mrf.mxu0
  %v1895 = vadd.f32 %v1876, %v1894
  %1896 = vmatmul.f32.gmra.mxu0 %v958
  %v1897 = vpop.f32.mrf.mxu0
  %v1898 = vadd.f32 %v1876, %v1897
  %1899 = vdwg.mxu0
  %v1900 = vtanh.pop %v1895
  %v1901 = vtanh.pop %v1898
  %v1902 = vld [vmem:[%s20] sm:$0x1]
  %v1904 = vsel %vm90, %v1902, 0
  %v1907 = vsel %vm90, %v1900, 0
  %v1910 = vsel %vm90, %v1901, 0
  %1912 = vmatpush.xpose.msra.mxu0 0.0
  %1913 = vmatpush.xpose.msra.mxu0 0.0
  %1914 = vmatpush.xpose.msra.mxu0 0.0
  %1915 = vmatpush.xpose.msra.mxu0 0.0
  %1916 = vmatpush.xpose.msra.mxu0 0.0
  %1917 = vmatpush.xpose.msra.mxu0 0.0
  %1918 = vmatpush.xpose.msra.mxu0 0.0
  %1919 = vmatpush.xpose.msra.mxu0 0.0
  %1920 = vmatpush.xpose.msra.mxu0 0.0
  %1921 = vmatpush.xpose.msra.mxu0 0.0
  %1922 = vmatpush.xpose.msra.mxu0 0.0
  %1923 = vmatpush.xpose.msra.mxu0 0.0
  %1924 = vmatpush.xpose.msra.mxu0 0.0
  %1925 = vmatpush.xpose.msra.mxu0 0.0
  %1926 = vmatpush.xpose.msra.mxu0 %v1910
  %1927 = vmatpush.xpose.msra.mxu0 %v1907
  %1928 = vmatmul.f32.gmra.mxu0 %v1904
  %v1929 = vpop.f32.mrf.mxu0
  %v1930 = vadd.f32 0.0, %v1929
  %1931 = vdwg.mxu0
  %v1932 = vsel %vm247, %v1930, -inf
  %1933 = vmax.xlane.f32.xlu0 %v1932
  %v1934 = vpop.xlane.xlu0 %1933
  %v1935 = vsub.f32 %v1930, %v1934
  %v1936 = vmul.f32 %v1935, 1.442695
  %v1937 = vpow.pop %v1936
  %v1938 = vsel %vm247, %v1937, 0.0
  %1939 = vadd.xlane.f32.xlu0 %v1938
  %v1940 = vpop.xlane.xlu0 %1939
  %v1941 = vlog2.pop %v1940
  %v1942 = vmul.f32 %v1941, 0.6931472
  %v1943 = vadd.f32 %v1934, %v1942
  %v1944 = vsub.f32 %v1930, %v1943
  %1945 = vst.msk [vmem:[%s21] sm:$0x1] %vm247, %v1944
  // Predicated region
  $region86: #{body.12} parent=0 // pred_check
    _
  $region87: #{body.12} parent=0 // pred_check_branch
    %1947 = sbr.rel (0) target = $region89
  $region88: #{body.12} parent=0 // pred_region
    _
  $region89: #{body.12} parent=0 // pred_fallthru
    _
  // Predicated region
  $region90: #{body.12} parent=0 // pred_check
    _
  $region91: #{body.12} parent=0 // pred_check_branch
    %1949 = sbr.rel (0) target = $region93
  $region92: #{body.12} parent=0 // pred_region
    _
  $region93: #{body.12} parent=0 // pred_fallthru
    _

</llo_original>
